<compile_context>
chip_gen: v6e
topology: v6e:2x2x1
jax: 0.10.0
libtpu: 0.0.40
codegen_flags: <defaults>
</compile_context>

<pallas_src>
import numpy as np
import jax
import jax.numpy as jnp
from jax import lax
from jax.experimental import pallas as pl
from jax.experimental.pallas import tpu as pltpu

K_IN = 16        # padded conv1 contraction (9 real + 1 ones-lane + 6 zero pad)
C1_OUT = 256     # conv1 output features (4*4*16)
C2_OUT = 800     # conv2 output features (5*5*32)
C2_PAD = 896     # padded conv2 output / fc1 contraction dim (7*128)
FC_W = 128       # padded fc output width (lane-dense)
TN_MAX = 1024    # max batch rows per grid step


def _round_up(a, b):
    return -(-a // b) * b


def _batch_tile(n):
    """Rows per grid step: large tiles amortize the ~0.35us/step grid overhead;
    keep >= 2 steps when n > 512 so 'parallel' can feed both v7x TensorCores."""
    if n <= 512:
        return min(TN_MAX, _round_up(max(n, 1), 8))
    if n <= 2 * TN_MAX:
        return _round_up((n + 1) // 2, 8)
    return TN_MAX


def _epilogue_dtype():
    """bf16 epilogue on v6e/v7x (bf16 VPU); f32 on v5 and older (no bf16 VPU)."""
    try:
        kind = jax.devices()[0].device_kind.lower()
    except Exception:
        kind = ""
    if any(tag in kind for tag in ("v2", "v3", "v4", "v5")):
        return jnp.float32
    return jnp.bfloat16


# ----------------------------- Pallas kernel --------------------------------
def _make_kernel(ep_dtype):
    bf16 = jnp.bfloat16

    def kernel(x_ref, m1_ref, m2_ref, wfc_ref, bias_ref, o_ref):
        # conv1 (Toeplitz; bias folded via the ones-lane) + ReLU : (TN,16)@(16,256)
        h = jnp.dot(x_ref[...], m1_ref[...], preferred_element_type=jnp.float32)
        h = jnp.maximum(h, 0.0).astype(bf16)
        # conv2 (Toeplitz) + bias + ReLU : (TN,256)@(256,896); epilogue in ep_dtype
        h = jnp.dot(h, m2_ref[...], preferred_element_type=jnp.float32)
        h = jnp.maximum(h.astype(ep_dtype) + bias_ref[:, 0:C2_PAD], 0.0).astype(bf16)
        # fc1 + bias + ReLU : (TN,896)@(896,128)
        h = jnp.dot(h, wfc_ref[0:C2_PAD, :], preferred_element_type=jnp.float32)
        h = jnp.maximum(h.astype(ep_dtype) + bias_ref[:, C2_PAD:C2_PAD + FC_W],
                        0.0).astype(bf16)
        # fc2 + bias + ReLU : (TN,128)@(128,128)
        h = jnp.dot(h, wfc_ref[C2_PAD:C2_PAD + FC_W, :],
                    preferred_element_type=jnp.float32)
        h = jnp.maximum(h.astype(ep_dtype)
                        + bias_ref[:, C2_PAD + FC_W:C2_PAD + 2 * FC_W],
                        0.0).astype(bf16)
        # fc3 : (TN,128)@(128,128) -> lane-dense slab, real value in lane 0
        h = jnp.dot(h, wfc_ref[C2_PAD + FC_W:C2_PAD + 2 * FC_W, :],
                    preferred_element_type=jnp.float32)
        o_ref[...] = (h.astype(ep_dtype)
                      + bias_ref[:, C2_PAD + 2 * FC_W:]).astype(o_ref.dtype)

    return kernel


# ------------------------------ host-side glue ------------------------------
def _conv_toeplitz(w, h_in, w_in, pad, in_order):
    """Lower a 2x2 conv (torch OIHW weight) to a dense matrix.

    Input features flattened in torch (C,H,W) order or this kernel's (H,W,C)
    order.  Output features are always flattened in (H,W,C) order.
    """
    c_out, c_in, kh, kw = w.shape
    h_out = h_in + 2 * pad - kh + 1
    w_out = w_in + 2 * pad - kw + 1
    m = np.zeros((c_in * h_in * w_in, h_out * w_out * c_out), np.float32)
    for i in range(h_out):
        for j in range(w_out):
            out_base = (i * w_out + j) * c_out
            for ki in range(kh):
                for kj in range(kw):
                    r, c = i + ki - pad, j + kj - pad
                    if 0 <= r < h_in and 0 <= c < w_in:
                        for ci in range(c_in):
                            if in_order == "chw":
                                in_idx = ci * h_in * w_in + r * w_in + c
                            else:  # "hwc"
                                in_idx = (r * w_in + c) * c_in + ci
                            m[in_idx, out_base:out_base + c_out] += w[:, ci, ki, kj]
    return m, h_out, w_out


def pack_params(p, ep_dtype=None):
    """Build the 4 packed/padded device arrays consumed by the kernel.

    Call ONCE per parameter set (numpy-based, not traceable); the returned
    tuple is what convnet_forward_pallas takes — no per-call repacking/upload.
    """
    if ep_dtype is None:
        ep_dtype = _epilogue_dtype()

    w1 = np.asarray(p["w1"], np.float32); b1 = np.asarray(p["b1"], np.float32)
    w2 = np.asarray(p["w2"], np.float32); b2 = np.asarray(p["b2"], np.float32)

    # conv1: input is the torch flatten of (N,1,3,3) -> (C,H,W) order (C==1).
    m1, h1, w1o = _conv_toeplitz(w1, 3, 3, 1, "chw")            # (9, 256)
    # conv2: input is conv1's output in this kernel's (H,W,C) order.
    m2, h2, w2o = _conv_toeplitz(w2, h1, w1o, 1, "hwc")         # (256, 800)

    # conv1 matrix padded K 9->16; bias folded into the ones-lane row (row 9).
    m1_aug = np.zeros((K_IN, C1_OUT), np.float32)
    m1_aug[:9] = m1
    m1_aug[9] = np.tile(b1, h1 * w1o)

    # conv2 matrix, output padded 800 -> 896 (zero columns).
    m2_pad = np.zeros((C1_OUT, C2_PAD), np.float32)
    m2_pad[:, :C2_OUT] = m2

    # fc weights: fc1 permuted from torch (C,H,W) flatten to kernel (H,W,C);
    # all padded to 128-wide outputs and packed into one (1152, 128) slab.
    wfc1 = (np.asarray(p["wfc1"], np.float32).reshape(32, 32, h2, w2o)
            .transpose(2, 3, 1, 0).reshape(h2 * w2o * 32, 32))
    wfc1_pad = np.zeros((C2_PAD, FC_W), np.float32)
    wfc1_pad[:C2_OUT, :32] = wfc1
    wfc2_pad = np.zeros((FC_W, FC_W), np.float32)
    wfc2_pad[:32, :8] = np.asarray(p["wfc2"], np.float32).T
    wfc3_pad = np.zeros((FC_W, FC_W), np.float32)
    wfc3_pad[:8, :1] = np.asarray(p["wfc3"], np.float32).T
    wfc_pack = np.concatenate([wfc1_pad, wfc2_pad, wfc3_pad], axis=0)

    # biases for conv2/fc1/fc2/fc3, packed into one 128-aligned row (ep_dtype).
    bias_pack = np.zeros((1, C2_PAD + 3 * FC_W), np.float32)
    bias_pack[0, :C2_OUT] = np.tile(b2, h2 * w2o)
    bias_pack[0, C2_PAD:C2_PAD + 32] = np.asarray(p["bfc1"], np.float32)
    bias_pack[0, C2_PAD + FC_W:C2_PAD + FC_W + 8] = np.asarray(p["bfc2"], np.float32)
    bias_pack[0, C2_PAD + 2 * FC_W] = np.asarray(p["bfc3"], np.float32)[0]

    return (jnp.asarray(m1_aug, jnp.bfloat16),
            jnp.asarray(m2_pad, jnp.bfloat16),
            jnp.asarray(wfc_pack, jnp.bfloat16),
            jnp.asarray(bias_pack, ep_dtype))


def init_params(key):
    """Deterministic parameters matching the PyTorch module's shapes."""
    ks = jax.random.split(key, 10)

    def u(k, shape, fan_in):
        bound = 1.0 / np.sqrt(fan_in)
        return jax.random.uniform(k, shape, jnp.float32, -bound, bound)

    return {
        "w1": u(ks[0], (16, 1, 2, 2), 1 * 2 * 2),   "b1": u(ks[1], (16,), 4),
        "w2": u(ks[2], (32, 16, 2, 2), 16 * 2 * 2), "b2": u(ks[3], (32,), 64),
        "wfc1": u(ks[4], (32, 800), 800),           "bfc1": u(ks[5], (32,), 800),
        "wfc2": u(ks[6], (8, 32), 32),              "bfc2": u(ks[7], (8,), 32),
        "wfc3": u(ks[8], (1, 8), 8),                "bfc3": u(ks[9], (1,), 8),
    }


def convnet_forward_pallas(x, packed):
    """Forward pass.  `packed` = pack_params(params), computed once per net."""
    m1, m2, wfc, bias = packed
    ep_dtype = bias.dtype
    out_dtype = jnp.bfloat16 if ep_dtype == jnp.bfloat16 else jnp.float32

    n = x.shape[0]
    tn = _batch_tile(n)
    n_pad = pl.cdiv(n, tn) * tn

    # (N,1,3,3) -> (N_pad,16): 9 flattened input features, a ones-lane (carries
    # the folded conv1 bias) and zero pad; padded batch rows are discarded later.
    x_flat = x.reshape(n, -1).astype(jnp.float32)
    x_aug = jnp.concatenate(
        [x_flat, jnp.ones((n, 1), jnp.float32),
         jnp.zeros((n, K_IN - 10), jnp.float32)], axis=1)
    x_aug = jnp.pad(x_aug, ((0, n_pad - n), (0, 0))).astype(jnp.bfloat16)

    def call(single_buffer_weights):
        wmode = ({"pipeline_mode": pl.Buffered(1)} if single_buffer_weights else {})
        return pl.pallas_call(
            _make_kernel(ep_dtype),
            out_shape=jax.ShapeDtypeStruct((n_pad, FC_W), out_dtype),
            grid=(n_pad // tn,),
            in_specs=[
                pl.BlockSpec((tn, K_IN), lambda i: (i, 0)),                         # x tile
                pl.BlockSpec((K_IN, C1_OUT), lambda i: (0, 0), **wmode),            # conv1 (resident)
                pl.BlockSpec((C1_OUT, C2_PAD), lambda i: (0, 0), **wmode),          # conv2 (resident)
                pl.BlockSpec((C2_PAD + 2 * FC_W, FC_W), lambda i: (0, 0), **wmode), # fc pack (resident)
                pl.BlockSpec((1, C2_PAD + 3 * FC_W), lambda i: (0, 0), **wmode),    # bias pack (resident)
            ],
            out_specs=pl.BlockSpec((tn, FC_W), lambda i: (i, 0)),
            compiler_params=pltpu.CompilerParams(
                dimension_semantics=("parallel",),
                vmem_limit_bytes=32 * 1024 * 1024),
        )(x_aug, m1, m2, wfc, bias)

    try:
        out = call(True)
    except Exception:
        # Some jaxlib versions reject single-buffered revisited blocks; fall back
        # to default double-buffering (identical results, ~0.85 MiB more VMEM).
        out = call(False)

    return out[:n, 0:1].astype(jnp.float32)      # lane-dense slab -> (N, 1) f32


def convnet_forward_ref(x, p):
    """Pure-JAX f32 reference with exact PyTorch (NCHW) semantics."""
    dn = ("NCHW", "OIHW", "NCHW")
    y = lax.conv_general_dilated(x, p["w1"], (1, 1), ((1, 1), (1, 1)),
                                 dimension_numbers=dn)
    y = jax.nn.relu(y + p["b1"][None, :, None, None])
    y = lax.conv_general_dilated(y, p["w2"], (1, 1), ((1, 1), (1, 1)),
                                 dimension_numbers=dn)
    y = jax.nn.relu(y + p["b2"][None, :, None, None])
    y = y.reshape(x.shape[0], -1)                      # nn.Flatten (C,H,W)
    y = jax.nn.relu(y @ p["wfc1"].T + p["bfc1"])
    y = jax.nn.relu(y @ p["wfc2"].T + p["bfc2"])
    return y @ p["wfc3"].T + p["bfc3"]


if __name__ == "__main__":
    key = jax.random.PRNGKey(0)
    k_param, k_x = jax.random.split(key)
    params = init_params(k_param)
    packed = pack_params(params)       # hoisted: Toeplitz build + H2D upload, once
    x = jax.random.normal(k_x, (4, 1, 3, 3), jnp.float32)   # batch of 3x3 boards

    out = jax.block_until_ready(convnet_forward_pallas(x, packed))
    assert out.shape == (4, 1) and out.dtype == jnp.float32

    ref = jax.block_until_ready(convnet_forward_ref(x, params))
    # bf16 weights/activations (and bf16 epilogue on v6e/v7x) with f32
    # accumulation vs the f32 reference.
    np.testing.assert_allclose(np.asarray(out), np.asarray(ref),
                               rtol=2e-2, atol=2e-2)
    print("KERNEL_OK")
</pallas_src>

<mosaic_0001>
module attributes {stable_mosaic.version = 11 : i64} {
  func.func @kernel(%arg0: i32, %arg1: memref<8x16xbf16, #tpu.memory_space<vmem>>, %arg2: memref<16x256xbf16, #tpu.memory_space<vmem>>, %arg3: memref<256x896xbf16, #tpu.memory_space<vmem>>, %arg4: memref<1152x128xbf16, #tpu.memory_space<vmem>>, %arg5: memref<1x1280xbf16, #tpu.memory_space<vmem>>, %arg6: memref<8x128xbf16, #tpu.memory_space<vmem>>) attributes {dimension_semantics = [#tpu.dimension_semantics<parallel>], iteration_bounds = array<i64: 1>, scalar_prefetch = 0 : i64, scratch_operands = 0 : i64, tpu.core_type = #tpu.core_type<tc>, window_params = [{transform_indices = @transform_0, window_bounds = array<i64: 8, 16>}, {pipeline_mode = #tpu.pipeline_mode<synchronous>, transform_indices = @transform_1, window_bounds = array<i64: 16, 256>}, {pipeline_mode = #tpu.pipeline_mode<synchronous>, transform_indices = @transform_2, window_bounds = array<i64: 256, 896>}, {pipeline_mode = #tpu.pipeline_mode<synchronous>, transform_indices = @transform_3, window_bounds = array<i64: 1152, 128>}, {pipeline_mode = #tpu.pipeline_mode<synchronous>, transform_indices = @transform_4, window_bounds = array<i64: 1, 1280>}, {transform_indices = @transform_5, window_bounds = array<i64: 8, 128>}]} {
    %c0 = arith.constant 0 : index
    %c0_0 = arith.constant 0 : index
    %0 = vector.load %arg1[%c0, %c0_0] : memref<8x16xbf16, #tpu.memory_space<vmem>>, vector<8x16xbf16>
    %c0_1 = arith.constant 0 : index
    %c0_2 = arith.constant 0 : index
    %1 = vector.load %arg2[%c0_1, %c0_2] : memref<16x256xbf16, #tpu.memory_space<vmem>>, vector<16x256xbf16>
    %cst = arith.constant dense<0.000000e+00> : vector<8x256xf32>
    %2 = tpu.matmul %0, %1, %cst {dimension_numbers = #tpu.dot_dimension_numbers<[1], [0], [0], [1], [0, 0, 1, 1], [], []>} : vector<8x16xbf16>, vector<16x256xbf16>, vector<8x256xf32> -> vector<8x256xf32>
    %cst_3 = arith.constant 0.000000e+00 : f32
    %3 = vector.broadcast %cst_3 : f32 to vector<8x256xf32>
    %4 = arith.maximumf %2, %3 : vector<8x256xf32>
    %5 = arith.truncf %4 : vector<8x256xf32> to vector<8x256xbf16>
    %c0_4 = arith.constant 0 : index
    %c0_5 = arith.constant 0 : index
    %6 = vector.load %arg3[%c0_4, %c0_5] : memref<256x896xbf16, #tpu.memory_space<vmem>>, vector<256x896xbf16>
    %cst_6 = arith.constant dense<0.000000e+00> : vector<8x896xf32>
    %7 = tpu.matmul %5, %6, %cst_6 {dimension_numbers = #tpu.dot_dimension_numbers<[1], [0], [0], [1], [0, 0, 1, 1], [], []>} : vector<8x256xbf16>, vector<256x896xbf16>, vector<8x896xf32> -> vector<8x896xf32>
    %8 = arith.truncf %7 : vector<8x896xf32> to vector<8x896xbf16>
    %c0_7 = arith.constant 0 : index
    %c0_8 = arith.constant 0 : index
    %9 = vector.load %arg5[%c0_7, %c0_8] : memref<1x1280xbf16, #tpu.memory_space<vmem>>, vector<1x896xbf16>
    %10 = vector.broadcast %9 : vector<1x896xbf16> to vector<8x896xbf16>
    %11 = arith.addf %8, %10 : vector<8x896xbf16>
    %cst_9 = arith.constant 0.000000e+00 : bf16
    %12 = vector.broadcast %cst_9 : bf16 to vector<8x896xbf16>
    %13 = arith.maximumf %11, %12 : vector<8x896xbf16>
    %c0_10 = arith.constant 0 : index
    %c0_11 = arith.constant 0 : index
    %14 = vector.load %arg4[%c0_10, %c0_11] : memref<1152x128xbf16, #tpu.memory_space<vmem>>, vector<896x128xbf16>
    %cst_12 = arith.constant dense<0.000000e+00> : vector<8x128xf32>
    %15 = tpu.matmul %13, %14, %cst_12 {dimension_numbers = #tpu.dot_dimension_numbers<[1], [0], [0], [1], [0, 0, 1, 1], [], []>} : vector<8x896xbf16>, vector<896x128xbf16>, vector<8x128xf32> -> vector<8x128xf32>
    %16 = arith.truncf %15 : vector<8x128xf32> to vector<8x128xbf16>
    %c0_13 = arith.constant 0 : index
    %c896 = arith.constant 896 : index
    %17 = vector.load %arg5[%c0_13, %c896] : memref<1x1280xbf16, #tpu.memory_space<vmem>>, vector<1x128xbf16>
    %18 = vector.broadcast %17 : vector<1x128xbf16> to vector<8x128xbf16>
    %19 = arith.addf %16, %18 : vector<8x128xbf16>
    %cst_14 = arith.constant 0.000000e+00 : bf16
    %20 = vector.broadcast %cst_14 : bf16 to vector<8x128xbf16>
    %21 = arith.maximumf %19, %20 : vector<8x128xbf16>
    %c896_15 = arith.constant 896 : index
    %c0_16 = arith.constant 0 : index
    %22 = vector.load %arg4[%c896_15, %c0_16] : memref<1152x128xbf16, #tpu.memory_space<vmem>>, vector<128x128xbf16>
    %cst_17 = arith.constant dense<0.000000e+00> : vector<8x128xf32>
    %23 = tpu.matmul %21, %22, %cst_17 {dimension_numbers = #tpu.dot_dimension_numbers<[1], [0], [0], [1], [0, 0, 1, 1], [], []>} : vector<8x128xbf16>, vector<128x128xbf16>, vector<8x128xf32> -> vector<8x128xf32>
    %24 = arith.truncf %23 : vector<8x128xf32> to vector<8x128xbf16>
    %c0_18 = arith.constant 0 : index
    %c1024 = arith.constant 1024 : index
    %25 = vector.load %arg5[%c0_18, %c1024] : memref<1x1280xbf16, #tpu.memory_space<vmem>>, vector<1x128xbf16>
    %26 = vector.broadcast %25 : vector<1x128xbf16> to vector<8x128xbf16>
    %27 = arith.addf %24, %26 : vector<8x128xbf16>
    %cst_19 = arith.constant 0.000000e+00 : bf16
    %28 = vector.broadcast %cst_19 : bf16 to vector<8x128xbf16>
    %29 = arith.maximumf %27, %28 : vector<8x128xbf16>
    %c1024_20 = arith.constant 1024 : index
    %c0_21 = arith.constant 0 : index
    %30 = vector.load %arg4[%c1024_20, %c0_21] : memref<1152x128xbf16, #tpu.memory_space<vmem>>, vector<128x128xbf16>
    %cst_22 = arith.constant dense<0.000000e+00> : vector<8x128xf32>
    %31 = tpu.matmul %29, %30, %cst_22 {dimension_numbers = #tpu.dot_dimension_numbers<[1], [0], [0], [1], [0, 0, 1, 1], [], []>} : vector<8x128xbf16>, vector<128x128xbf16>, vector<8x128xf32> -> vector<8x128xf32>
    %32 = arith.truncf %31 : vector<8x128xf32> to vector<8x128xbf16>
    %c0_23 = arith.constant 0 : index
    %c1152 = arith.constant 1152 : index
    %33 = vector.load %arg5[%c0_23, %c1152] : memref<1x1280xbf16, #tpu.memory_space<vmem>>, vector<1x128xbf16>
    %34 = vector.broadcast %33 : vector<1x128xbf16> to vector<8x128xbf16>
    %35 = arith.addf %32, %34 : vector<8x128xbf16>
    %c0_24 = arith.constant 0 : index
    %c0_25 = arith.constant 0 : index
    %36 = vector.load %arg6[%c0_24, %c0_25] : memref<8x128xbf16, #tpu.memory_space<vmem>>, vector<8x128xbf16>
    tpu.vector_store %arg6[%c0_24, %c0_25], %35 {strides = array<i32>} : memref<8x128xbf16, #tpu.memory_space<vmem>>, vector<8x128xbf16>,
    return
  }
  func.func @transform_0(%arg0: i32) -> (i32, i32) {
    %c0_i32 = arith.constant 0 : i32
    %c0_i32_0 = arith.constant 0 : i32
    return %arg0, %c0_i32 : i32, i32
  }
  func.func @transform_1(%arg0: i32) -> (i32, i32) {
    %c0_i32 = arith.constant 0 : i32
    %c0_i32_0 = arith.constant 0 : i32
    %c0_i32_1 = arith.constant 0 : i32
    return %c0_i32, %c0_i32_0 : i32, i32
  }
  func.func @transform_2(%arg0: i32) -> (i32, i32) {
    %c0_i32 = arith.constant 0 : i32
    %c0_i32_0 = arith.constant 0 : i32
    %c0_i32_1 = arith.constant 0 : i32
    return %c0_i32, %c0_i32_0 : i32, i32
  }
  func.func @transform_3(%arg0: i32) -> (i32, i32) {
    %c0_i32 = arith.constant 0 : i32
    %c0_i32_0 = arith.constant 0 : i32
    %c0_i32_1 = arith.constant 0 : i32
    return %c0_i32, %c0_i32_0 : i32, i32
  }
  func.func @transform_4(%arg0: i32) -> (i32, i32) {
    %c0_i32 = arith.constant 0 : i32
    %c0_i32_0 = arith.constant 0 : i32
    %c0_i32_1 = arith.constant 0 : i32
    return %c0_i32, %c0_i32_0 : i32, i32
  }
  func.func @transform_5(%arg0: i32) -> (i32, i32) {
    %c0_i32 = arith.constant 0 : i32
    %c0_i32_0 = arith.constant 0 : i32
    return %arg0, %c0_i32 : i32, i32
  }
}

module attributes {stable_mosaic.version = 11 : i64} {
  func.func @kernel(%arg0: i32, %arg1: memref<8x16xbf16, #tpu.memory_space<vmem>>, %arg2: memref<16x256xbf16, #tpu.memory_space<vmem>>, %arg3: memref<256x896xbf16, #tpu.memory_space<vmem>>, %arg4: memref<1152x128xbf16, #tpu.memory_space<vmem>>, %arg5: memref<1x1280xbf16, #tpu.memory_space<vmem>>, %arg6: memref<8x128xbf16, #tpu.memory_space<vmem>>) attributes {dimension_semantics = [#tpu.dimension_semantics<parallel>], iteration_bounds = array<i64: 1>, scalar_prefetch = 0 : i64, scratch_operands = 0 : i64, tpu.core_type = #tpu.core_type<tc>, window_params = [{transform_indices = @transform_0, window_bounds = array<i64: 8, 16>}, {pipeline_mode = #tpu.pipeline_mode<synchronous>, transform_indices = @transform_1, window_bounds = array<i64: 16, 256>}, {pipeline_mode = #tpu.pipeline_mode<synchronous>, transform_indices = @transform_2, window_bounds = array<i64: 256, 896>}, {pipeline_mode = #tpu.pipeline_mode<synchronous>, transform_indices = @transform_3, window_bounds = array<i64: 1152, 128>}, {pipeline_mode = #tpu.pipeline_mode<synchronous>, transform_indices = @transform_4, window_bounds = array<i64: 1, 1280>}, {transform_indices = @transform_5, window_bounds = array<i64: 8, 128>}]} {
    %c0 = arith.constant 0 : index
    %c0_0 = arith.constant 0 : index
    %0 = vector.load %arg1[%c0, %c0_0] : memref<8x16xbf16, #tpu.memory_space<vmem>>, vector<8x16xbf16>
    %c0_1 = arith.constant 0 : index
    %c0_2 = arith.constant 0 : index
    %1 = vector.load %arg2[%c0_1, %c0_2] : memref<16x256xbf16, #tpu.memory_space<vmem>>, vector<16x256xbf16>
    %cst = arith.constant dense<0.000000e+00> : vector<8x256xf32>
    %2 = tpu.matmul %0, %1, %cst {dimension_numbers = #tpu.dot_dimension_numbers<[1], [0], [0], [1], [0, 0, 1, 1], [], []>} : vector<8x16xbf16>, vector<16x256xbf16>, vector<8x256xf32> -> vector<8x256xf32>
    %cst_3 = arith.constant 0.000000e+00 : f32
    %3 = vector.broadcast %cst_3 : f32 to vector<8x256xf32>
    %4 = arith.maximumf %2, %3 : vector<8x256xf32>
    %5 = arith.truncf %4 : vector<8x256xf32> to vector<8x256xbf16>
    %c0_4 = arith.constant 0 : index
    %c0_5 = arith.constant 0 : index
    %6 = vector.load %arg3[%c0_4, %c0_5] : memref<256x896xbf16, #tpu.memory_space<vmem>>, vector<256x896xbf16>
    %cst_6 = arith.constant dense<0.000000e+00> : vector<8x896xf32>
    %7 = tpu.matmul %5, %6, %cst_6 {dimension_numbers = #tpu.dot_dimension_numbers<[1], [0], [0], [1], [0, 0, 1, 1], [], []>} : vector<8x256xbf16>, vector<256x896xbf16>, vector<8x896xf32> -> vector<8x896xf32>
    %8 = arith.truncf %7 : vector<8x896xf32> to vector<8x896xbf16>
    %c0_7 = arith.constant 0 : index
    %c0_8 = arith.constant 0 : index
    %9 = vector.load %arg5[%c0_7, %c0_8] : memref<1x1280xbf16, #tpu.memory_space<vmem>>, vector<1x896xbf16>
    %10 = vector.broadcast %9 : vector<1x896xbf16> to vector<8x896xbf16>
    %11 = arith.addf %8, %10 : vector<8x896xbf16>
    %cst_9 = arith.constant 0.000000e+00 : bf16
    %12 = vector.broadcast %cst_9 : bf16 to vector<8x896xbf16>
    %13 = arith.maximumf %11, %12 : vector<8x896xbf16>
    %c0_10 = arith.constant 0 : index
    %c0_11 = arith.constant 0 : index
    %14 = vector.load %arg4[%c0_10, %c0_11] : memref<1152x128xbf16, #tpu.memory_space<vmem>>, vector<896x128xbf16>
    %cst_12 = arith.constant dense<0.000000e+00> : vector<8x128xf32>
    %15 = tpu.matmul %13, %14, %cst_12 {dimension_numbers = #tpu.dot_dimension_numbers<[1], [0], [0], [1], [0, 0, 1, 1], [], []>} : vector<8x896xbf16>, vector<896x128xbf16>, vector<8x128xf32> -> vector<8x128xf32>
    %16 = arith.truncf %15 : vector<8x128xf32> to vector<8x128xbf16>
    %c0_13 = arith.constant 0 : index
    %c896 = arith.constant 896 : index
    %17 = vector.load %arg5[%c0_13, %c896] : memref<1x1280xbf16, #tpu.memory_space<vmem>>, vector<1x128xbf16>
    %18 = vector.broadcast %17 : vector<1x128xbf16> to vector<8x128xbf16>
    %19 = arith.addf %16, %18 : vector<8x128xbf16>
    %cst_14 = arith.constant 0.000000e+00 : bf16
    %20 = vector.broadcast %cst_14 : bf16 to vector<8x128xbf16>
    %21 = arith.maximumf %19, %20 : vector<8x128xbf16>
    %c896_15 = arith.constant 896 : index
    %c0_16 = arith.constant 0 : index
    %22 = vector.load %arg4[%c896_15, %c0_16] : memref<1152x128xbf16, #tpu.memory_space<vmem>>, vector<128x128xbf16>
    %cst_17 = arith.constant dense<0.000000e+00> : vector<8x128xf32>
    %23 = tpu.matmul %21, %22, %cst_17 {dimension_numbers = #tpu.dot_dimension_numbers<[1], [0], [0], [1], [0, 0, 1, 1], [], []>} : vector<8x128xbf16>, vector<128x128xbf16>, vector<8x128xf32> -> vector<8x128xf32>
    %24 = arith.truncf %23 : vector<8x128xf32> to vector<8x128xbf16>
    %c0_18 = arith.constant 0 : index
    %c1024 = arith.constant 1024 : index
    %25 = vector.load %arg5[%c0_18, %c1024] : memref<1x1280xbf16, #tpu.memory_space<vmem>>, vector<1x128xbf16>
    %26 = vector.broadcast %25 : vector<1x128xbf16> to vector<8x128xbf16>
    %27 = arith.addf %24, %26 : vector<8x128xbf16>
    %cst_19 = arith.constant 0.000000e+00 : bf16
    %28 = vector.broadcast %cst_19 : bf16 to vector<8x128xbf16>
    %29 = arith.maximumf %27, %28 : vector<8x128xbf16>
    %c1024_20 = arith.constant 1024 : index
    %c0_21 = arith.constant 0 : index
    %30 = vector.load %arg4[%c1024_20, %c0_21] : memref<1152x128xbf16, #tpu.memory_space<vmem>>, vector<128x128xbf16>
    %cst_22 = arith.constant dense<0.000000e+00> : vector<8x128xf32>
    %31 = tpu.matmul %29, %30, %cst_22 {dimension_numbers = #tpu.dot_dimension_numbers<[1], [0], [0], [1], [0, 0, 1, 1], [], []>} : vector<8x128xbf16>, vector<128x128xbf16>, vector<8x128xf32> -> vector<8x128xf32>
    %32 = arith.truncf %31 : vector<8x128xf32> to vector<8x128xbf16>
    %c0_23 = arith.constant 0 : index
    %c1152 = arith.constant 1152 : index
    %33 = vector.load %arg5[%c0_23, %c1152] : memref<1x1280xbf16, #tpu.memory_space<vmem>>, vector<1x128xbf16>
    %34 = vector.broadcast %33 : vector<1x128xbf16> to vector<8x128xbf16>
    %35 = arith.addf %32, %34 : vector<8x128xbf16>
    %c0_24 = arith.constant 0 : index
    %c0_25 = arith.constant 0 : index
    %36 = vector.load %arg6[%c0_24, %c0_25] : memref<8x128xbf16, #tpu.memory_space<vmem>>, vector<8x128xbf16>
    tpu.vector_store %arg6[%c0_24, %c0_25], %35 {strides = array<i32>} : memref<8x128xbf16, #tpu.memory_space<vmem>>, vector<8x128xbf16>,
    return
  }
  func.func @transform_0(%arg0: i32) -> (i32, i32) {
    %c0_i32 = arith.constant 0 : i32
    %c0_i32_0 = arith.constant 0 : i32
    return %arg0, %c0_i32 : i32, i32
  }
  func.func @transform_1(%arg0: i32) -> (i32, i32) {
    %c0_i32 = arith.constant 0 : i32
    %c0_i32_0 = arith.constant 0 : i32
    %c0_i32_1 = arith.constant 0 : i32
    return %c0_i32, %c0_i32_0 : i32, i32
  }
  func.func @transform_2(%arg0: i32) -> (i32, i32) {
    %c0_i32 = arith.constant 0 : i32
    %c0_i32_0 = arith.constant 0 : i32
    %c0_i32_1 = arith.constant 0 : i32
    return %c0_i32, %c0_i32_0 : i32, i32
  }
  func.func @transform_3(%arg0: i32) -> (i32, i32) {
    %c0_i32 = arith.constant 0 : i32
    %c0_i32_0 = arith.constant 0 : i32
    %c0_i32_1 = arith.constant 0 : i32
    return %c0_i32, %c0_i32_0 : i32, i32
  }
  func.func @transform_4(%arg0: i32) -> (i32, i32) {
    %c0_i32 = arith.constant 0 : i32
    %c0_i32_0 = arith.constant 0 : i32
    %c0_i32_1 = arith.constant 0 : i32
    return %c0_i32, %c0_i32_0 : i32, i32
  }
  func.func @transform_5(%arg0: i32) -> (i32, i32) {
    %c0_i32 = arith.constant 0 : i32
    %c0_i32_0 = arith.constant 0 : i32
    return %arg0, %c0_i32 : i32, i32
  }
}

</mosaic_0001>

<llo_original>
// kernel: tpu_custom_call.1
$region0: #{tpu_custom_call.1}
  #allocation0 [shape = 'u32[]', space=smem, size = 0x4, offset = 0x4, fixed_abs, tag = 'smem constant byte address 0x4 - core index']
  #allocation1 [shape = 'u32[144,128]{1,0:T(1,128)}', space=vmem, size = 0x12000, scoped, tag = 'internal scratch']
  %s0 = inlined_call_operand.hbm [shape: bf16[8,16], index: 0, kind: input, shape index: {}]
  %s1 = inlined_call_operand.hbm [shape: bf16[16,256], index: 1, kind: input, shape index: {}]
  %s2 = inlined_call_operand.hbm [shape: bf16[256,896], index: 2, kind: input, shape index: {}]
  %s3 = inlined_call_operand.hbm [shape: bf16[1152,128], index: 3, kind: input, shape index: {}]
  %s4 = inlined_call_operand.hbm [shape: bf16[1,1280], index: 4, kind: input, shape index: {}]
  %s5 = inlined_call_operand.hbm [shape: bf16[8,128], index: 5, kind: output, shape index: {}]
  %s6 = sld [smem:[#allocation0]]
  $region50: #{tpu_custom_call.1} parent=0
    _
  %s8 = ssub.s32 1, %s6
  %s9 = scalar_select 0, %s8, %s6
  $region1: #{tpu_custom_call.1} parent=0
    #allocation2 [shape = 'u8[2048]{0}', space=vmem, size = 0x800, scoped, tag = 'input window, operand 0, single buffered']
    #allocation3 [shape = 's32[1]{0}', space=sflag, size = 0x4, scoped, tag = 'scoped memory for tpu_custom_call.1']
    #allocation4 [shape = 's32[1]{0}', space=sflag, size = 0x4, scoped, tag = 'scoped memory for tpu_custom_call.1']
    #allocation5 [shape = 'u8[8192]{0}', space=vmem, size = 0x2000, scoped, tag = 'input window, operand 1, single buffered']
    #allocation6 [shape = 's32[1]{0}', space=sflag, size = 0x4, scoped, tag = 'scoped memory for tpu_custom_call.1']
    #allocation7 [shape = 'u8[458752]{0}', space=vmem, size = 0x70000, scoped, tag = 'input window, operand 2, single buffered']
    #allocation8 [shape = 'u8[294912]{0}', space=vmem, size = 0x48000, scoped, tag = 'input window, operand 3, single buffered']
    #allocation9 [shape = 's32[1]{0}', space=sflag, size = 0x4, scoped, tag = 'scoped memory for tpu_custom_call.1']
    #allocation10 [shape = 'u8[5120]{0}', space=vmem, size = 0x1400, scoped, tag = 'input window, operand 4, single buffered']
    #allocation11 [shape = 'u8[2048]{0}', space=vmem, size = 0x800, scoped, tag = 'output window, operand 0, single buffered']
    %10 = vsyncpa [#allocation3], 0
    %11 = vsyncpa [#allocation6], 0
    %12 = vsyncpa [#allocation9], 0
    %13 = vsyncpa [#allocation4], 0
    // Predicated region
    $region2: #{tpu_custom_call.1} parent=1 // pred_check
      _
    $region3: #{tpu_custom_call.1} parent=1 // pred_check_branch
      %15 = sbr.rel (0) target = $region5
    $region4: #{tpu_custom_call.1} parent=1 // pred_region
      %s17 = ssub.s32 64, 64
      %18 = vsyncadd [#allocation3], %s17
      %s20 = sshll.u32 [#allocation2], 4
      %s21 = int_to_ptr.vmem [resolvable:$true] %s20
      %23 = dma.hbm_to_vmem [thread:$0]  %s0, 64, %s21, [#allocation3]
    $region5: #{tpu_custom_call.1} parent=1 // pred_fallthru
      _
    // Predicated region
    $region6: #{tpu_custom_call.1} parent=1 // pred_check
      _
    $region7: #{tpu_custom_call.1} parent=1 // pred_check_branch
      %25 = sbr.rel (0) target = $region9
    $region8: #{tpu_custom_call.1} parent=1 // pred_region
      %s27 = ssub.s32 256, 256
      %28 = vsyncadd [#allocation6], %s27
      %s29 = sshll.u32 [#allocation5], 4
      %s30 = int_to_ptr.vmem [resolvable:$true] %s29
      %35 = dma.hbm_to_vmem [thread:$0]  %s1, 256, %s30, [#allocation6], 128, 128, 8
    $region9: #{tpu_custom_call.1} parent=1 // pred_fallthru
      _
    // Predicated region
    $region10: #{tpu_custom_call.1} parent=1 // pred_check
      _
    $region11: #{tpu_custom_call.1} parent=1 // pred_check_branch
      %37 = sbr.rel (0) target = $region13
    $region12: #{tpu_custom_call.1} parent=1 // pred_region
      %s39 = ssub.s32 14336, 14336
      %40 = vsyncadd [#allocation6], %s39
      %s41 = sshll.u32 [#allocation7], 4
      %s42 = int_to_ptr.vmem [resolvable:$true] %s41
      %47 = dma.hbm_to_vmem [thread:$0]  %s2, 14336, %s42, [#allocation6], 448, 448, 28
    $region13: #{tpu_custom_call.1} parent=1 // pred_fallthru
      _
    // Predicated region
    $region14: #{tpu_custom_call.1} parent=1 // pred_check
      _
    $region15: #{tpu_custom_call.1} parent=1 // pred_check_branch
      %49 = sbr.rel (0) target = $region17
    $region16: #{tpu_custom_call.1} parent=1 // pred_region
      %s51 = ssub.s32 9216, 9216
      %52 = vsyncadd [#allocation9], %s51
      %s53 = sshll.u32 [#allocation8], 4
      %s54 = int_to_ptr.vmem [resolvable:$true] %s53
      %59 = dma.hbm_to_vmem [thread:$0]  %s3, 9216, %s54, [#allocation9], 64, 64, 4
    $region17: #{tpu_custom_call.1} parent=1 // pred_fallthru
      _
    // Predicated region
    $region18: #{tpu_custom_call.1} parent=1 // pred_check
      _
    $region19: #{tpu_custom_call.1} parent=1 // pred_check_branch
      %61 = sbr.rel (0) target = $region21
    $region20: #{tpu_custom_call.1} parent=1 // pred_region
      %s63 = ssub.s32 160, 160
      %64 = vsyncadd [#allocation9], %s63
      %s66 = sshll.u32 [#allocation10], 4
      %s67 = int_to_ptr.vmem [resolvable:$true] %s66
      %69 = dma.hbm_to_vmem [thread:$0]  %s4, 160, %s67, [#allocation9]
    $region21: #{tpu_custom_call.1} parent=1 // pred_fallthru
      _
    // Predicated region
    $region22: #{tpu_custom_call.1} parent=1 // pred_check
      _
    $region23: #{tpu_custom_call.1} parent=1 // pred_check_branch
      %71 = sbr.rel (0) target = $region25
    $region24: #{tpu_custom_call.1} parent=1 // pred_region
      %72 = dma.done [#allocation3], 64
    $region25: #{tpu_custom_call.1} parent=1 // pred_fallthru
      _
    // Predicated region
    $region26: #{tpu_custom_call.1} parent=1 // pred_check
      _
    $region27: #{tpu_custom_call.1} parent=1 // pred_check_branch
      %74 = sbr.rel (0) target = $region29
    $region28: #{tpu_custom_call.1} parent=1 // pred_region
      %75 = dma.done [#allocation6], 256
    $region29: #{tpu_custom_call.1} parent=1 // pred_fallthru
      _
    // Predicated region
    $region30: #{tpu_custom_call.1} parent=1 // pred_check
      _
    $region31: #{tpu_custom_call.1} parent=1 // pred_check_branch
      %77 = sbr.rel (0) target = $region33
    $region32: #{tpu_custom_call.1} parent=1 // pred_region
      %78 = dma.done [#allocation6], 14336
    $region33: #{tpu_custom_call.1} parent=1 // pred_fallthru
      _
    // Predicated region
    $region34: #{tpu_custom_call.1} parent=1 // pred_check
      _
    $region35: #{tpu_custom_call.1} parent=1 // pred_check_branch
      %80 = sbr.rel (0) target = $region37
    $region36: #{tpu_custom_call.1} parent=1 // pred_region
      %81 = dma.done [#allocation9], 9216
    $region37: #{tpu_custom_call.1} parent=1 // pred_fallthru
      _
    // Predicated region
    $region38: #{tpu_custom_call.1} parent=1 // pred_check
      _
    $region39: #{tpu_custom_call.1} parent=1 // pred_check_branch
      %83 = sbr.rel (0) target = $region41
    $region40: #{tpu_custom_call.1} parent=1 // pred_region
      %84 = dma.done [#allocation9], 160
    $region41: #{tpu_custom_call.1} parent=1 // pred_fallthru
      _
    %v86 = vld [vmem:[#allocation2] sm:$0xf]
    %v87 = vld [vmem:[#allocation5] sm:$0xff]
    %v88 = vld [vmem:[#allocation5 + $0x8] sm:$0xff]
    %v91 = vunpack.c.l.b16 %v87
    %v92 = vunpack.c.h.b16 %v87
    %v93 = vunpack.c.l.b16 %v88
    %v94 = vunpack.c.h.b16 %v88
    %v95 = vpack.c.b16 %v93, %v91
    %v96 = vpack.c.b16 %v94, %v92
    %vm99 = vcmask 130048
    %v101 = vsel %vm99, %v86, 0
    %103 = vmatprep.subr.bf16.mxu0 0
    %104 = vmatpush1.bf16.msra.mxu0 0
    %105 = vmatprep.subr.bf16.mxu0 0
    %106 = vmatpush1.bf16.msra.mxu0 0
    %107 = vmatprep.subr.bf16.mxu0 0
    %108 = vmatpush1.bf16.msra.mxu0 0
    %109 = vmatprep.subr.bf16.mxu0 0
    %110 = vmatpush1.bf16.msra.mxu0 0
    %111 = vmatprep.subr.bf16.mxu0 0
    %112 = vmatpush1.bf16.msra.mxu0 0
    %113 = vmatprep.subr.bf16.mxu0 0
    %114 = vmatpush1.bf16.msra.mxu0 0
    %115 = vmatprep.subr.bf16.mxu0 0
    %116 = vmatpush1.bf16.msra.mxu0 0
    %117 = vmatprep.subr.bf16.mxu0 %v96
    %118 = vmatpush1.bf16.msra.mxu0 %v95
    %119 = vmatprep.subr.bf16.mxu0 0
    %120 = vmatpush2.bf16.msra.mxu0 0
    %121 = vmatprep.subr.bf16.mxu0 0
    %122 = vmatpush2.bf16.msra.mxu0 0
    %123 = vmatprep.subr.bf16.mxu0 0
    %124 = vmatpush2.bf16.msra.mxu0 0
    %125 = vmatprep.subr.bf16.mxu0 0
    %126 = vmatpush2.bf16.msra.mxu0 0
    %127 = vmatprep.subr.bf16.mxu0 0
    %128 = vmatpush2.bf16.msra.mxu0 0
    %129 = vmatprep.subr.bf16.mxu0 0
    %130 = vmatpush2.bf16.msra.mxu0 0
    %131 = vmatprep.subr.bf16.mxu0 0
    %132 = vmatpush2.bf16.msra.mxu0 0
    %133 = vmatprep.subr.bf16.mxu0 0
    %134 = vmatpush2.bf16.msra.mxu0 0
    %135 = vmatprep.mubr.bf16.mxu0 0
    %136 = vmatmul.mubr.bf16.gmra.mxu0 %v101
    %v137 = vpop.f32.mrf.mxu0
    %v138 = vadd.f32 0.0, %v137
    %v139 = vpop.f32.mrf.mxu0
    %v140 = vadd.f32 0.0, %v139
    %v141 = vpop.f32.mrf.mxu0
    %v142 = vpop.f32.mrf.mxu0
    %143 = vdwg.mxu0
    %v144 = vmax.f32 %v138, 0.0
    %v145 = vmax.f32 %v140, 0.0
    %v146 = vpack.c.bf16 %v144, %v144
    %v147 = vpack.c.bf16 %v145, %v145
    %v148 = vld [vmem:[#allocation7] sm:$0xff]
    %v149 = vld [vmem:[#allocation7 + $0x8] sm:$0xff]
    %v150 = vld [vmem:[#allocation7 + $0x10] sm:$0xff]
    %v151 = vld [vmem:[#allocation7 + $0x18] sm:$0xf]
    %v152 = vld [vmem:[#allocation7 + $0x1c] sm:$0xff]
    %v153 = vld [vmem:[#allocation7 + $0x24] sm:$0xff]
    %v154 = vld [vmem:[#allocation7 + $0x2c] sm:$0xff]
    %v155 = vld [vmem:[#allocation7 + $0x34] sm:$0xf]
    %v156 = vld [vmem:[#allocation7 + $0x38] sm:$0xff]
    %v157 = vld [vmem:[#allocation7 + $0x40] sm:$0xff]
    %v158 = vld [vmem:[#allocation7 + $0x48] sm:$0xff]
    %v159 = vld [vmem:[#allocation7 + $0x50] sm:$0xf]
    %v160 = vld [vmem:[#allocation7 + $0x54] sm:$0xff]
    %v161 = vld [vmem:[#allocation7 + $0x5c] sm:$0xff]
    %v162 = vld [vmem:[#allocation7 + $0x64] sm:$0xff]
    %v163 = vld [vmem:[#allocation7 + $0x6c] sm:$0xf]
    %v164 = vld [vmem:[#allocation7 + $0x70] sm:$0xff]
    %v165 = vld [vmem:[#allocation7 + $0x78] sm:$0xff]
    %v166 = vld [vmem:[#allocation7 + $0x80] sm:$0xff]
    %v167 = vld [vmem:[#allocation7 + $0x88] sm:$0xf]
    %v168 = vld [vmem:[#allocation7 + $0x8c] sm:$0xff]
    %v169 = vld [vmem:[#allocation7 + $0x94] sm:$0xff]
    %v170 = vld [vmem:[#allocation7 + $0x9c] sm:$0xff]
    %v171 = vld [vmem:[#allocation7 + $0xa4] sm:$0xf]
    %v172 = vld [vmem:[#allocation7 + $0xa8] sm:$0xff]
    %v173 = vld [vmem:[#allocation7 + $0xb0] sm:$0xff]
    %v174 = vld [vmem:[#allocation7 + $0xb8] sm:$0xff]
    %v175 = vld [vmem:[#allocation7 + $0xc0] sm:$0xf]
    %v176 = vld [vmem:[#allocation7 + $0xc4] sm:$0xff]
    %v177 = vld [vmem:[#allocation7 + $0xcc] sm:$0xff]
    %v178 = vld [vmem:[#allocation7 + $0xd4] sm:$0xff]
    %v179 = vld [vmem:[#allocation7 + $0xdc] sm:$0xf]
    %v180 = vld [vmem:[#allocation7 + $0xe0] sm:$0xff]
    %v181 = vld [vmem:[#allocation7 + $0xe8] sm:$0xff]
    %v182 = vld [vmem:[#allocation7 + $0xf0] sm:$0xff]
    %v183 = vld [vmem:[#allocation7 + $0xf8] sm:$0xf]
    %v184 = vld [vmem:[#allocation7 + $0xfc] sm:$0xff]
    %v185 = vld [vmem:[#allocation7 + $0x104] sm:$0xff]
    %v186 = vld [vmem:[#allocation7 + $0x10c] sm:$0xff]
    %v187 = vld [vmem:[#allocation7 + $0x114] sm:$0xf]
    %v188 = vld [vmem:[#allocation7 + $0x118] sm:$0xff]
    %v189 = vld [vmem:[#allocation7 + $0x120] sm:$0xff]
    %v190 = vld [vmem:[#allocation7 + $0x128] sm:$0xff]
    %v191 = vld [vmem:[#allocation7 + $0x130] sm:$0xf]
    %v192 = vld [vmem:[#allocation7 + $0x134] sm:$0xff]
    %v193 = vld [vmem:[#allocation7 + $0x13c] sm:$0xff]
    %v194 = vld [vmem:[#allocation7 + $0x144] sm:$0xff]
    %v195 = vld [vmem:[#allocation7 + $0x14c] sm:$0xf]
    %v196 = vld [vmem:[#allocation7 + $0x150] sm:$0xff]
    %v197 = vld [vmem:[#allocation7 + $0x158] sm:$0xff]
    %v198 = vld [vmem:[#allocation7 + $0x160] sm:$0xff]
    %v199 = vld [vmem:[#allocation7 + $0x168] sm:$0xf]
    %v200 = vld [vmem:[#allocation7 + $0x16c] sm:$0xff]
    %v201 = vld [vmem:[#allocation7 + $0x174] sm:$0xff]
    %v202 = vld [vmem:[#allocation7 + $0x17c] sm:$0xff]
    %v203 = vld [vmem:[#allocation7 + $0x184] sm:$0xf]
    %v204 = vld [vmem:[#allocation7 + $0x188] sm:$0xff]
    %v205 = vld [vmem:[#allocation7 + $0x190] sm:$0xff]
    %v206 = vld [vmem:[#allocation7 + $0x198] sm:$0xff]
    %v207 = vld [vmem:[#allocation7 + $0x1a0] sm:$0xf]
    %v208 = vld [vmem:[#allocation7 + $0x1a4] sm:$0xff]
    %v209 = vld [vmem:[#allocation7 + $0x1ac] sm:$0xff]
    %v210 = vld [vmem:[#allocation7 + $0x1b4] sm:$0xff]
    %v211 = vld [vmem:[#allocation7 + $0x1bc] sm:$0xf]
    %v212 = vld [vmem:[#allocation7 + $0x1c0] sm:$0xff]
    %v213 = vld [vmem:[#allocation7 + $0x1c8] sm:$0xff]
    %v214 = vld [vmem:[#allocation7 + $0x1d0] sm:$0xff]
    %v215 = vld [vmem:[#allocation7 + $0x1d8] sm:$0xf]
    %v216 = vld [vmem:[#allocation7 + $0x1dc] sm:$0xff]
    %v217 = vld [vmem:[#allocation7 + $0x1e4] sm:$0xff]
    %v218 = vld [vmem:[#allocation7 + $0x1ec] sm:$0xff]
    %v219 = vld [vmem:[#allocation7 + $0x1f4] sm:$0xf]
    %v220 = vld [vmem:[#allocation7 + $0x1f8] sm:$0xff]
    %v221 = vld [vmem:[#allocation7 + $0x200] sm:$0xff]
    %v222 = vld [vmem:[#allocation7 + $0x208] sm:$0xff]
    %v223 = vld [vmem:[#allocation7 + $0x210] sm:$0xf]
    %v224 = vld [vmem:[#allocation7 + $0x214] sm:$0xff]
    %v225 = vld [vmem:[#allocation7 + $0x21c] sm:$0xff]
    %v226 = vld [vmem:[#allocation7 + $0x224] sm:$0xff]
    %v227 = vld [vmem:[#allocation7 + $0x22c] sm:$0xf]
    %v228 = vld [vmem:[#allocation7 + $0x230] sm:$0xff]
    %v229 = vld [vmem:[#allocation7 + $0x238] sm:$0xff]
    %v230 = vld [vmem:[#allocation7 + $0x240] sm:$0xff]
    %v231 = vld [vmem:[#allocation7 + $0x248] sm:$0xf]
    %v232 = vld [vmem:[#allocation7 + $0x24c] sm:$0xff]
    %v233 = vld [vmem:[#allocation7 + $0x254] sm:$0xff]
    %v234 = vld [vmem:[#allocation7 + $0x25c] sm:$0xff]
    %v235 = vld [vmem:[#allocation7 + $0x264] sm:$0xf]
    %v236 = vld [vmem:[#allocation7 + $0x268] sm:$0xff]
    %v237 = vld [vmem:[#allocation7 + $0x270] sm:$0xff]
    %v238 = vld [vmem:[#allocation7 + $0x278] sm:$0xff]
    %v239 = vld [vmem:[#allocation7 + $0x280] sm:$0xf]
    %v240 = vld [vmem:[#allocation7 + $0x284] sm:$0xff]
    %v241 = vld [vmem:[#allocation7 + $0x28c] sm:$0xff]
    %v242 = vld [vmem:[#allocation7 + $0x294] sm:$0xff]
    %v243 = vld [vmem:[#allocation7 + $0x29c] sm:$0xf]
    %v244 = vld [vmem:[#allocation7 + $0x2a0] sm:$0xff]
    %v245 = vld [vmem:[#allocation7 + $0x2a8] sm:$0xff]
    %v246 = vld [vmem:[#allocation7 + $0x2b0] sm:$0xff]
    %v247 = vld [vmem:[#allocation7 + $0x2b8] sm:$0xf]
    %v248 = vld [vmem:[#allocation7 + $0x2bc] sm:$0xff]
    %v249 = vld [vmem:[#allocation7 + $0x2c4] sm:$0xff]
    %v250 = vld [vmem:[#allocation7 + $0x2cc] sm:$0xff]
    %v251 = vld [vmem:[#allocation7 + $0x2d4] sm:$0xf]
    %v252 = vld [vmem:[#allocation7 + $0x2d8] sm:$0xff]
    %v253 = vld [vmem:[#allocation7 + $0x2e0] sm:$0xff]
    %v254 = vld [vmem:[#allocation7 + $0x2e8] sm:$0xff]
    %v255 = vld [vmem:[#allocation7 + $0x2f0] sm:$0xf]
    %v256 = vld [vmem:[#allocation7 + $0x2f4] sm:$0xff]
    %v257 = vld [vmem:[#allocation7 + $0x2fc] sm:$0xff]
    %v258 = vld [vmem:[#allocation7 + $0x304] sm:$0xff]
    %v259 = vld [vmem:[#allocation7 + $0x30c] sm:$0xf]
    %v260 = vld [vmem:[#allocation7 + $0x310] sm:$0xff]
    %v261 = vld [vmem:[#allocation7 + $0x318] sm:$0xff]
    %v262 = vld [vmem:[#allocation7 + $0x320] sm:$0xff]
    %v263 = vld [vmem:[#allocation7 + $0x328] sm:$0xf]
    %v264 = vld [vmem:[#allocation7 + $0x32c] sm:$0xff]
    %v265 = vld [vmem:[#allocation7 + $0x334] sm:$0xff]
    %v266 = vld [vmem:[#allocation7 + $0x33c] sm:$0xff]
    %v267 = vld [vmem:[#allocation7 + $0x344] sm:$0xf]
    %v268 = vld [vmem:[#allocation7 + $0x348] sm:$0xff]
    %v269 = vld [vmem:[#allocation7 + $0x350] sm:$0xff]
    %v270 = vld [vmem:[#allocation7 + $0x358] sm:$0xff]
    %v271 = vld [vmem:[#allocation7 + $0x360] sm:$0xf]
    %v272 = vld [vmem:[#allocation7 + $0x364] sm:$0xff]
    %v273 = vld [vmem:[#allocation7 + $0x36c] sm:$0xff]
    %v274 = vld [vmem:[#allocation7 + $0x374] sm:$0xff]
    %v275 = vld [vmem:[#allocation7 + $0x37c] sm:$0xf]
    %v404 = vunpack.c.l.b16 %v148
    %v405 = vunpack.c.h.b16 %v148
    %v406 = vunpack.c.l.b16 %v149
    %v407 = vunpack.c.h.b16 %v149
    %v408 = vunpack.c.l.b16 %v150
    %v409 = vunpack.c.h.b16 %v150
    %v410 = vunpack.c.l.b16 %v151
    %v411 = vunpack.c.l.b16 %v152
    %v412 = vunpack.c.h.b16 %v152
    %v413 = vunpack.c.l.b16 %v153
    %v414 = vunpack.c.h.b16 %v153
    %v415 = vunpack.c.l.b16 %v154
    %v416 = vunpack.c.h.b16 %v154
    %v417 = vunpack.c.l.b16 %v155
    %v418 = vunpack.c.l.b16 %v156
    %v419 = vunpack.c.h.b16 %v156
    %v420 = vunpack.c.l.b16 %v157
    %v421 = vunpack.c.h.b16 %v157
    %v422 = vunpack.c.l.b16 %v158
    %v423 = vunpack.c.h.b16 %v158
    %v424 = vunpack.c.l.b16 %v159
    %v425 = vunpack.c.l.b16 %v160
    %v426 = vunpack.c.h.b16 %v160
    %v427 = vunpack.c.l.b16 %v161
    %v428 = vunpack.c.h.b16 %v161
    %v429 = vunpack.c.l.b16 %v162
    %v430 = vunpack.c.h.b16 %v162
    %v431 = vunpack.c.l.b16 %v163
    %v432 = vunpack.c.l.b16 %v164
    %v433 = vunpack.c.h.b16 %v164
    %v434 = vunpack.c.l.b16 %v165
    %v435 = vunpack.c.h.b16 %v165
    %v436 = vunpack.c.l.b16 %v166
    %v437 = vunpack.c.h.b16 %v166
    %v438 = vunpack.c.l.b16 %v167
    %v439 = vunpack.c.l.b16 %v168
    %v440 = vunpack.c.h.b16 %v168
    %v441 = vunpack.c.l.b16 %v169
    %v442 = vunpack.c.h.b16 %v169
    %v443 = vunpack.c.l.b16 %v170
    %v444 = vunpack.c.h.b16 %v170
    %v445 = vunpack.c.l.b16 %v171
    %v446 = vunpack.c.l.b16 %v172
    %v447 = vunpack.c.h.b16 %v172
    %v448 = vunpack.c.l.b16 %v173
    %v449 = vunpack.c.h.b16 %v173
    %v450 = vunpack.c.l.b16 %v174
    %v451 = vunpack.c.h.b16 %v174
    %v452 = vunpack.c.l.b16 %v175
    %v453 = vunpack.c.l.b16 %v176
    %v454 = vunpack.c.h.b16 %v176
    %v455 = vunpack.c.l.b16 %v177
    %v456 = vunpack.c.h.b16 %v177
    %v457 = vunpack.c.l.b16 %v178
    %v458 = vunpack.c.h.b16 %v178
    %v459 = vunpack.c.l.b16 %v179
    %v460 = vunpack.c.l.b16 %v180
    %v461 = vunpack.c.h.b16 %v180
    %v462 = vunpack.c.l.b16 %v181
    %v463 = vunpack.c.h.b16 %v181
    %v464 = vunpack.c.l.b16 %v182
    %v465 = vunpack.c.h.b16 %v182
    %v466 = vunpack.c.l.b16 %v183
    %v467 = vunpack.c.l.b16 %v184
    %v468 = vunpack.c.h.b16 %v184
    %v469 = vunpack.c.l.b16 %v185
    %v470 = vunpack.c.h.b16 %v185
    %v471 = vunpack.c.l.b16 %v186
    %v472 = vunpack.c.h.b16 %v186
    %v473 = vunpack.c.l.b16 %v187
    %v474 = vunpack.c.l.b16 %v188
    %v475 = vunpack.c.h.b16 %v188
    %v476 = vunpack.c.l.b16 %v189
    %v477 = vunpack.c.h.b16 %v189
    %v478 = vunpack.c.l.b16 %v190
    %v479 = vunpack.c.h.b16 %v190
    %v480 = vunpack.c.l.b16 %v191
    %v481 = vunpack.c.l.b16 %v192
    %v482 = vunpack.c.h.b16 %v192
    %v483 = vunpack.c.l.b16 %v193
    %v484 = vunpack.c.h.b16 %v193
    %v485 = vunpack.c.l.b16 %v194
    %v486 = vunpack.c.h.b16 %v194
    %v487 = vunpack.c.l.b16 %v195
    %v488 = vunpack.c.l.b16 %v196
    %v489 = vunpack.c.h.b16 %v196
    %v490 = vunpack.c.l.b16 %v197
    %v491 = vunpack.c.h.b16 %v197
    %v492 = vunpack.c.l.b16 %v198
    %v493 = vunpack.c.h.b16 %v198
    %v494 = vunpack.c.l.b16 %v199
    %v495 = vunpack.c.l.b16 %v200
    %v496 = vunpack.c.h.b16 %v200
    %v497 = vunpack.c.l.b16 %v201
    %v498 = vunpack.c.h.b16 %v201
    %v499 = vunpack.c.l.b16 %v202
    %v500 = vunpack.c.h.b16 %v202
    %v501 = vunpack.c.l.b16 %v203
    %v502 = vunpack.c.l.b16 %v204
    %v503 = vunpack.c.h.b16 %v204
    %v504 = vunpack.c.l.b16 %v205
    %v505 = vunpack.c.h.b16 %v205
    %v506 = vunpack.c.l.b16 %v206
    %v507 = vunpack.c.h.b16 %v206
    %v508 = vunpack.c.l.b16 %v207
    %v509 = vunpack.c.l.b16 %v208
    %v510 = vunpack.c.h.b16 %v208
    %v511 = vunpack.c.l.b16 %v209
    %v512 = vunpack.c.h.b16 %v209
    %v513 = vunpack.c.l.b16 %v210
    %v514 = vunpack.c.h.b16 %v210
    %v515 = vunpack.c.l.b16 %v211
    %v516 = vunpack.c.l.b16 %v212
    %v517 = vunpack.c.h.b16 %v212
    %v518 = vunpack.c.l.b16 %v213
    %v519 = vunpack.c.h.b16 %v213
    %v520 = vunpack.c.l.b16 %v214
    %v521 = vunpack.c.h.b16 %v214
    %v522 = vunpack.c.l.b16 %v215
    %v523 = vunpack.c.l.b16 %v216
    %v524 = vunpack.c.h.b16 %v216
    %v525 = vunpack.c.l.b16 %v217
    %v526 = vunpack.c.h.b16 %v217
    %v527 = vunpack.c.l.b16 %v218
    %v528 = vunpack.c.h.b16 %v218
    %v529 = vunpack.c.l.b16 %v219
    %v530 = vunpack.c.l.b16 %v220
    %v531 = vunpack.c.h.b16 %v220
    %v532 = vunpack.c.l.b16 %v221
    %v533 = vunpack.c.h.b16 %v221
    %v534 = vunpack.c.l.b16 %v222
    %v535 = vunpack.c.h.b16 %v222
    %v536 = vunpack.c.l.b16 %v223
    %v537 = vunpack.c.l.b16 %v224
    %v538 = vunpack.c.h.b16 %v224
    %v539 = vunpack.c.l.b16 %v225
    %v540 = vunpack.c.h.b16 %v225
    %v541 = vunpack.c.l.b16 %v226
    %v542 = vunpack.c.h.b16 %v226
    %v543 = vunpack.c.l.b16 %v227
    %v544 = vunpack.c.l.b16 %v228
    %v545 = vunpack.c.h.b16 %v228
    %v546 = vunpack.c.l.b16 %v229
    %v547 = vunpack.c.h.b16 %v229
    %v548 = vunpack.c.l.b16 %v230
    %v549 = vunpack.c.h.b16 %v230
    %v550 = vunpack.c.l.b16 %v231
    %v551 = vunpack.c.l.b16 %v232
    %v552 = vunpack.c.h.b16 %v232
    %v553 = vunpack.c.l.b16 %v233
    %v554 = vunpack.c.h.b16 %v233
    %v555 = vunpack.c.l.b16 %v234
    %v556 = vunpack.c.h.b16 %v234
    %v557 = vunpack.c.l.b16 %v235
    %v558 = vunpack.c.l.b16 %v236
    %v559 = vunpack.c.h.b16 %v236
    %v560 = vunpack.c.l.b16 %v237
    %v561 = vunpack.c.h.b16 %v237
    %v562 = vunpack.c.l.b16 %v238
    %v563 = vunpack.c.h.b16 %v238
    %v564 = vunpack.c.l.b16 %v239
    %v565 = vunpack.c.l.b16 %v240
    %v566 = vunpack.c.h.b16 %v240
    %v567 = vunpack.c.l.b16 %v241
    %v568 = vunpack.c.h.b16 %v241
    %v569 = vunpack.c.l.b16 %v242
    %v570 = vunpack.c.h.b16 %v242
    %v571 = vunpack.c.l.b16 %v243
    %v572 = vunpack.c.l.b16 %v244
    %v573 = vunpack.c.h.b16 %v244
    %v574 = vunpack.c.l.b16 %v245
    %v575 = vunpack.c.h.b16 %v245
    %v576 = vunpack.c.l.b16 %v246
    %v577 = vunpack.c.h.b16 %v246
    %v578 = vunpack.c.l.b16 %v247
    %v579 = vunpack.c.l.b16 %v248
    %v580 = vunpack.c.h.b16 %v248
    %v581 = vunpack.c.l.b16 %v249
    %v582 = vunpack.c.h.b16 %v249
    %v583 = vunpack.c.l.b16 %v250
    %v584 = vunpack.c.h.b16 %v250
    %v585 = vunpack.c.l.b16 %v251
    %v586 = vunpack.c.l.b16 %v252
    %v587 = vunpack.c.h.b16 %v252
    %v588 = vunpack.c.l.b16 %v253
    %v589 = vunpack.c.h.b16 %v253
    %v590 = vunpack.c.l.b16 %v254
    %v591 = vunpack.c.h.b16 %v254
    %v592 = vunpack.c.l.b16 %v255
    %v593 = vunpack.c.l.b16 %v256
    %v594 = vunpack.c.h.b16 %v256
    %v595 = vunpack.c.l.b16 %v257
    %v596 = vunpack.c.h.b16 %v257
    %v597 = vunpack.c.l.b16 %v258
    %v598 = vunpack.c.h.b16 %v258
    %v599 = vunpack.c.l.b16 %v259
    %v600 = vunpack.c.l.b16 %v260
    %v601 = vunpack.c.h.b16 %v260
    %v602 = vunpack.c.l.b16 %v261
    %v603 = vunpack.c.h.b16 %v261
    %v604 = vunpack.c.l.b16 %v262
    %v605 = vunpack.c.h.b16 %v262
    %v606 = vunpack.c.l.b16 %v263
    %v607 = vunpack.c.l.b16 %v264
    %v608 = vunpack.c.h.b16 %v264
    %v609 = vunpack.c.l.b16 %v265
    %v610 = vunpack.c.h.b16 %v265
    %v611 = vunpack.c.l.b16 %v266
    %v612 = vunpack.c.h.b16 %v266
    %v613 = vunpack.c.l.b16 %v267
    %v614 = vunpack.c.l.b16 %v268
    %v615 = vunpack.c.h.b16 %v268
    %v616 = vunpack.c.l.b16 %v269
    %v617 = vunpack.c.h.b16 %v269
    %v618 = vunpack.c.l.b16 %v270
    %v619 = vunpack.c.h.b16 %v270
    %v620 = vunpack.c.l.b16 %v271
    %v621 = vunpack.c.l.b16 %v272
    %v622 = vunpack.c.h.b16 %v272
    %v623 = vunpack.c.l.b16 %v273
    %v624 = vunpack.c.h.b16 %v273
    %v625 = vunpack.c.l.b16 %v274
    %v626 = vunpack.c.h.b16 %v274
    %v627 = vunpack.c.l.b16 %v275
    %v628 = vpack.c.b16 %v411, %v404
    %v629 = vpack.c.b16 %v412, %v405
    %v630 = vpack.c.b16 %v413, %v406
    %v631 = vpack.c.b16 %v414, %v407
    %v632 = vpack.c.b16 %v415, %v408
    %v633 = vpack.c.b16 %v416, %v409
    %v634 = vpack.c.b16 %v417, %v410
    %v635 = vpack.c.b16 %v425, %v418
    %v636 = vpack.c.b16 %v426, %v419
    %v637 = vpack.c.b16 %v427, %v420
    %v638 = vpack.c.b16 %v428, %v421
    %v639 = vpack.c.b16 %v429, %v422
    %v640 = vpack.c.b16 %v430, %v423
    %v641 = vpack.c.b16 %v431, %v424
    %v642 = vpack.c.b16 %v439, %v432
    %v643 = vpack.c.b16 %v440, %v433
    %v644 = vpack.c.b16 %v441, %v434
    %v645 = vpack.c.b16 %v442, %v435
    %v646 = vpack.c.b16 %v443, %v436
    %v647 = vpack.c.b16 %v444, %v437
    %v648 = vpack.c.b16 %v445, %v438
    %v649 = vpack.c.b16 %v453, %v446
    %v650 = vpack.c.b16 %v454, %v447
    %v651 = vpack.c.b16 %v455, %v448
    %v652 = vpack.c.b16 %v456, %v449
    %v653 = vpack.c.b16 %v457, %v450
    %v654 = vpack.c.b16 %v458, %v451
    %v655 = vpack.c.b16 %v459, %v452
    %v656 = vpack.c.b16 %v467, %v460
    %v657 = vpack.c.b16 %v468, %v461
    %v658 = vpack.c.b16 %v469, %v462
    %v659 = vpack.c.b16 %v470, %v463
    %v660 = vpack.c.b16 %v471, %v464
    %v661 = vpack.c.b16 %v472, %v465
    %v662 = vpack.c.b16 %v473, %v466
    %v663 = vpack.c.b16 %v481, %v474
    %v664 = vpack.c.b16 %v482, %v475
    %v665 = vpack.c.b16 %v483, %v476
    %v666 = vpack.c.b16 %v484, %v477
    %v667 = vpack.c.b16 %v485, %v478
    %v668 = vpack.c.b16 %v486, %v479
    %v669 = vpack.c.b16 %v487, %v480
    %v670 = vpack.c.b16 %v495, %v488
    %v671 = vpack.c.b16 %v496, %v489
    %v672 = vpack.c.b16 %v497, %v490
    %v673 = vpack.c.b16 %v498, %v491
    %v674 = vpack.c.b16 %v499, %v492
    %v675 = vpack.c.b16 %v500, %v493
    %v676 = vpack.c.b16 %v501, %v494
    %v677 = vpack.c.b16 %v509, %v502
    %v678 = vpack.c.b16 %v510, %v503
    %v679 = vpack.c.b16 %v511, %v504
    %v680 = vpack.c.b16 %v512, %v505
    %v681 = vpack.c.b16 %v513, %v506
    %v682 = vpack.c.b16 %v514, %v507
    %v683 = vpack.c.b16 %v515, %v508
    %v684 = vpack.c.b16 %v523, %v516
    %v685 = vpack.c.b16 %v524, %v517
    %v686 = vpack.c.b16 %v525, %v518
    %v687 = vpack.c.b16 %v526, %v519
    %v688 = vpack.c.b16 %v527, %v520
    %v689 = vpack.c.b16 %v528, %v521
    %v690 = vpack.c.b16 %v529, %v522
    %v691 = vpack.c.b16 %v537, %v530
    %v692 = vpack.c.b16 %v538, %v531
    %v693 = vpack.c.b16 %v539, %v532
    %v694 = vpack.c.b16 %v540, %v533
    %v695 = vpack.c.b16 %v541, %v534
    %v696 = vpack.c.b16 %v542, %v535
    %v697 = vpack.c.b16 %v543, %v536
    %v698 = vpack.c.b16 %v551, %v544
    %v699 = vpack.c.b16 %v552, %v545
    %v700 = vpack.c.b16 %v553, %v546
    %v701 = vpack.c.b16 %v554, %v547
    %v702 = vpack.c.b16 %v555, %v548
    %v703 = vpack.c.b16 %v556, %v549
    %v704 = vpack.c.b16 %v557, %v550
    %v705 = vpack.c.b16 %v565, %v558
    %v706 = vpack.c.b16 %v566, %v559
    %v707 = vpack.c.b16 %v567, %v560
    %v708 = vpack.c.b16 %v568, %v561
    %v709 = vpack.c.b16 %v569, %v562
    %v710 = vpack.c.b16 %v570, %v563
    %v711 = vpack.c.b16 %v571, %v564
    %v712 = vpack.c.b16 %v579, %v572
    %v713 = vpack.c.b16 %v580, %v573
    %v714 = vpack.c.b16 %v581, %v574
    %v715 = vpack.c.b16 %v582, %v575
    %v716 = vpack.c.b16 %v583, %v576
    %v717 = vpack.c.b16 %v584, %v577
    %v718 = vpack.c.b16 %v585, %v578
    %v719 = vpack.c.b16 %v593, %v586
    %v720 = vpack.c.b16 %v594, %v587
    %v721 = vpack.c.b16 %v595, %v588
    %v722 = vpack.c.b16 %v596, %v589
    %v723 = vpack.c.b16 %v597, %v590
    %v724 = vpack.c.b16 %v598, %v591
    %v725 = vpack.c.b16 %v599, %v592
    %v726 = vpack.c.b16 %v607, %v600
    %v727 = vpack.c.b16 %v608, %v601
    %v728 = vpack.c.b16 %v609, %v602
    %v729 = vpack.c.b16 %v610, %v603
    %v730 = vpack.c.b16 %v611, %v604
    %v731 = vpack.c.b16 %v612, %v605
    %v732 = vpack.c.b16 %v613, %v606
    %v733 = vpack.c.b16 %v621, %v614
    %v734 = vpack.c.b16 %v622, %v615
    %v735 = vpack.c.b16 %v623, %v616
    %v736 = vpack.c.b16 %v624, %v617
    %v737 = vpack.c.b16 %v625, %v618
    %v738 = vpack.c.b16 %v626, %v619
    %v739 = vpack.c.b16 %v627, %v620
    %852 = vmatprep.subr.bf16.mxu0 %v678
    %853 = vmatpush1.bf16.msra.mxu0 %v677
    %854 = vmatprep.subr.bf16.mxu0 %v671
    %855 = vmatpush1.bf16.msra.mxu0 %v670
    %856 = vmatprep.subr.bf16.mxu0 %v664
    %857 = vmatpush1.bf16.msra.mxu0 %v663
    %858 = vmatprep.subr.bf16.mxu0 %v657
    %859 = vmatpush1.bf16.msra.mxu0 %v656
    %860 = vmatprep.subr.bf16.mxu0 %v650
    %861 = vmatpush1.bf16.msra.mxu0 %v649
    %862 = vmatprep.subr.bf16.mxu0 %v643
    %863 = vmatpush1.bf16.msra.mxu0 %v642
    %864 = vmatprep.subr.bf16.mxu0 %v636
    %865 = vmatpush1.bf16.msra.mxu0 %v635
    %866 = vmatprep.subr.bf16.mxu0 %v629
    %867 = vmatpush1.bf16.msra.mxu0 %v628
    %868 = vmatprep.subr.bf16.mxu0 %v734
    %869 = vmatpush2.bf16.msra.mxu0 %v733
    %870 = vmatprep.subr.bf16.mxu0 %v727
    %871 = vmatpush2.bf16.msra.mxu0 %v726
    %872 = vmatprep.subr.bf16.mxu0 %v720
    %873 = vmatpush2.bf16.msra.mxu0 %v719
    %874 = vmatprep.subr.bf16.mxu0 %v713
    %875 = vmatpush2.bf16.msra.mxu0 %v712
    %876 = vmatprep.subr.bf16.mxu0 %v706
    %877 = vmatpush2.bf16.msra.mxu0 %v705
    %878 = vmatprep.subr.bf16.mxu0 %v699
    %879 = vmatpush2.bf16.msra.mxu0 %v698
    %880 = vmatprep.subr.bf16.mxu0 %v692
    %881 = vmatpush2.bf16.msra.mxu0 %v691
    %882 = vmatprep.subr.bf16.mxu0 %v685
    %883 = vmatpush2.bf16.msra.mxu0 %v684
    %884 = vmatprep.mubr.bf16.mxu0 %v147
    %885 = vmatmul.mubr.bf16.gmra.mxu0 %v146
    %v886 = vpop.f32.mrf.mxu0
    %v887 = vadd.f32 0.0, %v886
    %v888 = vpop.f32.mrf.mxu0
    %v889 = vadd.f32 0.0, %v888
    %v890 = vpop.f32.mrf.mxu0
    %v891 = vpop.f32.mrf.mxu0
    %892 = vdwg.mxu0
    %893 = vmatprep.subr.bf16.mxu0 %v680
    %894 = vmatpush1.bf16.msra.mxu0 %v679
    %895 = vmatprep.subr.bf16.mxu0 %v673
    %896 = vmatpush1.bf16.msra.mxu0 %v672
    %897 = vmatprep.subr.bf16.mxu0 %v666
    %898 = vmatpush1.bf16.msra.mxu0 %v665
    %899 = vmatprep.subr.bf16.mxu0 %v659
    %900 = vmatpush1.bf16.msra.mxu0 %v658
    %901 = vmatprep.subr.bf16.mxu0 %v652
    %902 = vmatpush1.bf16.msra.mxu0 %v651
    %903 = vmatprep.subr.bf16.mxu0 %v645
    %904 = vmatpush1.bf16.msra.mxu0 %v644
    %905 = vmatprep.subr.bf16.mxu0 %v638
    %906 = vmatpush1.bf16.msra.mxu0 %v637
    %907 = vmatprep.subr.bf16.mxu0 %v631
    %908 = vmatpush1.bf16.msra.mxu0 %v630
    %909 = vmatprep.subr.bf16.mxu0 %v736
    %910 = vmatpush2.bf16.msra.mxu0 %v735
    %911 = vmatprep.subr.bf16.mxu0 %v729
    %912 = vmatpush2.bf16.msra.mxu0 %v728
    %913 = vmatprep.subr.bf16.mxu0 %v722
    %914 = vmatpush2.bf16.msra.mxu0 %v721
    %915 = vmatprep.subr.bf16.mxu0 %v715
    %916 = vmatpush2.bf16.msra.mxu0 %v714
    %917 = vmatprep.subr.bf16.mxu0 %v708
    %918 = vmatpush2.bf16.msra.mxu0 %v707
    %919 = vmatprep.subr.bf16.mxu0 %v701
    %920 = vmatpush2.bf16.msra.mxu0 %v700
    %921 = vmatprep.subr.bf16.mxu0 %v694
    %922 = vmatpush2.bf16.msra.mxu0 %v693
    %923 = vmatprep.subr.bf16.mxu0 %v687
    %924 = vmatpush2.bf16.msra.mxu0 %v686
    %925 = vmatprep.mubr.bf16.mxu0 %v147
    %926 = vmatmul.mubr.bf16.gmra.mxu0 %v146
    %v927 = vpop.f32.mrf.mxu0
    %v928 = vadd.f32 0.0, %v927
    %v929 = vpop.f32.mrf.mxu0
    %v930 = vadd.f32 0.0, %v929
    %v931 = vpop.f32.mrf.mxu0
    %v932 = vpop.f32.mrf.mxu0
    %933 = vdwg.mxu0
    %934 = vmatprep.subr.bf16.mxu0 %v682
    %935 = vmatpush1.bf16.msra.mxu0 %v681
    %936 = vmatprep.subr.bf16.mxu0 %v675
    %937 = vmatpush1.bf16.msra.mxu0 %v674
    %938 = vmatprep.subr.bf16.mxu0 %v668
    %939 = vmatpush1.bf16.msra.mxu0 %v667
    %940 = vmatprep.subr.bf16.mxu0 %v661
    %941 = vmatpush1.bf16.msra.mxu0 %v660
    %942 = vmatprep.subr.bf16.mxu0 %v654
    %943 = vmatpush1.bf16.msra.mxu0 %v653
    %944 = vmatprep.subr.bf16.mxu0 %v647
    %945 = vmatpush1.bf16.msra.mxu0 %v646
    %946 = vmatprep.subr.bf16.mxu0 %v640
    %947 = vmatpush1.bf16.msra.mxu0 %v639
    %948 = vmatprep.subr.bf16.mxu0 %v633
    %949 = vmatpush1.bf16.msra.mxu0 %v632
    %950 = vmatprep.subr.bf16.mxu0 %v738
    %951 = vmatpush2.bf16.msra.mxu0 %v737
    %952 = vmatprep.subr.bf16.mxu0 %v731
    %953 = vmatpush2.bf16.msra.mxu0 %v730
    %954 = vmatprep.subr.bf16.mxu0 %v724
    %955 = vmatpush2.bf16.msra.mxu0 %v723
    %956 = vmatprep.subr.bf16.mxu0 %v717
    %957 = vmatpush2.bf16.msra.mxu0 %v716
    %958 = vmatprep.subr.bf16.mxu0 %v710
    %959 = vmatpush2.bf16.msra.mxu0 %v709
    %960 = vmatprep.subr.bf16.mxu0 %v703
    %961 = vmatpush2.bf16.msra.mxu0 %v702
    %962 = vmatprep.subr.bf16.mxu0 %v696
    %963 = vmatpush2.bf16.msra.mxu0 %v695
    %964 = vmatprep.subr.bf16.mxu0 %v689
    %965 = vmatpush2.bf16.msra.mxu0 %v688
    %966 = vmatprep.mubr.bf16.mxu0 %v147
    %967 = vmatmul.mubr.bf16.gmra.mxu0 %v146
    %v968 = vpop.f32.mrf.mxu0
    %v969 = vadd.f32 0.0, %v968
    %v970 = vpop.f32.mrf.mxu0
    %v971 = vadd.f32 0.0, %v970
    %v972 = vpop.f32.mrf.mxu0
    %v973 = vpop.f32.mrf.mxu0
    %974 = vdwg.mxu0
    %975 = vmatprep.subr.bf16.mxu0 0
    %976 = vmatpush1.bf16.msra.mxu0 %v683
    %977 = vmatprep.subr.bf16.mxu0 0
    %978 = vmatpush1.bf16.msra.mxu0 %v676
    %979 = vmatprep.subr.bf16.mxu0 0
    %980 = vmatpush1.bf16.msra.mxu0 %v669
    %981 = vmatprep.subr.bf16.mxu0 0
    %982 = vmatpush1.bf16.msra.mxu0 %v662
    %983 = vmatprep.subr.bf16.mxu0 0
    %984 = vmatpush1.bf16.msra.mxu0 %v655
    %985 = vmatprep.subr.bf16.mxu0 0
    %986 = vmatpush1.bf16.msra.mxu0 %v648
    %987 = vmatprep.subr.bf16.mxu0 0
    %988 = vmatpush1.bf16.msra.mxu0 %v641
    %989 = vmatprep.subr.bf16.mxu0 0
    %990 = vmatpush1.bf16.msra.mxu0 %v634
    %991 = vmatprep.subr.bf16.mxu0 0
    %992 = vmatpush2.bf16.msra.mxu0 %v739
    %993 = vmatprep.subr.bf16.mxu0 0
    %994 = vmatpush2.bf16.msra.mxu0 %v732
    %995 = vmatprep.subr.bf16.mxu0 0
    %996 = vmatpush2.bf16.msra.mxu0 %v725
    %997 = vmatprep.subr.bf16.mxu0 0
    %998 = vmatpush2.bf16.msra.mxu0 %v718
    %999 = vmatprep.subr.bf16.mxu0 0
    %1000 = vmatpush2.bf16.msra.mxu0 %v711
    %1001 = vmatprep.subr.bf16.mxu0 0
    %1002 = vmatpush2.bf16.msra.mxu0 %v704
    %1003 = vmatprep.subr.bf16.mxu0 0
    %1004 = vmatpush2.bf16.msra.mxu0 %v697
    %1005 = vmatprep.subr.bf16.mxu0 0
    %1006 = vmatpush2.bf16.msra.mxu0 %v690
    %1007 = vmatprep.mubr.bf16.mxu0 %v147
    %1008 = vmatmul.mubr.bf16.gmra.mxu0 %v146
    %v1009 = vpop.f32.mrf.mxu0
    %v1010 = vadd.f32 0.0, %v1009
    %v1011 = vpop.f32.mrf.mxu0
    %v1012 = vpop.f32.mrf.mxu0
    %v1013 = vpop.f32.mrf.mxu0
    %1014 = vdwg.mxu0
    %v1015 = vpack.c.bf16 %v887, %v887
    %v1016 = vpack.c.bf16 %v889, %v889
    %v1017 = vpack.c.bf16 %v928, %v928
    %v1018 = vpack.c.bf16 %v930, %v930
    %v1019 = vpack.c.bf16 %v969, %v969
    %v1020 = vpack.c.bf16 %v971, %v971
    %v1021 = vpack.c.bf16 %v1010, %v1010
    %v1022 = vld [vmem:[#allocation10] sm:$0x7f]
    %v1024 = vcombine.high %v1022, %v1022
    %v1026 = vunpack.c.l.s4 1966171168
    %v1027 = vunpack.c.0.s8 %v1026
    %v1028 = vlaneseq
    %v1029 = vshrl.u32 %v1028, 7
    %v1030 = vsub.s32 %v1027, %v1029
    %v1031 = vrot.slane %v1022, %v1030
    %v1033 = vunpack.c.l.s4 1966171168
    %v1034 = vunpack.c.0.s8 %v1033
    %v1035 = vlaneseq
    %v1036 = vshrl.u32 %v1035, 7
    %v1037 = vsub.s32 %v1034, %v1036
    %v1038 = vrot.slane %v1024, %v1037
    %v1039 = vcombine.high %v1031, %v1031
    %v1040 = vcombine.high %v1038, %v1038
    %v1042 = vunpack.c.l.s4 1966171168
    %v1043 = vunpack.c.0.s8 %v1042
    %v1044 = vlaneseq
    %v1045 = vshrl.u32 %v1044, 7
    %v1046 = vsub.s32 %v1043, %v1045
    %v1047 = vrot.slane %v1031, %v1046
    %v1049 = vunpack.c.l.s4 1966171168
    %v1050 = vunpack.c.0.s8 %v1049
    %v1051 = vlaneseq
    %v1052 = vshrl.u32 %v1051, 7
    %v1053 = vsub.s32 %v1050, %v1052
    %v1054 = vrot.slane %v1038, %v1053
    %v1056 = vunpack.c.l.s4 1966171168
    %v1057 = vunpack.c.0.s8 %v1056
    %v1058 = vlaneseq
    %v1059 = vshrl.u32 %v1058, 7
    %v1060 = vsub.s32 %v1057, %v1059
    %v1061 = vrot.slane %v1039, %v1060
    %v1063 = vunpack.c.l.s4 1966171168
    %v1064 = vunpack.c.0.s8 %v1063
    %v1065 = vlaneseq
    %v1066 = vshrl.u32 %v1065, 7
    %v1067 = vsub.s32 %v1064, %v1066
    %v1068 = vrot.slane %v1040, %v1067
    %v1069 = vcombine.high %v1047, %v1047
    %v1070 = vcombine.high %v1054, %v1054
    %v1071 = vcombine.high %v1061, %v1061
    %v1073 = vpack.i.b16 %v1047, %v1047
    %v1075 = vlaneseq
    %v1076 = vshrl.u32 %v1075, 7
    %v1077 = vsub.s32 0, %v1076
    %v1078 = vrot.slane %v1073, %v1077
    %v1080 = vpack.i.b16 %v1061, %v1061
    %v1082 = vlaneseq
    %v1083 = vshrl.u32 %v1082, 7
    %v1084 = vsub.s32 0, %v1083
    %v1085 = vrot.slane %v1080, %v1084
    %v1087 = vpack.i.b16 %v1069, %v1069
    %v1089 = vlaneseq
    %v1090 = vshrl.u32 %v1089, 7
    %v1091 = vsub.s32 0, %v1090
    %v1092 = vrot.slane %v1087, %v1091
    %v1094 = vpack.i.b16 %v1071, %v1071
    %v1096 = vlaneseq
    %v1097 = vshrl.u32 %v1096, 7
    %v1098 = vsub.s32 0, %v1097
    %v1099 = vrot.slane %v1094, %v1098
    %v1101 = vpack.i.b16 %v1054, %v1054
    %v1103 = vlaneseq
    %v1104 = vshrl.u32 %v1103, 7
    %v1105 = vsub.s32 0, %v1104
    %v1106 = vrot.slane %v1101, %v1105
    %v1108 = vpack.i.b16 %v1068, %v1068
    %v1110 = vlaneseq
    %v1111 = vshrl.u32 %v1110, 7
    %v1112 = vsub.s32 0, %v1111
    %v1113 = vrot.slane %v1108, %v1112
    %v1115 = vpack.i.b16 %v1070, %v1070
    %v1117 = vlaneseq
    %v1118 = vshrl.u32 %v1117, 7
    %v1119 = vsub.s32 0, %v1118
    %v1120 = vrot.slane %v1115, %v1119
    %v1121 = vadd.bf16 %v1015, %v1078
    %v1122 = vadd.bf16 %v1016, %v1085
    %v1123 = vadd.bf16 %v1017, %v1092
    %v1124 = vadd.bf16 %v1018, %v1099
    %v1125 = vadd.bf16 %v1019, %v1106
    %v1126 = vadd.bf16 %v1020, %v1113
    %v1127 = vadd.bf16 %v1021, %v1120
    %v1128 = vmax.bf16 %v1121, 0
    %v1129 = vmax.bf16 %v1122, 0
    %v1130 = vmax.bf16 %v1123, 0
    %v1131 = vmax.bf16 %v1124, 0
    %v1132 = vmax.bf16 %v1125, 0
    %v1133 = vmax.bf16 %v1126, 0
    %v1134 = vmax.bf16 %v1127, 0
    %v1135 = vld [vmem:[#allocation8] sm:$0xf]
    %v1136 = vld [vmem:[#allocation8 + $0x4] sm:$0xf]
    %v1137 = vld [vmem:[#allocation8 + $0x8] sm:$0xf]
    %v1138 = vld [vmem:[#allocation8 + $0xc] sm:$0xf]
    %v1139 = vld [vmem:[#allocation8 + $0x10] sm:$0xf]
    %v1140 = vld [vmem:[#allocation8 + $0x14] sm:$0xf]
    %v1141 = vld [vmem:[#allocation8 + $0x18] sm:$0xf]
    %v1142 = vld [vmem:[#allocation8 + $0x1c] sm:$0xf]
    %v1143 = vld [vmem:[#allocation8 + $0x20] sm:$0xf]
    %v1144 = vld [vmem:[#allocation8 + $0x24] sm:$0xf]
    %v1145 = vld [vmem:[#allocation8 + $0x28] sm:$0xf]
    %v1146 = vld [vmem:[#allocation8 + $0x2c] sm:$0xf]
    %v1147 = vld [vmem:[#allocation8 + $0x30] sm:$0xf]
    %v1148 = vld [vmem:[#allocation8 + $0x34] sm:$0xf]
    %v1149 = vld [vmem:[#allocation8 + $0x38] sm:$0xf]
    %v1150 = vld [vmem:[#allocation8 + $0x3c] sm:$0xf]
    %v1151 = vld [vmem:[#allocation8 + $0x40] sm:$0xf]
    %v1152 = vld [vmem:[#allocation8 + $0x44] sm:$0xf]
    %v1153 = vld [vmem:[#allocation8 + $0x48] sm:$0xf]
    %v1154 = vld [vmem:[#allocation8 + $0x4c] sm:$0xf]
    %v1155 = vld [vmem:[#allocation8 + $0x50] sm:$0xf]
    %v1156 = vld [vmem:[#allocation8 + $0x54] sm:$0xf]
    %v1157 = vld [vmem:[#allocation8 + $0x58] sm:$0xf]
    %v1158 = vld [vmem:[#allocation8 + $0x5c] sm:$0xf]
    %v1159 = vld [vmem:[#allocation8 + $0x60] sm:$0xf]
    %v1160 = vld [vmem:[#allocation8 + $0x64] sm:$0xf]
    %v1161 = vld [vmem:[#allocation8 + $0x68] sm:$0xf]
    %v1162 = vld [vmem:[#allocation8 + $0x6c] sm:$0xf]
    %v1163 = vld [vmem:[#allocation8 + $0x70] sm:$0xf]
    %v1164 = vld [vmem:[#allocation8 + $0x74] sm:$0xf]
    %v1165 = vld [vmem:[#allocation8 + $0x78] sm:$0xf]
    %v1166 = vld [vmem:[#allocation8 + $0x7c] sm:$0xf]
    %v1167 = vld [vmem:[#allocation8 + $0x80] sm:$0xf]
    %v1168 = vld [vmem:[#allocation8 + $0x84] sm:$0xf]
    %v1169 = vld [vmem:[#allocation8 + $0x88] sm:$0xf]
    %v1170 = vld [vmem:[#allocation8 + $0x8c] sm:$0xf]
    %v1171 = vld [vmem:[#allocation8 + $0x90] sm:$0xf]
    %v1172 = vld [vmem:[#allocation8 + $0x94] sm:$0xf]
    %v1173 = vld [vmem:[#allocation8 + $0x98] sm:$0xf]
    %v1174 = vld [vmem:[#allocation8 + $0x9c] sm:$0xf]
    %v1175 = vld [vmem:[#allocation8 + $0xa0] sm:$0xf]
    %v1176 = vld [vmem:[#allocation8 + $0xa4] sm:$0xf]
    %v1177 = vld [vmem:[#allocation8 + $0xa8] sm:$0xf]
    %v1178 = vld [vmem:[#allocation8 + $0xac] sm:$0xf]
    %v1179 = vld [vmem:[#allocation8 + $0xb0] sm:$0xf]
    %v1180 = vld [vmem:[#allocation8 + $0xb4] sm:$0xf]
    %v1181 = vld [vmem:[#allocation8 + $0xb8] sm:$0xf]
    %v1182 = vld [vmem:[#allocation8 + $0xbc] sm:$0xf]
    %v1183 = vld [vmem:[#allocation8 + $0xc0] sm:$0xf]
    %v1184 = vld [vmem:[#allocation8 + $0xc4] sm:$0xf]
    %v1185 = vld [vmem:[#allocation8 + $0xc8] sm:$0xf]
    %v1186 = vld [vmem:[#allocation8 + $0xcc] sm:$0xf]
    %v1187 = vld [vmem:[#allocation8 + $0xd0] sm:$0xf]
    %v1188 = vld [vmem:[#allocation8 + $0xd4] sm:$0xf]
    %v1189 = vld [vmem:[#allocation8 + $0xd8] sm:$0xf]
    %v1190 = vld [vmem:[#allocation8 + $0xdc] sm:$0xf]
    %v1191 = vld [vmem:[#allocation8 + $0xe0] sm:$0xf]
    %v1192 = vld [vmem:[#allocation8 + $0xe4] sm:$0xf]
    %v1193 = vld [vmem:[#allocation8 + $0xe8] sm:$0xf]
    %v1194 = vld [vmem:[#allocation8 + $0xec] sm:$0xf]
    %v1195 = vld [vmem:[#allocation8 + $0xf0] sm:$0xf]
    %v1196 = vld [vmem:[#allocation8 + $0xf4] sm:$0xf]
    %v1197 = vld [vmem:[#allocation8 + $0xf8] sm:$0xf]
    %v1198 = vld [vmem:[#allocation8 + $0xfc] sm:$0xf]
    %v1199 = vld [vmem:[#allocation8 + $0x100] sm:$0xf]
    %v1200 = vld [vmem:[#allocation8 + $0x104] sm:$0xf]
    %v1201 = vld [vmem:[#allocation8 + $0x108] sm:$0xf]
    %v1202 = vld [vmem:[#allocation8 + $0x10c] sm:$0xf]
    %v1203 = vld [vmem:[#allocation8 + $0x110] sm:$0xf]
    %v1204 = vld [vmem:[#allocation8 + $0x114] sm:$0xf]
    %v1205 = vld [vmem:[#allocation8 + $0x118] sm:$0xf]
    %v1206 = vld [vmem:[#allocation8 + $0x11c] sm:$0xf]
    %v1207 = vld [vmem:[#allocation8 + $0x120] sm:$0xf]
    %v1208 = vld [vmem:[#allocation8 + $0x124] sm:$0xf]
    %v1209 = vld [vmem:[#allocation8 + $0x128] sm:$0xf]
    %v1210 = vld [vmem:[#allocation8 + $0x12c] sm:$0xf]
    %v1211 = vld [vmem:[#allocation8 + $0x130] sm:$0xf]
    %v1212 = vld [vmem:[#allocation8 + $0x134] sm:$0xf]
    %v1213 = vld [vmem:[#allocation8 + $0x138] sm:$0xf]
    %v1214 = vld [vmem:[#allocation8 + $0x13c] sm:$0xf]
    %v1215 = vld [vmem:[#allocation8 + $0x140] sm:$0xf]
    %v1216 = vld [vmem:[#allocation8 + $0x144] sm:$0xf]
    %v1217 = vld [vmem:[#allocation8 + $0x148] sm:$0xf]
    %v1218 = vld [vmem:[#allocation8 + $0x14c] sm:$0xf]
    %v1219 = vld [vmem:[#allocation8 + $0x150] sm:$0xf]
    %v1220 = vld [vmem:[#allocation8 + $0x154] sm:$0xf]
    %v1221 = vld [vmem:[#allocation8 + $0x158] sm:$0xf]
    %v1222 = vld [vmem:[#allocation8 + $0x15c] sm:$0xf]
    %v1223 = vld [vmem:[#allocation8 + $0x160] sm:$0xf]
    %v1224 = vld [vmem:[#allocation8 + $0x164] sm:$0xf]
    %v1225 = vld [vmem:[#allocation8 + $0x168] sm:$0xf]
    %v1226 = vld [vmem:[#allocation8 + $0x16c] sm:$0xf]
    %v1227 = vld [vmem:[#allocation8 + $0x170] sm:$0xf]
    %v1228 = vld [vmem:[#allocation8 + $0x174] sm:$0xf]
    %v1229 = vld [vmem:[#allocation8 + $0x178] sm:$0xf]
    %v1230 = vld [vmem:[#allocation8 + $0x17c] sm:$0xf]
    %v1231 = vld [vmem:[#allocation8 + $0x180] sm:$0xf]
    %v1232 = vld [vmem:[#allocation8 + $0x184] sm:$0xf]
    %v1233 = vld [vmem:[#allocation8 + $0x188] sm:$0xf]
    %v1234 = vld [vmem:[#allocation8 + $0x18c] sm:$0xf]
    %v1235 = vld [vmem:[#allocation8 + $0x190] sm:$0xf]
    %v1236 = vld [vmem:[#allocation8 + $0x194] sm:$0xf]
    %v1237 = vld [vmem:[#allocation8 + $0x198] sm:$0xf]
    %v1238 = vld [vmem:[#allocation8 + $0x19c] sm:$0xf]
    %v1239 = vld [vmem:[#allocation8 + $0x1a0] sm:$0xf]
    %v1240 = vld [vmem:[#allocation8 + $0x1a4] sm:$0xf]
    %v1241 = vld [vmem:[#allocation8 + $0x1a8] sm:$0xf]
    %v1242 = vld [vmem:[#allocation8 + $0x1ac] sm:$0xf]
    %v1243 = vld [vmem:[#allocation8 + $0x1b0] sm:$0xf]
    %v1244 = vld [vmem:[#allocation8 + $0x1b4] sm:$0xf]
    %v1245 = vld [vmem:[#allocation8 + $0x1b8] sm:$0xf]
    %v1246 = vld [vmem:[#allocation8 + $0x1bc] sm:$0xf]
    %v1359 = vunpack.c.l.b16 %v1135
    %v1360 = vunpack.c.l.b16 %v1136
    %v1361 = vunpack.c.l.b16 %v1137
    %v1362 = vunpack.c.l.b16 %v1138
    %v1363 = vunpack.c.l.b16 %v1139
    %v1364 = vunpack.c.l.b16 %v1140
    %v1365 = vunpack.c.l.b16 %v1141
    %v1366 = vunpack.c.l.b16 %v1142
    %v1367 = vunpack.c.l.b16 %v1143
    %v1368 = vunpack.c.l.b16 %v1144
    %v1369 = vunpack.c.l.b16 %v1145
    %v1370 = vunpack.c.l.b16 %v1146
    %v1371 = vunpack.c.l.b16 %v1147
    %v1372 = vunpack.c.l.b16 %v1148
    %v1373 = vunpack.c.l.b16 %v1149
    %v1374 = vunpack.c.l.b16 %v1150
    %v1375 = vunpack.c.l.b16 %v1151
    %v1376 = vunpack.c.l.b16 %v1152
    %v1377 = vunpack.c.l.b16 %v1153
    %v1378 = vunpack.c.l.b16 %v1154
    %v1379 = vunpack.c.l.b16 %v1155
    %v1380 = vunpack.c.l.b16 %v1156
    %v1381 = vunpack.c.l.b16 %v1157
    %v1382 = vunpack.c.l.b16 %v1158
    %v1383 = vunpack.c.l.b16 %v1159
    %v1384 = vunpack.c.l.b16 %v1160
    %v1385 = vunpack.c.l.b16 %v1161
    %v1386 = vunpack.c.l.b16 %v1162
    %v1387 = vunpack.c.l.b16 %v1163
    %v1388 = vunpack.c.l.b16 %v1164
    %v1389 = vunpack.c.l.b16 %v1165
    %v1390 = vunpack.c.l.b16 %v1166
    %v1391 = vunpack.c.l.b16 %v1167
    %v1392 = vunpack.c.l.b16 %v1168
    %v1393 = vunpack.c.l.b16 %v1169
    %v1394 = vunpack.c.l.b16 %v1170
    %v1395 = vunpack.c.l.b16 %v1171
    %v1396 = vunpack.c.l.b16 %v1172
    %v1397 = vunpack.c.l.b16 %v1173
    %v1398 = vunpack.c.l.b16 %v1174
    %v1399 = vunpack.c.l.b16 %v1175
    %v1400 = vunpack.c.l.b16 %v1176
    %v1401 = vunpack.c.l.b16 %v1177
    %v1402 = vunpack.c.l.b16 %v1178
    %v1403 = vunpack.c.l.b16 %v1179
    %v1404 = vunpack.c.l.b16 %v1180
    %v1405 = vunpack.c.l.b16 %v1181
    %v1406 = vunpack.c.l.b16 %v1182
    %v1407 = vunpack.c.l.b16 %v1183
    %v1408 = vunpack.c.l.b16 %v1184
    %v1409 = vunpack.c.l.b16 %v1185
    %v1410 = vunpack.c.l.b16 %v1186
    %v1411 = vunpack.c.l.b16 %v1187
    %v1412 = vunpack.c.l.b16 %v1188
    %v1413 = vunpack.c.l.b16 %v1189
    %v1414 = vunpack.c.l.b16 %v1190
    %v1415 = vunpack.c.l.b16 %v1191
    %v1416 = vunpack.c.l.b16 %v1192
    %v1417 = vunpack.c.l.b16 %v1193
    %v1418 = vunpack.c.l.b16 %v1194
    %v1419 = vunpack.c.l.b16 %v1195
    %v1420 = vunpack.c.l.b16 %v1196
    %v1421 = vunpack.c.l.b16 %v1197
    %v1422 = vunpack.c.l.b16 %v1198
    %v1423 = vunpack.c.l.b16 %v1199
    %v1424 = vunpack.c.l.b16 %v1200
    %v1425 = vunpack.c.l.b16 %v1201
    %v1426 = vunpack.c.l.b16 %v1202
    %v1427 = vunpack.c.l.b16 %v1203
    %v1428 = vunpack.c.l.b16 %v1204
    %v1429 = vunpack.c.l.b16 %v1205
    %v1430 = vunpack.c.l.b16 %v1206
    %v1431 = vunpack.c.l.b16 %v1207
    %v1432 = vunpack.c.l.b16 %v1208
    %v1433 = vunpack.c.l.b16 %v1209
    %v1434 = vunpack.c.l.b16 %v1210
    %v1435 = vunpack.c.l.b16 %v1211
    %v1436 = vunpack.c.l.b16 %v1212
    %v1437 = vunpack.c.l.b16 %v1213
    %v1438 = vunpack.c.l.b16 %v1214
    %v1439 = vunpack.c.l.b16 %v1215
    %v1440 = vunpack.c.l.b16 %v1216
    %v1441 = vunpack.c.l.b16 %v1217
    %v1442 = vunpack.c.l.b16 %v1218
    %v1443 = vunpack.c.l.b16 %v1219
    %v1444 = vunpack.c.l.b16 %v1220
    %v1445 = vunpack.c.l.b16 %v1221
    %v1446 = vunpack.c.l.b16 %v1222
    %v1447 = vunpack.c.l.b16 %v1223
    %v1448 = vunpack.c.l.b16 %v1224
    %v1449 = vunpack.c.l.b16 %v1225
    %v1450 = vunpack.c.l.b16 %v1226
    %v1451 = vunpack.c.l.b16 %v1227
    %v1452 = vunpack.c.l.b16 %v1228
    %v1453 = vunpack.c.l.b16 %v1229
    %v1454 = vunpack.c.l.b16 %v1230
    %v1455 = vunpack.c.l.b16 %v1231
    %v1456 = vunpack.c.l.b16 %v1232
    %v1457 = vunpack.c.l.b16 %v1233
    %v1458 = vunpack.c.l.b16 %v1234
    %v1459 = vunpack.c.l.b16 %v1235
    %v1460 = vunpack.c.l.b16 %v1236
    %v1461 = vunpack.c.l.b16 %v1237
    %v1462 = vunpack.c.l.b16 %v1238
    %v1463 = vunpack.c.l.b16 %v1239
    %v1464 = vunpack.c.l.b16 %v1240
    %v1465 = vunpack.c.l.b16 %v1241
    %v1466 = vunpack.c.l.b16 %v1242
    %v1467 = vunpack.c.l.b16 %v1243
    %v1468 = vunpack.c.l.b16 %v1244
    %v1469 = vunpack.c.l.b16 %v1245
    %v1470 = vunpack.c.l.b16 %v1246
    %v1471 = vpack.c.b16 %v1360, %v1359
    %v1472 = vpack.c.b16 %v1362, %v1361
    %v1473 = vpack.c.b16 %v1364, %v1363
    %v1474 = vpack.c.b16 %v1366, %v1365
    %v1475 = vpack.c.b16 %v1368, %v1367
    %v1476 = vpack.c.b16 %v1370, %v1369
    %v1477 = vpack.c.b16 %v1372, %v1371
    %v1478 = vpack.c.b16 %v1374, %v1373
    %v1479 = vpack.c.b16 %v1376, %v1375
    %v1480 = vpack.c.b16 %v1378, %v1377
    %v1481 = vpack.c.b16 %v1380, %v1379
    %v1482 = vpack.c.b16 %v1382, %v1381
    %v1483 = vpack.c.b16 %v1384, %v1383
    %v1484 = vpack.c.b16 %v1386, %v1385
    %v1485 = vpack.c.b16 %v1388, %v1387
    %v1486 = vpack.c.b16 %v1390, %v1389
    %v1487 = vpack.c.b16 %v1392, %v1391
    %v1488 = vpack.c.b16 %v1394, %v1393
    %v1489 = vpack.c.b16 %v1396, %v1395
    %v1490 = vpack.c.b16 %v1398, %v1397
    %v1491 = vpack.c.b16 %v1400, %v1399
    %v1492 = vpack.c.b16 %v1402, %v1401
    %v1493 = vpack.c.b16 %v1404, %v1403
    %v1494 = vpack.c.b16 %v1406, %v1405
    %v1495 = vpack.c.b16 %v1408, %v1407
    %v1496 = vpack.c.b16 %v1410, %v1409
    %v1497 = vpack.c.b16 %v1412, %v1411
    %v1498 = vpack.c.b16 %v1414, %v1413
    %v1499 = vpack.c.b16 %v1416, %v1415
    %v1500 = vpack.c.b16 %v1418, %v1417
    %v1501 = vpack.c.b16 %v1420, %v1419
    %v1502 = vpack.c.b16 %v1422, %v1421
    %v1503 = vpack.c.b16 %v1424, %v1423
    %v1504 = vpack.c.b16 %v1426, %v1425
    %v1505 = vpack.c.b16 %v1428, %v1427
    %v1506 = vpack.c.b16 %v1430, %v1429
    %v1507 = vpack.c.b16 %v1432, %v1431
    %v1508 = vpack.c.b16 %v1434, %v1433
    %v1509 = vpack.c.b16 %v1436, %v1435
    %v1510 = vpack.c.b16 %v1438, %v1437
    %v1511 = vpack.c.b16 %v1440, %v1439
    %v1512 = vpack.c.b16 %v1442, %v1441
    %v1513 = vpack.c.b16 %v1444, %v1443
    %v1514 = vpack.c.b16 %v1446, %v1445
    %v1515 = vpack.c.b16 %v1448, %v1447
    %v1516 = vpack.c.b16 %v1450, %v1449
    %v1517 = vpack.c.b16 %v1452, %v1451
    %v1518 = vpack.c.b16 %v1454, %v1453
    %v1519 = vpack.c.b16 %v1456, %v1455
    %v1520 = vpack.c.b16 %v1458, %v1457
    %v1521 = vpack.c.b16 %v1460, %v1459
    %v1522 = vpack.c.b16 %v1462, %v1461
    %v1523 = vpack.c.b16 %v1464, %v1463
    %v1524 = vpack.c.b16 %v1466, %v1465
    %v1525 = vpack.c.b16 %v1468, %v1467
    %v1526 = vpack.c.b16 %v1470, %v1469
    %1583 = vmatprep.subr.bf16.mxu0 0
    %1584 = vmatpush1.bf16.msra.mxu0 %v1478
    %1585 = vmatprep.subr.bf16.mxu0 0
    %1586 = vmatpush1.bf16.msra.mxu0 %v1477
    %1587 = vmatprep.subr.bf16.mxu0 0
    %1588 = vmatpush1.bf16.msra.mxu0 %v1476
    %1589 = vmatprep.subr.bf16.mxu0 0
    %1590 = vmatpush1.bf16.msra.mxu0 %v1475
    %1591 = vmatprep.subr.bf16.mxu0 0
    %1592 = vmatpush1.bf16.msra.mxu0 %v1474
    %1593 = vmatprep.subr.bf16.mxu0 0
    %1594 = vmatpush1.bf16.msra.mxu0 %v1473
    %1595 = vmatprep.subr.bf16.mxu0 0
    %1596 = vmatpush1.bf16.msra.mxu0 %v1472
    %1597 = vmatprep.subr.bf16.mxu0 0
    %1598 = vmatpush1.bf16.msra.mxu0 %v1471
    %1599 = vmatprep.subr.bf16.mxu0 0
    %1600 = vmatpush2.bf16.msra.mxu0 %v1486
    %1601 = vmatprep.subr.bf16.mxu0 0
    %1602 = vmatpush2.bf16.msra.mxu0 %v1485
    %1603 = vmatprep.subr.bf16.mxu0 0
    %1604 = vmatpush2.bf16.msra.mxu0 %v1484
    %1605 = vmatprep.subr.bf16.mxu0 0
    %1606 = vmatpush2.bf16.msra.mxu0 %v1483
    %1607 = vmatprep.subr.bf16.mxu0 0
    %1608 = vmatpush2.bf16.msra.mxu0 %v1482
    %1609 = vmatprep.subr.bf16.mxu0 0
    %1610 = vmatpush2.bf16.msra.mxu0 %v1481
    %1611 = vmatprep.subr.bf16.mxu0 0
    %1612 = vmatpush2.bf16.msra.mxu0 %v1480
    %1613 = vmatprep.subr.bf16.mxu0 0
    %1614 = vmatpush2.bf16.msra.mxu0 %v1479
    %1615 = vmatprep.mubr.bf16.mxu0 %v1129
    %1616 = vmatmul.mubr.bf16.gmra.mxu0 %v1128
    %v1617 = vpop.f32.mrf.mxu0
    %v1618 = vadd.f32 0.0, %v1617
    %v1619 = vpop.f32.mrf.mxu0
    %v1620 = vpop.f32.mrf.mxu0
    %v1621 = vpop.f32.mrf.mxu0
    %1622 = vdwg.mxu0
    %1623 = vmatprep.subr.bf16.mxu0 0
    %1624 = vmatpush1.bf16.msra.mxu0 %v1494
    %1625 = vmatprep.subr.bf16.mxu0 0
    %1626 = vmatpush1.bf16.msra.mxu0 %v1493
    %1627 = vmatprep.subr.bf16.mxu0 0
    %1628 = vmatpush1.bf16.msra.mxu0 %v1492
    %1629 = vmatprep.subr.bf16.mxu0 0
    %1630 = vmatpush1.bf16.msra.mxu0 %v1491
    %1631 = vmatprep.subr.bf16.mxu0 0
    %1632 = vmatpush1.bf16.msra.mxu0 %v1490
    %1633 = vmatprep.subr.bf16.mxu0 0
    %1634 = vmatpush1.bf16.msra.mxu0 %v1489
    %1635 = vmatprep.subr.bf16.mxu0 0
    %1636 = vmatpush1.bf16.msra.mxu0 %v1488
    %1637 = vmatprep.subr.bf16.mxu0 0
    %1638 = vmatpush1.bf16.msra.mxu0 %v1487
    %1639 = vmatprep.subr.bf16.mxu0 0
    %1640 = vmatpush2.bf16.msra.mxu0 %v1502
    %1641 = vmatprep.subr.bf16.mxu0 0
    %1642 = vmatpush2.bf16.msra.mxu0 %v1501
    %1643 = vmatprep.subr.bf16.mxu0 0
    %1644 = vmatpush2.bf16.msra.mxu0 %v1500
    %1645 = vmatprep.subr.bf16.mxu0 0
    %1646 = vmatpush2.bf16.msra.mxu0 %v1499
    %1647 = vmatprep.subr.bf16.mxu0 0
    %1648 = vmatpush2.bf16.msra.mxu0 %v1498
    %1649 = vmatprep.subr.bf16.mxu0 0
    %1650 = vmatpush2.bf16.msra.mxu0 %v1497
    %1651 = vmatprep.subr.bf16.mxu0 0
    %1652 = vmatpush2.bf16.msra.mxu0 %v1496
    %1653 = vmatprep.subr.bf16.mxu0 0
    %1654 = vmatpush2.bf16.msra.mxu0 %v1495
    %1655 = vmatprep.mubr.bf16.mxu0 %v1131
    %1656 = vmatmul.mubr.bf16.gmra.mxu0 %v1130
    %v1657 = vpop.f32.mrf.mxu0
    %v1658 = vadd.f32 %v1618, %v1657
    %v1659 = vpop.f32.mrf.mxu0
    %v1660 = vpop.f32.mrf.mxu0
    %v1661 = vpop.f32.mrf.mxu0
    %1662 = vdwg.mxu0
    %1663 = vmatprep.subr.bf16.mxu0 0
    %1664 = vmatpush1.bf16.msra.mxu0 %v1510
    %1665 = vmatprep.subr.bf16.mxu0 0
    %1666 = vmatpush1.bf16.msra.mxu0 %v1509
    %1667 = vmatprep.subr.bf16.mxu0 0
    %1668 = vmatpush1.bf16.msra.mxu0 %v1508
    %1669 = vmatprep.subr.bf16.mxu0 0
    %1670 = vmatpush1.bf16.msra.mxu0 %v1507
    %1671 = vmatprep.subr.bf16.mxu0 0
    %1672 = vmatpush1.bf16.msra.mxu0 %v1506
    %1673 = vmatprep.subr.bf16.mxu0 0
    %1674 = vmatpush1.bf16.msra.mxu0 %v1505
    %1675 = vmatprep.subr.bf16.mxu0 0
    %1676 = vmatpush1.bf16.msra.mxu0 %v1504
    %1677 = vmatprep.subr.bf16.mxu0 0
    %1678 = vmatpush1.bf16.msra.mxu0 %v1503
    %1679 = vmatprep.subr.bf16.mxu0 0
    %1680 = vmatpush2.bf16.msra.mxu0 %v1518
    %1681 = vmatprep.subr.bf16.mxu0 0
    %1682 = vmatpush2.bf16.msra.mxu0 %v1517
    %1683 = vmatprep.subr.bf16.mxu0 0
    %1684 = vmatpush2.bf16.msra.mxu0 %v1516
    %1685 = vmatprep.subr.bf16.mxu0 0
    %1686 = vmatpush2.bf16.msra.mxu0 %v1515
    %1687 = vmatprep.subr.bf16.mxu0 0
    %1688 = vmatpush2.bf16.msra.mxu0 %v1514
    %1689 = vmatprep.subr.bf16.mxu0 0
    %1690 = vmatpush2.bf16.msra.mxu0 %v1513
    %1691 = vmatprep.subr.bf16.mxu0 0
    %1692 = vmatpush2.bf16.msra.mxu0 %v1512
    %1693 = vmatprep.subr.bf16.mxu0 0
    %1694 = vmatpush2.bf16.msra.mxu0 %v1511
    %1695 = vmatprep.mubr.bf16.mxu0 %v1133
    %1696 = vmatmul.mubr.bf16.gmra.mxu0 %v1132
    %v1697 = vpop.f32.mrf.mxu0
    %v1698 = vadd.f32 %v1658, %v1697
    %v1699 = vpop.f32.mrf.mxu0
    %v1700 = vpop.f32.mrf.mxu0
    %v1701 = vpop.f32.mrf.mxu0
    %1702 = vdwg.mxu0
    %1703 = vmatprep.subr.bf16.mxu0 0
    %1704 = vmatpush1.bf16.msra.mxu0 %v1526
    %1705 = vmatprep.subr.bf16.mxu0 0
    %1706 = vmatpush1.bf16.msra.mxu0 %v1525
    %1707 = vmatprep.subr.bf16.mxu0 0
    %1708 = vmatpush1.bf16.msra.mxu0 %v1524
    %1709 = vmatprep.subr.bf16.mxu0 0
    %1710 = vmatpush1.bf16.msra.mxu0 %v1523
    %1711 = vmatprep.subr.bf16.mxu0 0
    %1712 = vmatpush1.bf16.msra.mxu0 %v1522
    %1713 = vmatprep.subr.bf16.mxu0 0
    %1714 = vmatpush1.bf16.msra.mxu0 %v1521
    %1715 = vmatprep.subr.bf16.mxu0 0
    %1716 = vmatpush1.bf16.msra.mxu0 %v1520
    %1717 = vmatprep.subr.bf16.mxu0 0
    %1718 = vmatpush1.bf16.msra.mxu0 %v1519
    %1719 = vmatprep.subr.bf16.mxu0 0
    %1720 = vmatpush2.bf16.msra.mxu0 0
    %1721 = vmatprep.subr.bf16.mxu0 0
    %1722 = vmatpush2.bf16.msra.mxu0 0
    %1723 = vmatprep.subr.bf16.mxu0 0
    %1724 = vmatpush2.bf16.msra.mxu0 0
    %1725 = vmatprep.subr.bf16.mxu0 0
    %1726 = vmatpush2.bf16.msra.mxu0 0
    %1727 = vmatprep.subr.bf16.mxu0 0
    %1728 = vmatpush2.bf16.msra.mxu0 0
    %1729 = vmatprep.subr.bf16.mxu0 0
    %1730 = vmatpush2.bf16.msra.mxu0 0
    %1731 = vmatprep.subr.bf16.mxu0 0
    %1732 = vmatpush2.bf16.msra.mxu0 0
    %1733 = vmatprep.subr.bf16.mxu0 0
    %1734 = vmatpush2.bf16.msra.mxu0 0
    %1735 = vmatprep.mubr.bf16.mxu0 0
    %1736 = vmatmul.mubr.bf16.gmra.mxu0 %v1134
    %v1737 = vpop.f32.mrf.mxu0
    %v1738 = vadd.f32 %v1698, %v1737
    %v1739 = vpop.f32.mrf.mxu0
    %v1740 = vpop.f32.mrf.mxu0
    %v1741 = vpop.f32.mrf.mxu0
    %1742 = vdwg.mxu0
    %v1743 = vpack.c.bf16 %v1738, %v1738
    %v1744 = vld [vmem:[#allocation10 + $0x7] sm:$0x1]
    %v1746 = vpack.i.b16 %v1744, %v1744
    %v1748 = vlaneseq
    %v1749 = vshrl.u32 %v1748, 7
    %v1750 = vsub.s32 0, %v1749
    %v1751 = vrot.slane %v1746, %v1750
    %v1752 = vadd.bf16 %v1743, %v1751
    %v1753 = vmax.bf16 %v1752, 0
    %v1754 = vld [vmem:[#allocation8 + $0x1c0] sm:$0xf]
    %v1755 = vld [vmem:[#allocation8 + $0x1c4] sm:$0xf]
    %v1756 = vld [vmem:[#allocation8 + $0x1c8] sm:$0xf]
    %v1757 = vld [vmem:[#allocation8 + $0x1cc] sm:$0xf]
    %v1758 = vld [vmem:[#allocation8 + $0x1d0] sm:$0xf]
    %v1759 = vld [vmem:[#allocation8 + $0x1d4] sm:$0xf]
    %v1760 = vld [vmem:[#allocation8 + $0x1d8] sm:$0xf]
    %v1761 = vld [vmem:[#allocation8 + $0x1dc] sm:$0xf]
    %v1762 = vld [vmem:[#allocation8 + $0x1e0] sm:$0xf]
    %v1763 = vld [vmem:[#allocation8 + $0x1e4] sm:$0xf]
    %v1764 = vld [vmem:[#allocation8 + $0x1e8] sm:$0xf]
    %v1765 = vld [vmem:[#allocation8 + $0x1ec] sm:$0xf]
    %v1766 = vld [vmem:[#allocation8 + $0x1f0] sm:$0xf]
    %v1767 = vld [vmem:[#allocation8 + $0x1f4] sm:$0xf]
    %v1768 = vld [vmem:[#allocation8 + $0x1f8] sm:$0xf]
    %v1769 = vld [vmem:[#allocation8 + $0x1fc] sm:$0xf]
    %v1786 = vunpack.c.l.b16 %v1754
    %v1787 = vunpack.c.l.b16 %v1755
    %v1788 = vunpack.c.l.b16 %v1756
    %v1789 = vunpack.c.l.b16 %v1757
    %v1790 = vunpack.c.l.b16 %v1758
    %v1791 = vunpack.c.l.b16 %v1759
    %v1792 = vunpack.c.l.b16 %v1760
    %v1793 = vunpack.c.l.b16 %v1761
    %v1794 = vunpack.c.l.b16 %v1762
    %v1795 = vunpack.c.l.b16 %v1763
    %v1796 = vunpack.c.l.b16 %v1764
    %v1797 = vunpack.c.l.b16 %v1765
    %v1798 = vunpack.c.l.b16 %v1766
    %v1799 = vunpack.c.l.b16 %v1767
    %v1800 = vunpack.c.l.b16 %v1768
    %v1801 = vunpack.c.l.b16 %v1769
    %v1802 = vpack.c.b16 %v1787, %v1786
    %v1803 = vpack.c.b16 %v1789, %v1788
    %v1804 = vpack.c.b16 %v1791, %v1790
    %v1805 = vpack.c.b16 %v1793, %v1792
    %v1806 = vpack.c.b16 %v1795, %v1794
    %v1807 = vpack.c.b16 %v1797, %v1796
    %v1808 = vpack.c.b16 %v1799, %v1798
    %v1809 = vpack.c.b16 %v1801, %v1800
    %1818 = vmatprep.subr.bf16.mxu0 0
    %1819 = vmatpush1.bf16.msra.mxu0 %v1809
    %1820 = vmatprep.subr.bf16.mxu0 0
    %1821 = vmatpush1.bf16.msra.mxu0 %v1808
    %1822 = vmatprep.subr.bf16.mxu0 0
    %1823 = vmatpush1.bf16.msra.mxu0 %v1807
    %1824 = vmatprep.subr.bf16.mxu0 0
    %1825 = vmatpush1.bf16.msra.mxu0 %v1806
    %1826 = vmatprep.subr.bf16.mxu0 0
    %1827 = vmatpush1.bf16.msra.mxu0 %v1805
    %1828 = vmatprep.subr.bf16.mxu0 0
    %1829 = vmatpush1.bf16.msra.mxu0 %v1804
    %1830 = vmatprep.subr.bf16.mxu0 0
    %1831 = vmatpush1.bf16.msra.mxu0 %v1803
    %1832 = vmatprep.subr.bf16.mxu0 0
    %1833 = vmatpush1.bf16.msra.mxu0 %v1802
    %1834 = vmatprep.subr.bf16.mxu0 0
    %1835 = vmatpush2.bf16.msra.mxu0 0
    %1836 = vmatprep.subr.bf16.mxu0 0
    %1837 = vmatpush2.bf16.msra.mxu0 0
    %1838 = vmatprep.subr.bf16.mxu0 0
    %1839 = vmatpush2.bf16.msra.mxu0 0
    %1840 = vmatprep.subr.bf16.mxu0 0
    %1841 = vmatpush2.bf16.msra.mxu0 0
    %1842 = vmatprep.subr.bf16.mxu0 0
    %1843 = vmatpush2.bf16.msra.mxu0 0
    %1844 = vmatprep.subr.bf16.mxu0 0
    %1845 = vmatpush2.bf16.msra.mxu0 0
    %1846 = vmatprep.subr.bf16.mxu0 0
    %1847 = vmatpush2.bf16.msra.mxu0 0
    %1848 = vmatprep.subr.bf16.mxu0 0
    %1849 = vmatpush2.bf16.msra.mxu0 0
    %1850 = vmatprep.mubr.bf16.mxu0 0
    %1851 = vmatmul.mubr.bf16.gmra.mxu0 %v1753
    %v1852 = vpop.f32.mrf.mxu0
    %v1853 = vadd.f32 0.0, %v1852
    %v1854 = vpop.f32.mrf.mxu0
    %v1855 = vpop.f32.mrf.mxu0
    %v1856 = vpop.f32.mrf.mxu0
    %1857 = vdwg.mxu0
    %v1858 = vpack.c.bf16 %v1853, %v1853
    %v1859 = vld [vmem:[#allocation10 + $0x8] sm:$0x1]
    %v1861 = vpack.i.b16 %v1859, %v1859
    %v1863 = vlaneseq
    %v1864 = vshrl.u32 %v1863, 7
    %v1865 = vsub.s32 0, %v1864
    %v1866 = vrot.slane %v1861, %v1865
    %v1867 = vadd.bf16 %v1858, %v1866
    %v1868 = vmax.bf16 %v1867, 0
    %v1869 = vld [vmem:[#allocation8 + $0x200] sm:$0xf]
    %v1870 = vld [vmem:[#allocation8 + $0x204] sm:$0xf]
    %v1871 = vld [vmem:[#allocation8 + $0x208] sm:$0xf]
    %v1872 = vld [vmem:[#allocation8 + $0x20c] sm:$0xf]
    %v1873 = vld [vmem:[#allocation8 + $0x210] sm:$0xf]
    %v1874 = vld [vmem:[#allocation8 + $0x214] sm:$0xf]
    %v1875 = vld [vmem:[#allocation8 + $0x218] sm:$0xf]
    %v1876 = vld [vmem:[#allocation8 + $0x21c] sm:$0xf]
    %v1877 = vld [vmem:[#allocation8 + $0x220] sm:$0xf]
    %v1878 = vld [vmem:[#allocation8 + $0x224] sm:$0xf]
    %v1879 = vld [vmem:[#allocation8 + $0x228] sm:$0xf]
    %v1880 = vld [vmem:[#allocation8 + $0x22c] sm:$0xf]
    %v1881 = vld [vmem:[#allocation8 + $0x230] sm:$0xf]
    %v1882 = vld [vmem:[#allocation8 + $0x234] sm:$0xf]
    %v1883 = vld [vmem:[#allocation8 + $0x238] sm:$0xf]
    %v1884 = vld [vmem:[#allocation8 + $0x23c] sm:$0xf]
    %v1901 = vunpack.c.l.b16 %v1869
    %v1902 = vunpack.c.l.b16 %v1870
    %v1903 = vunpack.c.l.b16 %v1871
    %v1904 = vunpack.c.l.b16 %v1872
    %v1905 = vunpack.c.l.b16 %v1873
    %v1906 = vunpack.c.l.b16 %v1874
    %v1907 = vunpack.c.l.b16 %v1875
    %v1908 = vunpack.c.l.b16 %v1876
    %v1909 = vunpack.c.l.b16 %v1877
    %v1910 = vunpack.c.l.b16 %v1878
    %v1911 = vunpack.c.l.b16 %v1879
    %v1912 = vunpack.c.l.b16 %v1880
    %v1913 = vunpack.c.l.b16 %v1881
    %v1914 = vunpack.c.l.b16 %v1882
    %v1915 = vunpack.c.l.b16 %v1883
    %v1916 = vunpack.c.l.b16 %v1884
    %v1917 = vpack.c.b16 %v1902, %v1901
    %v1918 = vpack.c.b16 %v1904, %v1903
    %v1919 = vpack.c.b16 %v1906, %v1905
    %v1920 = vpack.c.b16 %v1908, %v1907
    %v1921 = vpack.c.b16 %v1910, %v1909
    %v1922 = vpack.c.b16 %v1912, %v1911
    %v1923 = vpack.c.b16 %v1914, %v1913
    %v1924 = vpack.c.b16 %v1916, %v1915
    %1933 = vmatprep.subr.bf16.mxu0 0
    %1934 = vmatpush1.bf16.msra.mxu0 %v1924
    %1935 = vmatprep.subr.bf16.mxu0 0
    %1936 = vmatpush1.bf16.msra.mxu0 %v1923
    %1937 = vmatprep.subr.bf16.mxu0 0
    %1938 = vmatpush1.bf16.msra.mxu0 %v1922
    %1939 = vmatprep.subr.bf16.mxu0 0
    %1940 = vmatpush1.bf16.msra.mxu0 %v1921
    %1941 = vmatprep.subr.bf16.mxu0 0
    %1942 = vmatpush1.bf16.msra.mxu0 %v1920
    %1943 = vmatprep.subr.bf16.mxu0 0
    %1944 = vmatpush1.bf16.msra.mxu0 %v1919
    %1945 = vmatprep.subr.bf16.mxu0 0
    %1946 = vmatpush1.bf16.msra.mxu0 %v1918
    %1947 = vmatprep.subr.bf16.mxu0 0
    %1948 = vmatpush1.bf16.msra.mxu0 %v1917
    %1949 = vmatprep.subr.bf16.mxu0 0
    %1950 = vmatpush2.bf16.msra.mxu0 0
    %1951 = vmatprep.subr.bf16.mxu0 0
    %1952 = vmatpush2.bf16.msra.mxu0 0
    %1953 = vmatprep.subr.bf16.mxu0 0
    %1954 = vmatpush2.bf16.msra.mxu0 0
    %1955 = vmatprep.subr.bf16.mxu0 0
    %1956 = vmatpush2.bf16.msra.mxu0 0
    %1957 = vmatprep.subr.bf16.mxu0 0
    %1958 = vmatpush2.bf16.msra.mxu0 0
    %1959 = vmatprep.subr.bf16.mxu0 0
    %1960 = vmatpush2.bf16.msra.mxu0 0
    %1961 = vmatprep.subr.bf16.mxu0 0
    %1962 = vmatpush2.bf16.msra.mxu0 0
    %1963 = vmatprep.subr.bf16.mxu0 0
    %1964 = vmatpush2.bf16.msra.mxu0 0
    %1965 = vmatprep.mubr.bf16.mxu0 0
    %1966 = vmatmul.mubr.bf16.gmra.mxu0 %v1868
    %v1967 = vpop.f32.mrf.mxu0
    %v1968 = vadd.f32 0.0, %v1967
    %v1969 = vpop.f32.mrf.mxu0
    %v1970 = vpop.f32.mrf.mxu0
    %v1971 = vpop.f32.mrf.mxu0
    %1972 = vdwg.mxu0
    %v1973 = vpack.c.bf16 %v1968, %v1968
    %v1974 = vld [vmem:[#allocation10 + $0x9] sm:$0x1]
    %v1976 = vpack.i.b16 %v1974, %v1974
    %v1978 = vlaneseq
    %v1979 = vshrl.u32 %v1978, 7
    %v1980 = vsub.s32 0, %v1979
    %v1981 = vrot.slane %v1976, %v1980
    %v1982 = vadd.bf16 %v1973, %v1981
    %1983 = vst [vmem:[#allocation11] sm:$0xf] %v1982
    // Predicated region
    $region42: #{tpu_custom_call.1} parent=1 // pred_check
      _
    $region43: #{tpu_custom_call.1} parent=1 // pred_check_branch
      %1985 = sbr.rel (0) target = $region45
    $region44: #{tpu_custom_call.1} parent=1 // pred_region
      %s1987 = ssub.s32 64, 64
      %1988 = vsyncadd [#allocation4], %s1987
      %s1990 = sshll.u32 [#allocation11], 4
      %s1991 = int_to_ptr.vmem [resolvable:$true] %s1990
      %1993 = dma.vmem_to_hbm [thread:$0]  %s1991, 64, %s5, [#allocation4]
    $region45: #{tpu_custom_call.1} parent=1 // pred_fallthru
      _
    // Predicated region
    $region46: #{tpu_custom_call.1} parent=1 // pred_check
      _
    $region47: #{tpu_custom_call.1} parent=1 // pred_check_branch
      %1995 = sbr.rel (0) target = $region49
    $region48: #{tpu_custom_call.1} parent=1 // pred_region
      %1996 = dma.done [#allocation4], 64
    $region49: #{tpu_custom_call.1} parent=1 // pred_fallthru
      _
    %1997 = vsyncpa [#allocation3], 1
    %1998 = vsyncpa [#allocation6], 1
    %1999 = vsyncpa [#allocation9], 1
    %2000 = vsyncpa [#allocation4], 1

// kernel: tpu_custom_call.1
$region0: #{tpu_custom_call.1}
  #allocation0 [shape = 'u32[]', space=smem, size = 0x4, offset = 0x4, fixed_abs, tag = 'smem constant byte address 0x4 - core index']
  #allocation1 [shape = 'u32[144,128]{1,0:T(1,128)}', space=vmem, size = 0x12000, scoped, tag = 'internal scratch']
  %s0 = inlined_call_operand.hbm [shape: bf16[8,16], index: 0, kind: input, shape index: {}]
  %s1 = inlined_call_operand.hbm [shape: bf16[16,256], index: 1, kind: input, shape index: {}]
  %s2 = inlined_call_operand.hbm [shape: bf16[256,896], index: 2, kind: input, shape index: {}]
  %s3 = inlined_call_operand.hbm [shape: bf16[1152,128], index: 3, kind: input, shape index: {}]
  %s4 = inlined_call_operand.hbm [shape: bf16[1,1280], index: 4, kind: input, shape index: {}]
  %s5 = inlined_call_operand.hbm [shape: bf16[8,128], index: 5, kind: output, shape index: {}]
  %s6 = sld [smem:[#allocation0]]
  $region50: #{tpu_custom_call.1} parent=0
    _
  %s8 = ssub.s32 1, %s6
  %s9 = scalar_select 0, %s8, %s6
  $region1: #{tpu_custom_call.1} parent=0
    #allocation2 [shape = 'u8[2048]{0}', space=vmem, size = 0x800, scoped, tag = 'input window, operand 0, single buffered']
    #allocation3 [shape = 's32[1]{0}', space=sflag, size = 0x4, scoped, tag = 'scoped memory for tpu_custom_call.1']
    #allocation4 [shape = 's32[1]{0}', space=sflag, size = 0x4, scoped, tag = 'scoped memory for tpu_custom_call.1']
    #allocation5 [shape = 'u8[8192]{0}', space=vmem, size = 0x2000, scoped, tag = 'input window, operand 1, single buffered']
    #allocation6 [shape = 's32[1]{0}', space=sflag, size = 0x4, scoped, tag = 'scoped memory for tpu_custom_call.1']
    #allocation7 [shape = 'u8[458752]{0}', space=vmem, size = 0x70000, scoped, tag = 'input window, operand 2, single buffered']
    #allocation8 [shape = 'u8[294912]{0}', space=vmem, size = 0x48000, scoped, tag = 'input window, operand 3, single buffered']
    #allocation9 [shape = 's32[1]{0}', space=sflag, size = 0x4, scoped, tag = 'scoped memory for tpu_custom_call.1']
    #allocation10 [shape = 'u8[5120]{0}', space=vmem, size = 0x1400, scoped, tag = 'input window, operand 4, single buffered']
    #allocation11 [shape = 'u8[2048]{0}', space=vmem, size = 0x800, scoped, tag = 'output window, operand 0, single buffered']
    %10 = vsyncpa [#allocation3], 0
    %11 = vsyncpa [#allocation6], 0
    %12 = vsyncpa [#allocation9], 0
    %13 = vsyncpa [#allocation4], 0
    // Predicated region
    $region2: #{tpu_custom_call.1} parent=1 // pred_check
      _
    $region3: #{tpu_custom_call.1} parent=1 // pred_check_branch
      %15 = sbr.rel (0) target = $region5
    $region4: #{tpu_custom_call.1} parent=1 // pred_region
      %s17 = ssub.s32 64, 64
      %18 = vsyncadd [#allocation3], %s17
      %s20 = sshll.u32 [#allocation2], 4
      %s21 = int_to_ptr.vmem [resolvable:$true] %s20
      %23 = dma.hbm_to_vmem [thread:$0]  %s0, 64, %s21, [#allocation3]
    $region5: #{tpu_custom_call.1} parent=1 // pred_fallthru
      _
    // Predicated region
    $region6: #{tpu_custom_call.1} parent=1 // pred_check
      _
    $region7: #{tpu_custom_call.1} parent=1 // pred_check_branch
      %25 = sbr.rel (0) target = $region9
    $region8: #{tpu_custom_call.1} parent=1 // pred_region
      %s27 = ssub.s32 256, 256
      %28 = vsyncadd [#allocation6], %s27
      %s29 = sshll.u32 [#allocation5], 4
      %s30 = int_to_ptr.vmem [resolvable:$true] %s29
      %35 = dma.hbm_to_vmem [thread:$0]  %s1, 256, %s30, [#allocation6], 128, 128, 8
    $region9: #{tpu_custom_call.1} parent=1 // pred_fallthru
      _
    // Predicated region
    $region10: #{tpu_custom_call.1} parent=1 // pred_check
      _
    $region11: #{tpu_custom_call.1} parent=1 // pred_check_branch
      %37 = sbr.rel (0) target = $region13
    $region12: #{tpu_custom_call.1} parent=1 // pred_region
      %s39 = ssub.s32 14336, 14336
      %40 = vsyncadd [#allocation6], %s39
      %s41 = sshll.u32 [#allocation7], 4
      %s42 = int_to_ptr.vmem [resolvable:$true] %s41
      %47 = dma.hbm_to_vmem [thread:$0]  %s2, 14336, %s42, [#allocation6], 448, 448, 28
    $region13: #{tpu_custom_call.1} parent=1 // pred_fallthru
      _
    // Predicated region
    $region14: #{tpu_custom_call.1} parent=1 // pred_check
      _
    $region15: #{tpu_custom_call.1} parent=1 // pred_check_branch
      %49 = sbr.rel (0) target = $region17
    $region16: #{tpu_custom_call.1} parent=1 // pred_region
      %s51 = ssub.s32 9216, 9216
      %52 = vsyncadd [#allocation9], %s51
      %s53 = sshll.u32 [#allocation8], 4
      %s54 = int_to_ptr.vmem [resolvable:$true] %s53
      %59 = dma.hbm_to_vmem [thread:$0]  %s3, 9216, %s54, [#allocation9], 64, 64, 4
    $region17: #{tpu_custom_call.1} parent=1 // pred_fallthru
      _
    // Predicated region
    $region18: #{tpu_custom_call.1} parent=1 // pred_check
      _
    $region19: #{tpu_custom_call.1} parent=1 // pred_check_branch
      %61 = sbr.rel (0) target = $region21
    $region20: #{tpu_custom_call.1} parent=1 // pred_region
      %s63 = ssub.s32 160, 160
      %64 = vsyncadd [#allocation9], %s63
      %s66 = sshll.u32 [#allocation10], 4
      %s67 = int_to_ptr.vmem [resolvable:$true] %s66
      %69 = dma.hbm_to_vmem [thread:$0]  %s4, 160, %s67, [#allocation9]
    $region21: #{tpu_custom_call.1} parent=1 // pred_fallthru
      _
    // Predicated region
    $region22: #{tpu_custom_call.1} parent=1 // pred_check
      _
    $region23: #{tpu_custom_call.1} parent=1 // pred_check_branch
      %71 = sbr.rel (0) target = $region25
    $region24: #{tpu_custom_call.1} parent=1 // pred_region
      %72 = dma.done [#allocation3], 64
    $region25: #{tpu_custom_call.1} parent=1 // pred_fallthru
      _
    // Predicated region
    $region26: #{tpu_custom_call.1} parent=1 // pred_check
      _
    $region27: #{tpu_custom_call.1} parent=1 // pred_check_branch
      %74 = sbr.rel (0) target = $region29
    $region28: #{tpu_custom_call.1} parent=1 // pred_region
      %75 = dma.done [#allocation6], 256
    $region29: #{tpu_custom_call.1} parent=1 // pred_fallthru
      _
    // Predicated region
    $region30: #{tpu_custom_call.1} parent=1 // pred_check
      _
    $region31: #{tpu_custom_call.1} parent=1 // pred_check_branch
      %77 = sbr.rel (0) target = $region33
    $region32: #{tpu_custom_call.1} parent=1 // pred_region
      %78 = dma.done [#allocation6], 14336
    $region33: #{tpu_custom_call.1} parent=1 // pred_fallthru
      _
    // Predicated region
    $region34: #{tpu_custom_call.1} parent=1 // pred_check
      _
    $region35: #{tpu_custom_call.1} parent=1 // pred_check_branch
      %80 = sbr.rel (0) target = $region37
    $region36: #{tpu_custom_call.1} parent=1 // pred_region
      %81 = dma.done [#allocation9], 9216
    $region37: #{tpu_custom_call.1} parent=1 // pred_fallthru
      _
    // Predicated region
    $region38: #{tpu_custom_call.1} parent=1 // pred_check
      _
    $region39: #{tpu_custom_call.1} parent=1 // pred_check_branch
      %83 = sbr.rel (0) target = $region41
    $region40: #{tpu_custom_call.1} parent=1 // pred_region
      %84 = dma.done [#allocation9], 160
    $region41: #{tpu_custom_call.1} parent=1 // pred_fallthru
      _
    %v86 = vld [vmem:[#allocation2] sm:$0xf]
    %v87 = vld [vmem:[#allocation5] sm:$0xff]
    %v88 = vld [vmem:[#allocation5 + $0x8] sm:$0xff]
    %v91 = vunpack.c.l.b16 %v87
    %v92 = vunpack.c.h.b16 %v87
    %v93 = vunpack.c.l.b16 %v88
    %v94 = vunpack.c.h.b16 %v88
    %v95 = vpack.c.b16 %v93, %v91
    %v96 = vpack.c.b16 %v94, %v92
    %vm99 = vcmask 130048
    %v101 = vsel %vm99, %v86, 0
    %103 = vmatprep.subr.bf16.mxu0 0
    %104 = vmatpush1.bf16.msra.mxu0 0
    %105 = vmatprep.subr.bf16.mxu0 0
    %106 = vmatpush1.bf16.msra.mxu0 0
    %107 = vmatprep.subr.bf16.mxu0 0
    %108 = vmatpush1.bf16.msra.mxu0 0
    %109 = vmatprep.subr.bf16.mxu0 0
    %110 = vmatpush1.bf16.msra.mxu0 0
    %111 = vmatprep.subr.bf16.mxu0 0
    %112 = vmatpush1.bf16.msra.mxu0 0
    %113 = vmatprep.subr.bf16.mxu0 0
    %114 = vmatpush1.bf16.msra.mxu0 0
    %115 = vmatprep.subr.bf16.mxu0 0
    %116 = vmatpush1.bf16.msra.mxu0 0
    %117 = vmatprep.subr.bf16.mxu0 %v96
    %118 = vmatpush1.bf16.msra.mxu0 %v95
    %119 = vmatprep.subr.bf16.mxu0 0
    %120 = vmatpush2.bf16.msra.mxu0 0
    %121 = vmatprep.subr.bf16.mxu0 0
    %122 = vmatpush2.bf16.msra.mxu0 0
    %123 = vmatprep.subr.bf16.mxu0 0
    %124 = vmatpush2.bf16.msra.mxu0 0
    %125 = vmatprep.subr.bf16.mxu0 0
    %126 = vmatpush2.bf16.msra.mxu0 0
    %127 = vmatprep.subr.bf16.mxu0 0
    %128 = vmatpush2.bf16.msra.mxu0 0
    %129 = vmatprep.subr.bf16.mxu0 0
    %130 = vmatpush2.bf16.msra.mxu0 0
    %131 = vmatprep.subr.bf16.mxu0 0
    %132 = vmatpush2.bf16.msra.mxu0 0
    %133 = vmatprep.subr.bf16.mxu0 0
    %134 = vmatpush2.bf16.msra.mxu0 0
    %135 = vmatprep.mubr.bf16.mxu0 0
    %136 = vmatmul.mubr.bf16.gmra.mxu0 %v101
    %v137 = vpop.f32.mrf.mxu0
    %v138 = vadd.f32 0.0, %v137
    %v139 = vpop.f32.mrf.mxu0
    %v140 = vadd.f32 0.0, %v139
    %v141 = vpop.f32.mrf.mxu0
    %v142 = vpop.f32.mrf.mxu0
    %143 = vdwg.mxu0
    %v144 = vmax.f32 %v138, 0.0
    %v145 = vmax.f32 %v140, 0.0
    %v146 = vpack.c.bf16 %v144, %v144
    %v147 = vpack.c.bf16 %v145, %v145
    %v148 = vld [vmem:[#allocation7] sm:$0xff]
    %v149 = vld [vmem:[#allocation7 + $0x8] sm:$0xff]
    %v150 = vld [vmem:[#allocation7 + $0x10] sm:$0xff]
    %v151 = vld [vmem:[#allocation7 + $0x18] sm:$0xf]
    %v152 = vld [vmem:[#allocation7 + $0x1c] sm:$0xff]
    %v153 = vld [vmem:[#allocation7 + $0x24] sm:$0xff]
    %v154 = vld [vmem:[#allocation7 + $0x2c] sm:$0xff]
    %v155 = vld [vmem:[#allocation7 + $0x34] sm:$0xf]
    %v156 = vld [vmem:[#allocation7 + $0x38] sm:$0xff]
    %v157 = vld [vmem:[#allocation7 + $0x40] sm:$0xff]
    %v158 = vld [vmem:[#allocation7 + $0x48] sm:$0xff]
    %v159 = vld [vmem:[#allocation7 + $0x50] sm:$0xf]
    %v160 = vld [vmem:[#allocation7 + $0x54] sm:$0xff]
    %v161 = vld [vmem:[#allocation7 + $0x5c] sm:$0xff]
    %v162 = vld [vmem:[#allocation7 + $0x64] sm:$0xff]
    %v163 = vld [vmem:[#allocation7 + $0x6c] sm:$0xf]
    %v164 = vld [vmem:[#allocation7 + $0x70] sm:$0xff]
    %v165 = vld [vmem:[#allocation7 + $0x78] sm:$0xff]
    %v166 = vld [vmem:[#allocation7 + $0x80] sm:$0xff]
    %v167 = vld [vmem:[#allocation7 + $0x88] sm:$0xf]
    %v168 = vld [vmem:[#allocation7 + $0x8c] sm:$0xff]
    %v169 = vld [vmem:[#allocation7 + $0x94] sm:$0xff]
    %v170 = vld [vmem:[#allocation7 + $0x9c] sm:$0xff]
    %v171 = vld [vmem:[#allocation7 + $0xa4] sm:$0xf]
    %v172 = vld [vmem:[#allocation7 + $0xa8] sm:$0xff]
    %v173 = vld [vmem:[#allocation7 + $0xb0] sm:$0xff]
    %v174 = vld [vmem:[#allocation7 + $0xb8] sm:$0xff]
    %v175 = vld [vmem:[#allocation7 + $0xc0] sm:$0xf]
    %v176 = vld [vmem:[#allocation7 + $0xc4] sm:$0xff]
    %v177 = vld [vmem:[#allocation7 + $0xcc] sm:$0xff]
    %v178 = vld [vmem:[#allocation7 + $0xd4] sm:$0xff]
    %v179 = vld [vmem:[#allocation7 + $0xdc] sm:$0xf]
    %v180 = vld [vmem:[#allocation7 + $0xe0] sm:$0xff]
    %v181 = vld [vmem:[#allocation7 + $0xe8] sm:$0xff]
    %v182 = vld [vmem:[#allocation7 + $0xf0] sm:$0xff]
    %v183 = vld [vmem:[#allocation7 + $0xf8] sm:$0xf]
    %v184 = vld [vmem:[#allocation7 + $0xfc] sm:$0xff]
    %v185 = vld [vmem:[#allocation7 + $0x104] sm:$0xff]
    %v186 = vld [vmem:[#allocation7 + $0x10c] sm:$0xff]
    %v187 = vld [vmem:[#allocation7 + $0x114] sm:$0xf]
    %v188 = vld [vmem:[#allocation7 + $0x118] sm:$0xff]
    %v189 = vld [vmem:[#allocation7 + $0x120] sm:$0xff]
    %v190 = vld [vmem:[#allocation7 + $0x128] sm:$0xff]
    %v191 = vld [vmem:[#allocation7 + $0x130] sm:$0xf]
    %v192 = vld [vmem:[#allocation7 + $0x134] sm:$0xff]
    %v193 = vld [vmem:[#allocation7 + $0x13c] sm:$0xff]
    %v194 = vld [vmem:[#allocation7 + $0x144] sm:$0xff]
    %v195 = vld [vmem:[#allocation7 + $0x14c] sm:$0xf]
    %v196 = vld [vmem:[#allocation7 + $0x150] sm:$0xff]
    %v197 = vld [vmem:[#allocation7 + $0x158] sm:$0xff]
    %v198 = vld [vmem:[#allocation7 + $0x160] sm:$0xff]
    %v199 = vld [vmem:[#allocation7 + $0x168] sm:$0xf]
    %v200 = vld [vmem:[#allocation7 + $0x16c] sm:$0xff]
    %v201 = vld [vmem:[#allocation7 + $0x174] sm:$0xff]
    %v202 = vld [vmem:[#allocation7 + $0x17c] sm:$0xff]
    %v203 = vld [vmem:[#allocation7 + $0x184] sm:$0xf]
    %v204 = vld [vmem:[#allocation7 + $0x188] sm:$0xff]
    %v205 = vld [vmem:[#allocation7 + $0x190] sm:$0xff]
    %v206 = vld [vmem:[#allocation7 + $0x198] sm:$0xff]
    %v207 = vld [vmem:[#allocation7 + $0x1a0] sm:$0xf]
    %v208 = vld [vmem:[#allocation7 + $0x1a4] sm:$0xff]
    %v209 = vld [vmem:[#allocation7 + $0x1ac] sm:$0xff]
    %v210 = vld [vmem:[#allocation7 + $0x1b4] sm:$0xff]
    %v211 = vld [vmem:[#allocation7 + $0x1bc] sm:$0xf]
    %v212 = vld [vmem:[#allocation7 + $0x1c0] sm:$0xff]
    %v213 = vld [vmem:[#allocation7 + $0x1c8] sm:$0xff]
    %v214 = vld [vmem:[#allocation7 + $0x1d0] sm:$0xff]
    %v215 = vld [vmem:[#allocation7 + $0x1d8] sm:$0xf]
    %v216 = vld [vmem:[#allocation7 + $0x1dc] sm:$0xff]
    %v217 = vld [vmem:[#allocation7 + $0x1e4] sm:$0xff]
    %v218 = vld [vmem:[#allocation7 + $0x1ec] sm:$0xff]
    %v219 = vld [vmem:[#allocation7 + $0x1f4] sm:$0xf]
    %v220 = vld [vmem:[#allocation7 + $0x1f8] sm:$0xff]
    %v221 = vld [vmem:[#allocation7 + $0x200] sm:$0xff]
    %v222 = vld [vmem:[#allocation7 + $0x208] sm:$0xff]
    %v223 = vld [vmem:[#allocation7 + $0x210] sm:$0xf]
    %v224 = vld [vmem:[#allocation7 + $0x214] sm:$0xff]
    %v225 = vld [vmem:[#allocation7 + $0x21c] sm:$0xff]
    %v226 = vld [vmem:[#allocation7 + $0x224] sm:$0xff]
    %v227 = vld [vmem:[#allocation7 + $0x22c] sm:$0xf]
    %v228 = vld [vmem:[#allocation7 + $0x230] sm:$0xff]
    %v229 = vld [vmem:[#allocation7 + $0x238] sm:$0xff]
    %v230 = vld [vmem:[#allocation7 + $0x240] sm:$0xff]
    %v231 = vld [vmem:[#allocation7 + $0x248] sm:$0xf]
    %v232 = vld [vmem:[#allocation7 + $0x24c] sm:$0xff]
    %v233 = vld [vmem:[#allocation7 + $0x254] sm:$0xff]
    %v234 = vld [vmem:[#allocation7 + $0x25c] sm:$0xff]
    %v235 = vld [vmem:[#allocation7 + $0x264] sm:$0xf]
    %v236 = vld [vmem:[#allocation7 + $0x268] sm:$0xff]
    %v237 = vld [vmem:[#allocation7 + $0x270] sm:$0xff]
    %v238 = vld [vmem:[#allocation7 + $0x278] sm:$0xff]
    %v239 = vld [vmem:[#allocation7 + $0x280] sm:$0xf]
    %v240 = vld [vmem:[#allocation7 + $0x284] sm:$0xff]
    %v241 = vld [vmem:[#allocation7 + $0x28c] sm:$0xff]
    %v242 = vld [vmem:[#allocation7 + $0x294] sm:$0xff]
    %v243 = vld [vmem:[#allocation7 + $0x29c] sm:$0xf]
    %v244 = vld [vmem:[#allocation7 + $0x2a0] sm:$0xff]
    %v245 = vld [vmem:[#allocation7 + $0x2a8] sm:$0xff]
    %v246 = vld [vmem:[#allocation7 + $0x2b0] sm:$0xff]
    %v247 = vld [vmem:[#allocation7 + $0x2b8] sm:$0xf]
    %v248 = vld [vmem:[#allocation7 + $0x2bc] sm:$0xff]
    %v249 = vld [vmem:[#allocation7 + $0x2c4] sm:$0xff]
    %v250 = vld [vmem:[#allocation7 + $0x2cc] sm:$0xff]
    %v251 = vld [vmem:[#allocation7 + $0x2d4] sm:$0xf]
    %v252 = vld [vmem:[#allocation7 + $0x2d8] sm:$0xff]
    %v253 = vld [vmem:[#allocation7 + $0x2e0] sm:$0xff]
    %v254 = vld [vmem:[#allocation7 + $0x2e8] sm:$0xff]
    %v255 = vld [vmem:[#allocation7 + $0x2f0] sm:$0xf]
    %v256 = vld [vmem:[#allocation7 + $0x2f4] sm:$0xff]
    %v257 = vld [vmem:[#allocation7 + $0x2fc] sm:$0xff]
    %v258 = vld [vmem:[#allocation7 + $0x304] sm:$0xff]
    %v259 = vld [vmem:[#allocation7 + $0x30c] sm:$0xf]
    %v260 = vld [vmem:[#allocation7 + $0x310] sm:$0xff]
    %v261 = vld [vmem:[#allocation7 + $0x318] sm:$0xff]
    %v262 = vld [vmem:[#allocation7 + $0x320] sm:$0xff]
    %v263 = vld [vmem:[#allocation7 + $0x328] sm:$0xf]
    %v264 = vld [vmem:[#allocation7 + $0x32c] sm:$0xff]
    %v265 = vld [vmem:[#allocation7 + $0x334] sm:$0xff]
    %v266 = vld [vmem:[#allocation7 + $0x33c] sm:$0xff]
    %v267 = vld [vmem:[#allocation7 + $0x344] sm:$0xf]
    %v268 = vld [vmem:[#allocation7 + $0x348] sm:$0xff]
    %v269 = vld [vmem:[#allocation7 + $0x350] sm:$0xff]
    %v270 = vld [vmem:[#allocation7 + $0x358] sm:$0xff]
    %v271 = vld [vmem:[#allocation7 + $0x360] sm:$0xf]
    %v272 = vld [vmem:[#allocation7 + $0x364] sm:$0xff]
    %v273 = vld [vmem:[#allocation7 + $0x36c] sm:$0xff]
    %v274 = vld [vmem:[#allocation7 + $0x374] sm:$0xff]
    %v275 = vld [vmem:[#allocation7 + $0x37c] sm:$0xf]
    %v404 = vunpack.c.l.b16 %v148
    %v405 = vunpack.c.h.b16 %v148
    %v406 = vunpack.c.l.b16 %v149
    %v407 = vunpack.c.h.b16 %v149
    %v408 = vunpack.c.l.b16 %v150
    %v409 = vunpack.c.h.b16 %v150
    %v410 = vunpack.c.l.b16 %v151
    %v411 = vunpack.c.l.b16 %v152
    %v412 = vunpack.c.h.b16 %v152
    %v413 = vunpack.c.l.b16 %v153
    %v414 = vunpack.c.h.b16 %v153
    %v415 = vunpack.c.l.b16 %v154
    %v416 = vunpack.c.h.b16 %v154
    %v417 = vunpack.c.l.b16 %v155
    %v418 = vunpack.c.l.b16 %v156
    %v419 = vunpack.c.h.b16 %v156
    %v420 = vunpack.c.l.b16 %v157
    %v421 = vunpack.c.h.b16 %v157
    %v422 = vunpack.c.l.b16 %v158
    %v423 = vunpack.c.h.b16 %v158
    %v424 = vunpack.c.l.b16 %v159
    %v425 = vunpack.c.l.b16 %v160
    %v426 = vunpack.c.h.b16 %v160
    %v427 = vunpack.c.l.b16 %v161
    %v428 = vunpack.c.h.b16 %v161
    %v429 = vunpack.c.l.b16 %v162
    %v430 = vunpack.c.h.b16 %v162
    %v431 = vunpack.c.l.b16 %v163
    %v432 = vunpack.c.l.b16 %v164
    %v433 = vunpack.c.h.b16 %v164
    %v434 = vunpack.c.l.b16 %v165
    %v435 = vunpack.c.h.b16 %v165
    %v436 = vunpack.c.l.b16 %v166
    %v437 = vunpack.c.h.b16 %v166
    %v438 = vunpack.c.l.b16 %v167
    %v439 = vunpack.c.l.b16 %v168
    %v440 = vunpack.c.h.b16 %v168
    %v441 = vunpack.c.l.b16 %v169
    %v442 = vunpack.c.h.b16 %v169
    %v443 = vunpack.c.l.b16 %v170
    %v444 = vunpack.c.h.b16 %v170
    %v445 = vunpack.c.l.b16 %v171
    %v446 = vunpack.c.l.b16 %v172
    %v447 = vunpack.c.h.b16 %v172
    %v448 = vunpack.c.l.b16 %v173
    %v449 = vunpack.c.h.b16 %v173
    %v450 = vunpack.c.l.b16 %v174
    %v451 = vunpack.c.h.b16 %v174
    %v452 = vunpack.c.l.b16 %v175
    %v453 = vunpack.c.l.b16 %v176
    %v454 = vunpack.c.h.b16 %v176
    %v455 = vunpack.c.l.b16 %v177
    %v456 = vunpack.c.h.b16 %v177
    %v457 = vunpack.c.l.b16 %v178
    %v458 = vunpack.c.h.b16 %v178
    %v459 = vunpack.c.l.b16 %v179
    %v460 = vunpack.c.l.b16 %v180
    %v461 = vunpack.c.h.b16 %v180
    %v462 = vunpack.c.l.b16 %v181
    %v463 = vunpack.c.h.b16 %v181
    %v464 = vunpack.c.l.b16 %v182
    %v465 = vunpack.c.h.b16 %v182
    %v466 = vunpack.c.l.b16 %v183
    %v467 = vunpack.c.l.b16 %v184
    %v468 = vunpack.c.h.b16 %v184
    %v469 = vunpack.c.l.b16 %v185
    %v470 = vunpack.c.h.b16 %v185
    %v471 = vunpack.c.l.b16 %v186
    %v472 = vunpack.c.h.b16 %v186
    %v473 = vunpack.c.l.b16 %v187
    %v474 = vunpack.c.l.b16 %v188
    %v475 = vunpack.c.h.b16 %v188
    %v476 = vunpack.c.l.b16 %v189
    %v477 = vunpack.c.h.b16 %v189
    %v478 = vunpack.c.l.b16 %v190
    %v479 = vunpack.c.h.b16 %v190
    %v480 = vunpack.c.l.b16 %v191
    %v481 = vunpack.c.l.b16 %v192
    %v482 = vunpack.c.h.b16 %v192
    %v483 = vunpack.c.l.b16 %v193
    %v484 = vunpack.c.h.b16 %v193
    %v485 = vunpack.c.l.b16 %v194
    %v486 = vunpack.c.h.b16 %v194
    %v487 = vunpack.c.l.b16 %v195
    %v488 = vunpack.c.l.b16 %v196
    %v489 = vunpack.c.h.b16 %v196
    %v490 = vunpack.c.l.b16 %v197
    %v491 = vunpack.c.h.b16 %v197
    %v492 = vunpack.c.l.b16 %v198
    %v493 = vunpack.c.h.b16 %v198
    %v494 = vunpack.c.l.b16 %v199
    %v495 = vunpack.c.l.b16 %v200
    %v496 = vunpack.c.h.b16 %v200
    %v497 = vunpack.c.l.b16 %v201
    %v498 = vunpack.c.h.b16 %v201
    %v499 = vunpack.c.l.b16 %v202
    %v500 = vunpack.c.h.b16 %v202
    %v501 = vunpack.c.l.b16 %v203
    %v502 = vunpack.c.l.b16 %v204
    %v503 = vunpack.c.h.b16 %v204
    %v504 = vunpack.c.l.b16 %v205
    %v505 = vunpack.c.h.b16 %v205
    %v506 = vunpack.c.l.b16 %v206
    %v507 = vunpack.c.h.b16 %v206
    %v508 = vunpack.c.l.b16 %v207
    %v509 = vunpack.c.l.b16 %v208
    %v510 = vunpack.c.h.b16 %v208
    %v511 = vunpack.c.l.b16 %v209
    %v512 = vunpack.c.h.b16 %v209
    %v513 = vunpack.c.l.b16 %v210
    %v514 = vunpack.c.h.b16 %v210
    %v515 = vunpack.c.l.b16 %v211
    %v516 = vunpack.c.l.b16 %v212
    %v517 = vunpack.c.h.b16 %v212
    %v518 = vunpack.c.l.b16 %v213
    %v519 = vunpack.c.h.b16 %v213
    %v520 = vunpack.c.l.b16 %v214
    %v521 = vunpack.c.h.b16 %v214
    %v522 = vunpack.c.l.b16 %v215
    %v523 = vunpack.c.l.b16 %v216
    %v524 = vunpack.c.h.b16 %v216
    %v525 = vunpack.c.l.b16 %v217
    %v526 = vunpack.c.h.b16 %v217
    %v527 = vunpack.c.l.b16 %v218
    %v528 = vunpack.c.h.b16 %v218
    %v529 = vunpack.c.l.b16 %v219
    %v530 = vunpack.c.l.b16 %v220
    %v531 = vunpack.c.h.b16 %v220
    %v532 = vunpack.c.l.b16 %v221
    %v533 = vunpack.c.h.b16 %v221
    %v534 = vunpack.c.l.b16 %v222
    %v535 = vunpack.c.h.b16 %v222
    %v536 = vunpack.c.l.b16 %v223
    %v537 = vunpack.c.l.b16 %v224
    %v538 = vunpack.c.h.b16 %v224
    %v539 = vunpack.c.l.b16 %v225
    %v540 = vunpack.c.h.b16 %v225
    %v541 = vunpack.c.l.b16 %v226
    %v542 = vunpack.c.h.b16 %v226
    %v543 = vunpack.c.l.b16 %v227
    %v544 = vunpack.c.l.b16 %v228
    %v545 = vunpack.c.h.b16 %v228
    %v546 = vunpack.c.l.b16 %v229
    %v547 = vunpack.c.h.b16 %v229
    %v548 = vunpack.c.l.b16 %v230
    %v549 = vunpack.c.h.b16 %v230
    %v550 = vunpack.c.l.b16 %v231
    %v551 = vunpack.c.l.b16 %v232
    %v552 = vunpack.c.h.b16 %v232
    %v553 = vunpack.c.l.b16 %v233
    %v554 = vunpack.c.h.b16 %v233
    %v555 = vunpack.c.l.b16 %v234
    %v556 = vunpack.c.h.b16 %v234
    %v557 = vunpack.c.l.b16 %v235
    %v558 = vunpack.c.l.b16 %v236
    %v559 = vunpack.c.h.b16 %v236
    %v560 = vunpack.c.l.b16 %v237
    %v561 = vunpack.c.h.b16 %v237
    %v562 = vunpack.c.l.b16 %v238
    %v563 = vunpack.c.h.b16 %v238
    %v564 = vunpack.c.l.b16 %v239
    %v565 = vunpack.c.l.b16 %v240
    %v566 = vunpack.c.h.b16 %v240
    %v567 = vunpack.c.l.b16 %v241
    %v568 = vunpack.c.h.b16 %v241
    %v569 = vunpack.c.l.b16 %v242
    %v570 = vunpack.c.h.b16 %v242
    %v571 = vunpack.c.l.b16 %v243
    %v572 = vunpack.c.l.b16 %v244
    %v573 = vunpack.c.h.b16 %v244
    %v574 = vunpack.c.l.b16 %v245
    %v575 = vunpack.c.h.b16 %v245
    %v576 = vunpack.c.l.b16 %v246
    %v577 = vunpack.c.h.b16 %v246
    %v578 = vunpack.c.l.b16 %v247
    %v579 = vunpack.c.l.b16 %v248
    %v580 = vunpack.c.h.b16 %v248
    %v581 = vunpack.c.l.b16 %v249
    %v582 = vunpack.c.h.b16 %v249
    %v583 = vunpack.c.l.b16 %v250
    %v584 = vunpack.c.h.b16 %v250
    %v585 = vunpack.c.l.b16 %v251
    %v586 = vunpack.c.l.b16 %v252
    %v587 = vunpack.c.h.b16 %v252
    %v588 = vunpack.c.l.b16 %v253
    %v589 = vunpack.c.h.b16 %v253
    %v590 = vunpack.c.l.b16 %v254
    %v591 = vunpack.c.h.b16 %v254
    %v592 = vunpack.c.l.b16 %v255
    %v593 = vunpack.c.l.b16 %v256
    %v594 = vunpack.c.h.b16 %v256
    %v595 = vunpack.c.l.b16 %v257
    %v596 = vunpack.c.h.b16 %v257
    %v597 = vunpack.c.l.b16 %v258
    %v598 = vunpack.c.h.b16 %v258
    %v599 = vunpack.c.l.b16 %v259
    %v600 = vunpack.c.l.b16 %v260
    %v601 = vunpack.c.h.b16 %v260
    %v602 = vunpack.c.l.b16 %v261
    %v603 = vunpack.c.h.b16 %v261
    %v604 = vunpack.c.l.b16 %v262
    %v605 = vunpack.c.h.b16 %v262
    %v606 = vunpack.c.l.b16 %v263
    %v607 = vunpack.c.l.b16 %v264
    %v608 = vunpack.c.h.b16 %v264
    %v609 = vunpack.c.l.b16 %v265
    %v610 = vunpack.c.h.b16 %v265
    %v611 = vunpack.c.l.b16 %v266
    %v612 = vunpack.c.h.b16 %v266
    %v613 = vunpack.c.l.b16 %v267
    %v614 = vunpack.c.l.b16 %v268
    %v615 = vunpack.c.h.b16 %v268
    %v616 = vunpack.c.l.b16 %v269
    %v617 = vunpack.c.h.b16 %v269
    %v618 = vunpack.c.l.b16 %v270
    %v619 = vunpack.c.h.b16 %v270
    %v620 = vunpack.c.l.b16 %v271
    %v621 = vunpack.c.l.b16 %v272
    %v622 = vunpack.c.h.b16 %v272
    %v623 = vunpack.c.l.b16 %v273
    %v624 = vunpack.c.h.b16 %v273
    %v625 = vunpack.c.l.b16 %v274
    %v626 = vunpack.c.h.b16 %v274
    %v627 = vunpack.c.l.b16 %v275
    %v628 = vpack.c.b16 %v411, %v404
    %v629 = vpack.c.b16 %v412, %v405
    %v630 = vpack.c.b16 %v413, %v406
    %v631 = vpack.c.b16 %v414, %v407
    %v632 = vpack.c.b16 %v415, %v408
    %v633 = vpack.c.b16 %v416, %v409
    %v634 = vpack.c.b16 %v417, %v410
    %v635 = vpack.c.b16 %v425, %v418
    %v636 = vpack.c.b16 %v426, %v419
    %v637 = vpack.c.b16 %v427, %v420
    %v638 = vpack.c.b16 %v428, %v421
    %v639 = vpack.c.b16 %v429, %v422
    %v640 = vpack.c.b16 %v430, %v423
    %v641 = vpack.c.b16 %v431, %v424
    %v642 = vpack.c.b16 %v439, %v432
    %v643 = vpack.c.b16 %v440, %v433
    %v644 = vpack.c.b16 %v441, %v434
    %v645 = vpack.c.b16 %v442, %v435
    %v646 = vpack.c.b16 %v443, %v436
    %v647 = vpack.c.b16 %v444, %v437
    %v648 = vpack.c.b16 %v445, %v438
    %v649 = vpack.c.b16 %v453, %v446
    %v650 = vpack.c.b16 %v454, %v447
    %v651 = vpack.c.b16 %v455, %v448
    %v652 = vpack.c.b16 %v456, %v449
    %v653 = vpack.c.b16 %v457, %v450
    %v654 = vpack.c.b16 %v458, %v451
    %v655 = vpack.c.b16 %v459, %v452
    %v656 = vpack.c.b16 %v467, %v460
    %v657 = vpack.c.b16 %v468, %v461
    %v658 = vpack.c.b16 %v469, %v462
    %v659 = vpack.c.b16 %v470, %v463
    %v660 = vpack.c.b16 %v471, %v464
    %v661 = vpack.c.b16 %v472, %v465
    %v662 = vpack.c.b16 %v473, %v466
    %v663 = vpack.c.b16 %v481, %v474
    %v664 = vpack.c.b16 %v482, %v475
    %v665 = vpack.c.b16 %v483, %v476
    %v666 = vpack.c.b16 %v484, %v477
    %v667 = vpack.c.b16 %v485, %v478
    %v668 = vpack.c.b16 %v486, %v479
    %v669 = vpack.c.b16 %v487, %v480
    %v670 = vpack.c.b16 %v495, %v488
    %v671 = vpack.c.b16 %v496, %v489
    %v672 = vpack.c.b16 %v497, %v490
    %v673 = vpack.c.b16 %v498, %v491
    %v674 = vpack.c.b16 %v499, %v492
    %v675 = vpack.c.b16 %v500, %v493
    %v676 = vpack.c.b16 %v501, %v494
    %v677 = vpack.c.b16 %v509, %v502
    %v678 = vpack.c.b16 %v510, %v503
    %v679 = vpack.c.b16 %v511, %v504
    %v680 = vpack.c.b16 %v512, %v505
    %v681 = vpack.c.b16 %v513, %v506
    %v682 = vpack.c.b16 %v514, %v507
    %v683 = vpack.c.b16 %v515, %v508
    %v684 = vpack.c.b16 %v523, %v516
    %v685 = vpack.c.b16 %v524, %v517
    %v686 = vpack.c.b16 %v525, %v518
    %v687 = vpack.c.b16 %v526, %v519
    %v688 = vpack.c.b16 %v527, %v520
    %v689 = vpack.c.b16 %v528, %v521
    %v690 = vpack.c.b16 %v529, %v522
    %v691 = vpack.c.b16 %v537, %v530
    %v692 = vpack.c.b16 %v538, %v531
    %v693 = vpack.c.b16 %v539, %v532
    %v694 = vpack.c.b16 %v540, %v533
    %v695 = vpack.c.b16 %v541, %v534
    %v696 = vpack.c.b16 %v542, %v535
    %v697 = vpack.c.b16 %v543, %v536
    %v698 = vpack.c.b16 %v551, %v544
    %v699 = vpack.c.b16 %v552, %v545
    %v700 = vpack.c.b16 %v553, %v546
    %v701 = vpack.c.b16 %v554, %v547
    %v702 = vpack.c.b16 %v555, %v548
    %v703 = vpack.c.b16 %v556, %v549
    %v704 = vpack.c.b16 %v557, %v550
    %v705 = vpack.c.b16 %v565, %v558
    %v706 = vpack.c.b16 %v566, %v559
    %v707 = vpack.c.b16 %v567, %v560
    %v708 = vpack.c.b16 %v568, %v561
    %v709 = vpack.c.b16 %v569, %v562
    %v710 = vpack.c.b16 %v570, %v563
    %v711 = vpack.c.b16 %v571, %v564
    %v712 = vpack.c.b16 %v579, %v572
    %v713 = vpack.c.b16 %v580, %v573
    %v714 = vpack.c.b16 %v581, %v574
    %v715 = vpack.c.b16 %v582, %v575
    %v716 = vpack.c.b16 %v583, %v576
    %v717 = vpack.c.b16 %v584, %v577
    %v718 = vpack.c.b16 %v585, %v578
    %v719 = vpack.c.b16 %v593, %v586
    %v720 = vpack.c.b16 %v594, %v587
    %v721 = vpack.c.b16 %v595, %v588
    %v722 = vpack.c.b16 %v596, %v589
    %v723 = vpack.c.b16 %v597, %v590
    %v724 = vpack.c.b16 %v598, %v591
    %v725 = vpack.c.b16 %v599, %v592
    %v726 = vpack.c.b16 %v607, %v600
    %v727 = vpack.c.b16 %v608, %v601
    %v728 = vpack.c.b16 %v609, %v602
    %v729 = vpack.c.b16 %v610, %v603
    %v730 = vpack.c.b16 %v611, %v604
    %v731 = vpack.c.b16 %v612, %v605
    %v732 = vpack.c.b16 %v613, %v606
    %v733 = vpack.c.b16 %v621, %v614
    %v734 = vpack.c.b16 %v622, %v615
    %v735 = vpack.c.b16 %v623, %v616
    %v736 = vpack.c.b16 %v624, %v617
    %v737 = vpack.c.b16 %v625, %v618
    %v738 = vpack.c.b16 %v626, %v619
    %v739 = vpack.c.b16 %v627, %v620
    %852 = vmatprep.subr.bf16.mxu0 %v678
    %853 = vmatpush1.bf16.msra.mxu0 %v677
    %854 = vmatprep.subr.bf16.mxu0 %v671
    %855 = vmatpush1.bf16.msra.mxu0 %v670
    %856 = vmatprep.subr.bf16.mxu0 %v664
    %857 = vmatpush1.bf16.msra.mxu0 %v663
    %858 = vmatprep.subr.bf16.mxu0 %v657
    %859 = vmatpush1.bf16.msra.mxu0 %v656
    %860 = vmatprep.subr.bf16.mxu0 %v650
    %861 = vmatpush1.bf16.msra.mxu0 %v649
    %862 = vmatprep.subr.bf16.mxu0 %v643
    %863 = vmatpush1.bf16.msra.mxu0 %v642
    %864 = vmatprep.subr.bf16.mxu0 %v636
    %865 = vmatpush1.bf16.msra.mxu0 %v635
    %866 = vmatprep.subr.bf16.mxu0 %v629
    %867 = vmatpush1.bf16.msra.mxu0 %v628
    %868 = vmatprep.subr.bf16.mxu0 %v734
    %869 = vmatpush2.bf16.msra.mxu0 %v733
    %870 = vmatprep.subr.bf16.mxu0 %v727
    %871 = vmatpush2.bf16.msra.mxu0 %v726
    %872 = vmatprep.subr.bf16.mxu0 %v720
    %873 = vmatpush2.bf16.msra.mxu0 %v719
    %874 = vmatprep.subr.bf16.mxu0 %v713
    %875 = vmatpush2.bf16.msra.mxu0 %v712
    %876 = vmatprep.subr.bf16.mxu0 %v706
    %877 = vmatpush2.bf16.msra.mxu0 %v705
    %878 = vmatprep.subr.bf16.mxu0 %v699
    %879 = vmatpush2.bf16.msra.mxu0 %v698
    %880 = vmatprep.subr.bf16.mxu0 %v692
    %881 = vmatpush2.bf16.msra.mxu0 %v691
    %882 = vmatprep.subr.bf16.mxu0 %v685
    %883 = vmatpush2.bf16.msra.mxu0 %v684
    %884 = vmatprep.mubr.bf16.mxu0 %v147
    %885 = vmatmul.mubr.bf16.gmra.mxu0 %v146
    %v886 = vpop.f32.mrf.mxu0
    %v887 = vadd.f32 0.0, %v886
    %v888 = vpop.f32.mrf.mxu0
    %v889 = vadd.f32 0.0, %v888
    %v890 = vpop.f32.mrf.mxu0
    %v891 = vpop.f32.mrf.mxu0
    %892 = vdwg.mxu0
    %893 = vmatprep.subr.bf16.mxu0 %v680
    %894 = vmatpush1.bf16.msra.mxu0 %v679
    %895 = vmatprep.subr.bf16.mxu0 %v673
    %896 = vmatpush1.bf16.msra.mxu0 %v672
    %897 = vmatprep.subr.bf16.mxu0 %v666
    %898 = vmatpush1.bf16.msra.mxu0 %v665
    %899 = vmatprep.subr.bf16.mxu0 %v659
    %900 = vmatpush1.bf16.msra.mxu0 %v658
    %901 = vmatprep.subr.bf16.mxu0 %v652
    %902 = vmatpush1.bf16.msra.mxu0 %v651
    %903 = vmatprep.subr.bf16.mxu0 %v645
    %904 = vmatpush1.bf16.msra.mxu0 %v644
    %905 = vmatprep.subr.bf16.mxu0 %v638
    %906 = vmatpush1.bf16.msra.mxu0 %v637
    %907 = vmatprep.subr.bf16.mxu0 %v631
    %908 = vmatpush1.bf16.msra.mxu0 %v630
    %909 = vmatprep.subr.bf16.mxu0 %v736
    %910 = vmatpush2.bf16.msra.mxu0 %v735
    %911 = vmatprep.subr.bf16.mxu0 %v729
    %912 = vmatpush2.bf16.msra.mxu0 %v728
    %913 = vmatprep.subr.bf16.mxu0 %v722
    %914 = vmatpush2.bf16.msra.mxu0 %v721
    %915 = vmatprep.subr.bf16.mxu0 %v715
    %916 = vmatpush2.bf16.msra.mxu0 %v714
    %917 = vmatprep.subr.bf16.mxu0 %v708
    %918 = vmatpush2.bf16.msra.mxu0 %v707
    %919 = vmatprep.subr.bf16.mxu0 %v701
    %920 = vmatpush2.bf16.msra.mxu0 %v700
    %921 = vmatprep.subr.bf16.mxu0 %v694
    %922 = vmatpush2.bf16.msra.mxu0 %v693
    %923 = vmatprep.subr.bf16.mxu0 %v687
    %924 = vmatpush2.bf16.msra.mxu0 %v686
    %925 = vmatprep.mubr.bf16.mxu0 %v147
    %926 = vmatmul.mubr.bf16.gmra.mxu0 %v146
    %v927 = vpop.f32.mrf.mxu0
    %v928 = vadd.f32 0.0, %v927
    %v929 = vpop.f32.mrf.mxu0
    %v930 = vadd.f32 0.0, %v929
    %v931 = vpop.f32.mrf.mxu0
    %v932 = vpop.f32.mrf.mxu0
    %933 = vdwg.mxu0
    %934 = vmatprep.subr.bf16.mxu0 %v682
    %935 = vmatpush1.bf16.msra.mxu0 %v681
    %936 = vmatprep.subr.bf16.mxu0 %v675
    %937 = vmatpush1.bf16.msra.mxu0 %v674
    %938 = vmatprep.subr.bf16.mxu0 %v668
    %939 = vmatpush1.bf16.msra.mxu0 %v667
    %940 = vmatprep.subr.bf16.mxu0 %v661
    %941 = vmatpush1.bf16.msra.mxu0 %v660
    %942 = vmatprep.subr.bf16.mxu0 %v654
    %943 = vmatpush1.bf16.msra.mxu0 %v653
    %944 = vmatprep.subr.bf16.mxu0 %v647
    %945 = vmatpush1.bf16.msra.mxu0 %v646
    %946 = vmatprep.subr.bf16.mxu0 %v640
    %947 = vmatpush1.bf16.msra.mxu0 %v639
    %948 = vmatprep.subr.bf16.mxu0 %v633
    %949 = vmatpush1.bf16.msra.mxu0 %v632
    %950 = vmatprep.subr.bf16.mxu0 %v738
    %951 = vmatpush2.bf16.msra.mxu0 %v737
    %952 = vmatprep.subr.bf16.mxu0 %v731
    %953 = vmatpush2.bf16.msra.mxu0 %v730
    %954 = vmatprep.subr.bf16.mxu0 %v724
    %955 = vmatpush2.bf16.msra.mxu0 %v723
    %956 = vmatprep.subr.bf16.mxu0 %v717
    %957 = vmatpush2.bf16.msra.mxu0 %v716
    %958 = vmatprep.subr.bf16.mxu0 %v710
    %959 = vmatpush2.bf16.msra.mxu0 %v709
    %960 = vmatprep.subr.bf16.mxu0 %v703
    %961 = vmatpush2.bf16.msra.mxu0 %v702
    %962 = vmatprep.subr.bf16.mxu0 %v696
    %963 = vmatpush2.bf16.msra.mxu0 %v695
    %964 = vmatprep.subr.bf16.mxu0 %v689
    %965 = vmatpush2.bf16.msra.mxu0 %v688
    %966 = vmatprep.mubr.bf16.mxu0 %v147
    %967 = vmatmul.mubr.bf16.gmra.mxu0 %v146
    %v968 = vpop.f32.mrf.mxu0
    %v969 = vadd.f32 0.0, %v968
    %v970 = vpop.f32.mrf.mxu0
    %v971 = vadd.f32 0.0, %v970
    %v972 = vpop.f32.mrf.mxu0
    %v973 = vpop.f32.mrf.mxu0
    %974 = vdwg.mxu0
    %975 = vmatprep.subr.bf16.mxu0 0
    %976 = vmatpush1.bf16.msra.mxu0 %v683
    %977 = vmatprep.subr.bf16.mxu0 0
    %978 = vmatpush1.bf16.msra.mxu0 %v676
    %979 = vmatprep.subr.bf16.mxu0 0
    %980 = vmatpush1.bf16.msra.mxu0 %v669
    %981 = vmatprep.subr.bf16.mxu0 0
    %982 = vmatpush1.bf16.msra.mxu0 %v662
    %983 = vmatprep.subr.bf16.mxu0 0
    %984 = vmatpush1.bf16.msra.mxu0 %v655
    %985 = vmatprep.subr.bf16.mxu0 0
    %986 = vmatpush1.bf16.msra.mxu0 %v648
    %987 = vmatprep.subr.bf16.mxu0 0
    %988 = vmatpush1.bf16.msra.mxu0 %v641
    %989 = vmatprep.subr.bf16.mxu0 0
    %990 = vmatpush1.bf16.msra.mxu0 %v634
    %991 = vmatprep.subr.bf16.mxu0 0
    %992 = vmatpush2.bf16.msra.mxu0 %v739
    %993 = vmatprep.subr.bf16.mxu0 0
    %994 = vmatpush2.bf16.msra.mxu0 %v732
    %995 = vmatprep.subr.bf16.mxu0 0
    %996 = vmatpush2.bf16.msra.mxu0 %v725
    %997 = vmatprep.subr.bf16.mxu0 0
    %998 = vmatpush2.bf16.msra.mxu0 %v718
    %999 = vmatprep.subr.bf16.mxu0 0
    %1000 = vmatpush2.bf16.msra.mxu0 %v711
    %1001 = vmatprep.subr.bf16.mxu0 0
    %1002 = vmatpush2.bf16.msra.mxu0 %v704
    %1003 = vmatprep.subr.bf16.mxu0 0
    %1004 = vmatpush2.bf16.msra.mxu0 %v697
    %1005 = vmatprep.subr.bf16.mxu0 0
    %1006 = vmatpush2.bf16.msra.mxu0 %v690
    %1007 = vmatprep.mubr.bf16.mxu0 %v147
    %1008 = vmatmul.mubr.bf16.gmra.mxu0 %v146
    %v1009 = vpop.f32.mrf.mxu0
    %v1010 = vadd.f32 0.0, %v1009
    %v1011 = vpop.f32.mrf.mxu0
    %v1012 = vpop.f32.mrf.mxu0
    %v1013 = vpop.f32.mrf.mxu0
    %1014 = vdwg.mxu0
    %v1015 = vpack.c.bf16 %v887, %v887
    %v1016 = vpack.c.bf16 %v889, %v889
    %v1017 = vpack.c.bf16 %v928, %v928
    %v1018 = vpack.c.bf16 %v930, %v930
    %v1019 = vpack.c.bf16 %v969, %v969
    %v1020 = vpack.c.bf16 %v971, %v971
    %v1021 = vpack.c.bf16 %v1010, %v1010
    %v1022 = vld [vmem:[#allocation10] sm:$0x7f]
    %v1024 = vcombine.high %v1022, %v1022
    %v1026 = vunpack.c.l.s4 1966171168
    %v1027 = vunpack.c.0.s8 %v1026
    %v1028 = vlaneseq
    %v1029 = vshrl.u32 %v1028, 7
    %v1030 = vsub.s32 %v1027, %v1029
    %v1031 = vrot.slane %v1022, %v1030
    %v1033 = vunpack.c.l.s4 1966171168
    %v1034 = vunpack.c.0.s8 %v1033
    %v1035 = vlaneseq
    %v1036 = vshrl.u32 %v1035, 7
    %v1037 = vsub.s32 %v1034, %v1036
    %v1038 = vrot.slane %v1024, %v1037
    %v1039 = vcombine.high %v1031, %v1031
    %v1040 = vcombine.high %v1038, %v1038
    %v1042 = vunpack.c.l.s4 1966171168
    %v1043 = vunpack.c.0.s8 %v1042
    %v1044 = vlaneseq
    %v1045 = vshrl.u32 %v1044, 7
    %v1046 = vsub.s32 %v1043, %v1045
    %v1047 = vrot.slane %v1031, %v1046
    %v1049 = vunpack.c.l.s4 1966171168
    %v1050 = vunpack.c.0.s8 %v1049
    %v1051 = vlaneseq
    %v1052 = vshrl.u32 %v1051, 7
    %v1053 = vsub.s32 %v1050, %v1052
    %v1054 = vrot.slane %v1038, %v1053
    %v1056 = vunpack.c.l.s4 1966171168
    %v1057 = vunpack.c.0.s8 %v1056
    %v1058 = vlaneseq
    %v1059 = vshrl.u32 %v1058, 7
    %v1060 = vsub.s32 %v1057, %v1059
    %v1061 = vrot.slane %v1039, %v1060
    %v1063 = vunpack.c.l.s4 1966171168
    %v1064 = vunpack.c.0.s8 %v1063
    %v1065 = vlaneseq
    %v1066 = vshrl.u32 %v1065, 7
    %v1067 = vsub.s32 %v1064, %v1066
    %v1068 = vrot.slane %v1040, %v1067
    %v1069 = vcombine.high %v1047, %v1047
    %v1070 = vcombine.high %v1054, %v1054
    %v1071 = vcombine.high %v1061, %v1061
    %v1073 = vpack.i.b16 %v1047, %v1047
    %v1075 = vlaneseq
    %v1076 = vshrl.u32 %v1075, 7
    %v1077 = vsub.s32 0, %v1076
    %v1078 = vrot.slane %v1073, %v1077
    %v1080 = vpack.i.b16 %v1061, %v1061
    %v1082 = vlaneseq
    %v1083 = vshrl.u32 %v1082, 7
    %v1084 = vsub.s32 0, %v1083
    %v1085 = vrot.slane %v1080, %v1084
    %v1087 = vpack.i.b16 %v1069, %v1069
    %v1089 = vlaneseq
    %v1090 = vshrl.u32 %v1089, 7
    %v1091 = vsub.s32 0, %v1090
    %v1092 = vrot.slane %v1087, %v1091
    %v1094 = vpack.i.b16 %v1071, %v1071
    %v1096 = vlaneseq
    %v1097 = vshrl.u32 %v1096, 7
    %v1098 = vsub.s32 0, %v1097
    %v1099 = vrot.slane %v1094, %v1098
    %v1101 = vpack.i.b16 %v1054, %v1054
    %v1103 = vlaneseq
    %v1104 = vshrl.u32 %v1103, 7
    %v1105 = vsub.s32 0, %v1104
    %v1106 = vrot.slane %v1101, %v1105
    %v1108 = vpack.i.b16 %v1068, %v1068
    %v1110 = vlaneseq
    %v1111 = vshrl.u32 %v1110, 7
    %v1112 = vsub.s32 0, %v1111
    %v1113 = vrot.slane %v1108, %v1112
    %v1115 = vpack.i.b16 %v1070, %v1070
    %v1117 = vlaneseq
    %v1118 = vshrl.u32 %v1117, 7
    %v1119 = vsub.s32 0, %v1118
    %v1120 = vrot.slane %v1115, %v1119
    %v1121 = vadd.bf16 %v1015, %v1078
    %v1122 = vadd.bf16 %v1016, %v1085
    %v1123 = vadd.bf16 %v1017, %v1092
    %v1124 = vadd.bf16 %v1018, %v1099
    %v1125 = vadd.bf16 %v1019, %v1106
    %v1126 = vadd.bf16 %v1020, %v1113
    %v1127 = vadd.bf16 %v1021, %v1120
    %v1128 = vmax.bf16 %v1121, 0
    %v1129 = vmax.bf16 %v1122, 0
    %v1130 = vmax.bf16 %v1123, 0
    %v1131 = vmax.bf16 %v1124, 0
    %v1132 = vmax.bf16 %v1125, 0
    %v1133 = vmax.bf16 %v1126, 0
    %v1134 = vmax.bf16 %v1127, 0
    %v1135 = vld [vmem:[#allocation8] sm:$0xf]
    %v1136 = vld [vmem:[#allocation8 + $0x4] sm:$0xf]
    %v1137 = vld [vmem:[#allocation8 + $0x8] sm:$0xf]
    %v1138 = vld [vmem:[#allocation8 + $0xc] sm:$0xf]
    %v1139 = vld [vmem:[#allocation8 + $0x10] sm:$0xf]
    %v1140 = vld [vmem:[#allocation8 + $0x14] sm:$0xf]
    %v1141 = vld [vmem:[#allocation8 + $0x18] sm:$0xf]
    %v1142 = vld [vmem:[#allocation8 + $0x1c] sm:$0xf]
    %v1143 = vld [vmem:[#allocation8 + $0x20] sm:$0xf]
    %v1144 = vld [vmem:[#allocation8 + $0x24] sm:$0xf]
    %v1145 = vld [vmem:[#allocation8 + $0x28] sm:$0xf]
    %v1146 = vld [vmem:[#allocation8 + $0x2c] sm:$0xf]
    %v1147 = vld [vmem:[#allocation8 + $0x30] sm:$0xf]
    %v1148 = vld [vmem:[#allocation8 + $0x34] sm:$0xf]
    %v1149 = vld [vmem:[#allocation8 + $0x38] sm:$0xf]
    %v1150 = vld [vmem:[#allocation8 + $0x3c] sm:$0xf]
    %v1151 = vld [vmem:[#allocation8 + $0x40] sm:$0xf]
    %v1152 = vld [vmem:[#allocation8 + $0x44] sm:$0xf]
    %v1153 = vld [vmem:[#allocation8 + $0x48] sm:$0xf]
    %v1154 = vld [vmem:[#allocation8 + $0x4c] sm:$0xf]
    %v1155 = vld [vmem:[#allocation8 + $0x50] sm:$0xf]
    %v1156 = vld [vmem:[#allocation8 + $0x54] sm:$0xf]
    %v1157 = vld [vmem:[#allocation8 + $0x58] sm:$0xf]
    %v1158 = vld [vmem:[#allocation8 + $0x5c] sm:$0xf]
    %v1159 = vld [vmem:[#allocation8 + $0x60] sm:$0xf]
    %v1160 = vld [vmem:[#allocation8 + $0x64] sm:$0xf]
    %v1161 = vld [vmem:[#allocation8 + $0x68] sm:$0xf]
    %v1162 = vld [vmem:[#allocation8 + $0x6c] sm:$0xf]
    %v1163 = vld [vmem:[#allocation8 + $0x70] sm:$0xf]
    %v1164 = vld [vmem:[#allocation8 + $0x74] sm:$0xf]
    %v1165 = vld [vmem:[#allocation8 + $0x78] sm:$0xf]
    %v1166 = vld [vmem:[#allocation8 + $0x7c] sm:$0xf]
    %v1167 = vld [vmem:[#allocation8 + $0x80] sm:$0xf]
    %v1168 = vld [vmem:[#allocation8 + $0x84] sm:$0xf]
    %v1169 = vld [vmem:[#allocation8 + $0x88] sm:$0xf]
    %v1170 = vld [vmem:[#allocation8 + $0x8c] sm:$0xf]
    %v1171 = vld [vmem:[#allocation8 + $0x90] sm:$0xf]
    %v1172 = vld [vmem:[#allocation8 + $0x94] sm:$0xf]
    %v1173 = vld [vmem:[#allocation8 + $0x98] sm:$0xf]
    %v1174 = vld [vmem:[#allocation8 + $0x9c] sm:$0xf]
    %v1175 = vld [vmem:[#allocation8 + $0xa0] sm:$0xf]
    %v1176 = vld [vmem:[#allocation8 + $0xa4] sm:$0xf]
    %v1177 = vld [vmem:[#allocation8 + $0xa8] sm:$0xf]
    %v1178 = vld [vmem:[#allocation8 + $0xac] sm:$0xf]
    %v1179 = vld [vmem:[#allocation8 + $0xb0] sm:$0xf]
    %v1180 = vld [vmem:[#allocation8 + $0xb4] sm:$0xf]
    %v1181 = vld [vmem:[#allocation8 + $0xb8] sm:$0xf]
    %v1182 = vld [vmem:[#allocation8 + $0xbc] sm:$0xf]
    %v1183 = vld [vmem:[#allocation8 + $0xc0] sm:$0xf]
    %v1184 = vld [vmem:[#allocation8 + $0xc4] sm:$0xf]
    %v1185 = vld [vmem:[#allocation8 + $0xc8] sm:$0xf]
    %v1186 = vld [vmem:[#allocation8 + $0xcc] sm:$0xf]
    %v1187 = vld [vmem:[#allocation8 + $0xd0] sm:$0xf]
    %v1188 = vld [vmem:[#allocation8 + $0xd4] sm:$0xf]
    %v1189 = vld [vmem:[#allocation8 + $0xd8] sm:$0xf]
    %v1190 = vld [vmem:[#allocation8 + $0xdc] sm:$0xf]
    %v1191 = vld [vmem:[#allocation8 + $0xe0] sm:$0xf]
    %v1192 = vld [vmem:[#allocation8 + $0xe4] sm:$0xf]
    %v1193 = vld [vmem:[#allocation8 + $0xe8] sm:$0xf]
    %v1194 = vld [vmem:[#allocation8 + $0xec] sm:$0xf]
    %v1195 = vld [vmem:[#allocation8 + $0xf0] sm:$0xf]
    %v1196 = vld [vmem:[#allocation8 + $0xf4] sm:$0xf]
    %v1197 = vld [vmem:[#allocation8 + $0xf8] sm:$0xf]
    %v1198 = vld [vmem:[#allocation8 + $0xfc] sm:$0xf]
    %v1199 = vld [vmem:[#allocation8 + $0x100] sm:$0xf]
    %v1200 = vld [vmem:[#allocation8 + $0x104] sm:$0xf]
    %v1201 = vld [vmem:[#allocation8 + $0x108] sm:$0xf]
    %v1202 = vld [vmem:[#allocation8 + $0x10c] sm:$0xf]
    %v1203 = vld [vmem:[#allocation8 + $0x110] sm:$0xf]
    %v1204 = vld [vmem:[#allocation8 + $0x114] sm:$0xf]
    %v1205 = vld [vmem:[#allocation8 + $0x118] sm:$0xf]
    %v1206 = vld [vmem:[#allocation8 + $0x11c] sm:$0xf]
    %v1207 = vld [vmem:[#allocation8 + $0x120] sm:$0xf]
    %v1208 = vld [vmem:[#allocation8 + $0x124] sm:$0xf]
    %v1209 = vld [vmem:[#allocation8 + $0x128] sm:$0xf]
    %v1210 = vld [vmem:[#allocation8 + $0x12c] sm:$0xf]
    %v1211 = vld [vmem:[#allocation8 + $0x130] sm:$0xf]
    %v1212 = vld [vmem:[#allocation8 + $0x134] sm:$0xf]
    %v1213 = vld [vmem:[#allocation8 + $0x138] sm:$0xf]
    %v1214 = vld [vmem:[#allocation8 + $0x13c] sm:$0xf]
    %v1215 = vld [vmem:[#allocation8 + $0x140] sm:$0xf]
    %v1216 = vld [vmem:[#allocation8 + $0x144] sm:$0xf]
    %v1217 = vld [vmem:[#allocation8 + $0x148] sm:$0xf]
    %v1218 = vld [vmem:[#allocation8 + $0x14c] sm:$0xf]
    %v1219 = vld [vmem:[#allocation8 + $0x150] sm:$0xf]
    %v1220 = vld [vmem:[#allocation8 + $0x154] sm:$0xf]
    %v1221 = vld [vmem:[#allocation8 + $0x158] sm:$0xf]
    %v1222 = vld [vmem:[#allocation8 + $0x15c] sm:$0xf]
    %v1223 = vld [vmem:[#allocation8 + $0x160] sm:$0xf]
    %v1224 = vld [vmem:[#allocation8 + $0x164] sm:$0xf]
    %v1225 = vld [vmem:[#allocation8 + $0x168] sm:$0xf]
    %v1226 = vld [vmem:[#allocation8 + $0x16c] sm:$0xf]
    %v1227 = vld [vmem:[#allocation8 + $0x170] sm:$0xf]
    %v1228 = vld [vmem:[#allocation8 + $0x174] sm:$0xf]
    %v1229 = vld [vmem:[#allocation8 + $0x178] sm:$0xf]
    %v1230 = vld [vmem:[#allocation8 + $0x17c] sm:$0xf]
    %v1231 = vld [vmem:[#allocation8 + $0x180] sm:$0xf]
    %v1232 = vld [vmem:[#allocation8 + $0x184] sm:$0xf]
    %v1233 = vld [vmem:[#allocation8 + $0x188] sm:$0xf]
    %v1234 = vld [vmem:[#allocation8 + $0x18c] sm:$0xf]
    %v1235 = vld [vmem:[#allocation8 + $0x190] sm:$0xf]
    %v1236 = vld [vmem:[#allocation8 + $0x194] sm:$0xf]
    %v1237 = vld [vmem:[#allocation8 + $0x198] sm:$0xf]
    %v1238 = vld [vmem:[#allocation8 + $0x19c] sm:$0xf]
    %v1239 = vld [vmem:[#allocation8 + $0x1a0] sm:$0xf]
    %v1240 = vld [vmem:[#allocation8 + $0x1a4] sm:$0xf]
    %v1241 = vld [vmem:[#allocation8 + $0x1a8] sm:$0xf]
    %v1242 = vld [vmem:[#allocation8 + $0x1ac] sm:$0xf]
    %v1243 = vld [vmem:[#allocation8 + $0x1b0] sm:$0xf]
    %v1244 = vld [vmem:[#allocation8 + $0x1b4] sm:$0xf]
    %v1245 = vld [vmem:[#allocation8 + $0x1b8] sm:$0xf]
    %v1246 = vld [vmem:[#allocation8 + $0x1bc] sm:$0xf]
    %v1359 = vunpack.c.l.b16 %v1135
    %v1360 = vunpack.c.l.b16 %v1136
    %v1361 = vunpack.c.l.b16 %v1137
    %v1362 = vunpack.c.l.b16 %v1138
    %v1363 = vunpack.c.l.b16 %v1139
    %v1364 = vunpack.c.l.b16 %v1140
    %v1365 = vunpack.c.l.b16 %v1141
    %v1366 = vunpack.c.l.b16 %v1142
    %v1367 = vunpack.c.l.b16 %v1143
    %v1368 = vunpack.c.l.b16 %v1144
    %v1369 = vunpack.c.l.b16 %v1145
    %v1370 = vunpack.c.l.b16 %v1146
    %v1371 = vunpack.c.l.b16 %v1147
    %v1372 = vunpack.c.l.b16 %v1148
    %v1373 = vunpack.c.l.b16 %v1149
    %v1374 = vunpack.c.l.b16 %v1150
    %v1375 = vunpack.c.l.b16 %v1151
    %v1376 = vunpack.c.l.b16 %v1152
    %v1377 = vunpack.c.l.b16 %v1153
    %v1378 = vunpack.c.l.b16 %v1154
    %v1379 = vunpack.c.l.b16 %v1155
    %v1380 = vunpack.c.l.b16 %v1156
    %v1381 = vunpack.c.l.b16 %v1157
    %v1382 = vunpack.c.l.b16 %v1158
    %v1383 = vunpack.c.l.b16 %v1159
    %v1384 = vunpack.c.l.b16 %v1160
    %v1385 = vunpack.c.l.b16 %v1161
    %v1386 = vunpack.c.l.b16 %v1162
    %v1387 = vunpack.c.l.b16 %v1163
    %v1388 = vunpack.c.l.b16 %v1164
    %v1389 = vunpack.c.l.b16 %v1165
    %v1390 = vunpack.c.l.b16 %v1166
    %v1391 = vunpack.c.l.b16 %v1167
    %v1392 = vunpack.c.l.b16 %v1168
    %v1393 = vunpack.c.l.b16 %v1169
    %v1394 = vunpack.c.l.b16 %v1170
    %v1395 = vunpack.c.l.b16 %v1171
    %v1396 = vunpack.c.l.b16 %v1172
    %v1397 = vunpack.c.l.b16 %v1173
    %v1398 = vunpack.c.l.b16 %v1174
    %v1399 = vunpack.c.l.b16 %v1175
    %v1400 = vunpack.c.l.b16 %v1176
    %v1401 = vunpack.c.l.b16 %v1177
    %v1402 = vunpack.c.l.b16 %v1178
    %v1403 = vunpack.c.l.b16 %v1179
    %v1404 = vunpack.c.l.b16 %v1180
    %v1405 = vunpack.c.l.b16 %v1181
    %v1406 = vunpack.c.l.b16 %v1182
    %v1407 = vunpack.c.l.b16 %v1183
    %v1408 = vunpack.c.l.b16 %v1184
    %v1409 = vunpack.c.l.b16 %v1185
    %v1410 = vunpack.c.l.b16 %v1186
    %v1411 = vunpack.c.l.b16 %v1187
    %v1412 = vunpack.c.l.b16 %v1188
    %v1413 = vunpack.c.l.b16 %v1189
    %v1414 = vunpack.c.l.b16 %v1190
    %v1415 = vunpack.c.l.b16 %v1191
    %v1416 = vunpack.c.l.b16 %v1192
    %v1417 = vunpack.c.l.b16 %v1193
    %v1418 = vunpack.c.l.b16 %v1194
    %v1419 = vunpack.c.l.b16 %v1195
    %v1420 = vunpack.c.l.b16 %v1196
    %v1421 = vunpack.c.l.b16 %v1197
    %v1422 = vunpack.c.l.b16 %v1198
    %v1423 = vunpack.c.l.b16 %v1199
    %v1424 = vunpack.c.l.b16 %v1200
    %v1425 = vunpack.c.l.b16 %v1201
    %v1426 = vunpack.c.l.b16 %v1202
    %v1427 = vunpack.c.l.b16 %v1203
    %v1428 = vunpack.c.l.b16 %v1204
    %v1429 = vunpack.c.l.b16 %v1205
    %v1430 = vunpack.c.l.b16 %v1206
    %v1431 = vunpack.c.l.b16 %v1207
    %v1432 = vunpack.c.l.b16 %v1208
    %v1433 = vunpack.c.l.b16 %v1209
    %v1434 = vunpack.c.l.b16 %v1210
    %v1435 = vunpack.c.l.b16 %v1211
    %v1436 = vunpack.c.l.b16 %v1212
    %v1437 = vunpack.c.l.b16 %v1213
    %v1438 = vunpack.c.l.b16 %v1214
    %v1439 = vunpack.c.l.b16 %v1215
    %v1440 = vunpack.c.l.b16 %v1216
    %v1441 = vunpack.c.l.b16 %v1217
    %v1442 = vunpack.c.l.b16 %v1218
    %v1443 = vunpack.c.l.b16 %v1219
    %v1444 = vunpack.c.l.b16 %v1220
    %v1445 = vunpack.c.l.b16 %v1221
    %v1446 = vunpack.c.l.b16 %v1222
    %v1447 = vunpack.c.l.b16 %v1223
    %v1448 = vunpack.c.l.b16 %v1224
    %v1449 = vunpack.c.l.b16 %v1225
    %v1450 = vunpack.c.l.b16 %v1226
    %v1451 = vunpack.c.l.b16 %v1227
    %v1452 = vunpack.c.l.b16 %v1228
    %v1453 = vunpack.c.l.b16 %v1229
    %v1454 = vunpack.c.l.b16 %v1230
    %v1455 = vunpack.c.l.b16 %v1231
    %v1456 = vunpack.c.l.b16 %v1232
    %v1457 = vunpack.c.l.b16 %v1233
    %v1458 = vunpack.c.l.b16 %v1234
    %v1459 = vunpack.c.l.b16 %v1235
    %v1460 = vunpack.c.l.b16 %v1236
    %v1461 = vunpack.c.l.b16 %v1237
    %v1462 = vunpack.c.l.b16 %v1238
    %v1463 = vunpack.c.l.b16 %v1239
    %v1464 = vunpack.c.l.b16 %v1240
    %v1465 = vunpack.c.l.b16 %v1241
    %v1466 = vunpack.c.l.b16 %v1242
    %v1467 = vunpack.c.l.b16 %v1243
    %v1468 = vunpack.c.l.b16 %v1244
    %v1469 = vunpack.c.l.b16 %v1245
    %v1470 = vunpack.c.l.b16 %v1246
    %v1471 = vpack.c.b16 %v1360, %v1359
    %v1472 = vpack.c.b16 %v1362, %v1361
    %v1473 = vpack.c.b16 %v1364, %v1363
    %v1474 = vpack.c.b16 %v1366, %v1365
    %v1475 = vpack.c.b16 %v1368, %v1367
    %v1476 = vpack.c.b16 %v1370, %v1369
    %v1477 = vpack.c.b16 %v1372, %v1371
    %v1478 = vpack.c.b16 %v1374, %v1373
    %v1479 = vpack.c.b16 %v1376, %v1375
    %v1480 = vpack.c.b16 %v1378, %v1377
    %v1481 = vpack.c.b16 %v1380, %v1379
    %v1482 = vpack.c.b16 %v1382, %v1381
    %v1483 = vpack.c.b16 %v1384, %v1383
    %v1484 = vpack.c.b16 %v1386, %v1385
    %v1485 = vpack.c.b16 %v1388, %v1387
    %v1486 = vpack.c.b16 %v1390, %v1389
    %v1487 = vpack.c.b16 %v1392, %v1391
    %v1488 = vpack.c.b16 %v1394, %v1393
    %v1489 = vpack.c.b16 %v1396, %v1395
    %v1490 = vpack.c.b16 %v1398, %v1397
    %v1491 = vpack.c.b16 %v1400, %v1399
    %v1492 = vpack.c.b16 %v1402, %v1401
    %v1493 = vpack.c.b16 %v1404, %v1403
    %v1494 = vpack.c.b16 %v1406, %v1405
    %v1495 = vpack.c.b16 %v1408, %v1407
    %v1496 = vpack.c.b16 %v1410, %v1409
    %v1497 = vpack.c.b16 %v1412, %v1411
    %v1498 = vpack.c.b16 %v1414, %v1413
    %v1499 = vpack.c.b16 %v1416, %v1415
    %v1500 = vpack.c.b16 %v1418, %v1417
    %v1501 = vpack.c.b16 %v1420, %v1419
    %v1502 = vpack.c.b16 %v1422, %v1421
    %v1503 = vpack.c.b16 %v1424, %v1423
    %v1504 = vpack.c.b16 %v1426, %v1425
    %v1505 = vpack.c.b16 %v1428, %v1427
    %v1506 = vpack.c.b16 %v1430, %v1429
    %v1507 = vpack.c.b16 %v1432, %v1431
    %v1508 = vpack.c.b16 %v1434, %v1433
    %v1509 = vpack.c.b16 %v1436, %v1435
    %v1510 = vpack.c.b16 %v1438, %v1437
    %v1511 = vpack.c.b16 %v1440, %v1439
    %v1512 = vpack.c.b16 %v1442, %v1441
    %v1513 = vpack.c.b16 %v1444, %v1443
    %v1514 = vpack.c.b16 %v1446, %v1445
    %v1515 = vpack.c.b16 %v1448, %v1447
    %v1516 = vpack.c.b16 %v1450, %v1449
    %v1517 = vpack.c.b16 %v1452, %v1451
    %v1518 = vpack.c.b16 %v1454, %v1453
    %v1519 = vpack.c.b16 %v1456, %v1455
    %v1520 = vpack.c.b16 %v1458, %v1457
    %v1521 = vpack.c.b16 %v1460, %v1459
    %v1522 = vpack.c.b16 %v1462, %v1461
    %v1523 = vpack.c.b16 %v1464, %v1463
    %v1524 = vpack.c.b16 %v1466, %v1465
    %v1525 = vpack.c.b16 %v1468, %v1467
    %v1526 = vpack.c.b16 %v1470, %v1469
    %1583 = vmatprep.subr.bf16.mxu0 0
    %1584 = vmatpush1.bf16.msra.mxu0 %v1478
    %1585 = vmatprep.subr.bf16.mxu0 0
    %1586 = vmatpush1.bf16.msra.mxu0 %v1477
    %1587 = vmatprep.subr.bf16.mxu0 0
    %1588 = vmatpush1.bf16.msra.mxu0 %v1476
    %1589 = vmatprep.subr.bf16.mxu0 0
    %1590 = vmatpush1.bf16.msra.mxu0 %v1475
    %1591 = vmatprep.subr.bf16.mxu0 0
    %1592 = vmatpush1.bf16.msra.mxu0 %v1474
    %1593 = vmatprep.subr.bf16.mxu0 0
    %1594 = vmatpush1.bf16.msra.mxu0 %v1473
    %1595 = vmatprep.subr.bf16.mxu0 0
    %1596 = vmatpush1.bf16.msra.mxu0 %v1472
    %1597 = vmatprep.subr.bf16.mxu0 0
    %1598 = vmatpush1.bf16.msra.mxu0 %v1471
    %1599 = vmatprep.subr.bf16.mxu0 0
    %1600 = vmatpush2.bf16.msra.mxu0 %v1486
    %1601 = vmatprep.subr.bf16.mxu0 0
    %1602 = vmatpush2.bf16.msra.mxu0 %v1485
    %1603 = vmatprep.subr.bf16.mxu0 0
    %1604 = vmatpush2.bf16.msra.mxu0 %v1484
    %1605 = vmatprep.subr.bf16.mxu0 0
    %1606 = vmatpush2.bf16.msra.mxu0 %v1483
    %1607 = vmatprep.subr.bf16.mxu0 0
    %1608 = vmatpush2.bf16.msra.mxu0 %v1482
    %1609 = vmatprep.subr.bf16.mxu0 0
    %1610 = vmatpush2.bf16.msra.mxu0 %v1481
    %1611 = vmatprep.subr.bf16.mxu0 0
    %1612 = vmatpush2.bf16.msra.mxu0 %v1480
    %1613 = vmatprep.subr.bf16.mxu0 0
    %1614 = vmatpush2.bf16.msra.mxu0 %v1479
    %1615 = vmatprep.mubr.bf16.mxu0 %v1129
    %1616 = vmatmul.mubr.bf16.gmra.mxu0 %v1128
    %v1617 = vpop.f32.mrf.mxu0
    %v1618 = vadd.f32 0.0, %v1617
    %v1619 = vpop.f32.mrf.mxu0
    %v1620 = vpop.f32.mrf.mxu0
    %v1621 = vpop.f32.mrf.mxu0
    %1622 = vdwg.mxu0
    %1623 = vmatprep.subr.bf16.mxu0 0
    %1624 = vmatpush1.bf16.msra.mxu0 %v1494
    %1625 = vmatprep.subr.bf16.mxu0 0
    %1626 = vmatpush1.bf16.msra.mxu0 %v1493
    %1627 = vmatprep.subr.bf16.mxu0 0
    %1628 = vmatpush1.bf16.msra.mxu0 %v1492
    %1629 = vmatprep.subr.bf16.mxu0 0
    %1630 = vmatpush1.bf16.msra.mxu0 %v1491
    %1631 = vmatprep.subr.bf16.mxu0 0
    %1632 = vmatpush1.bf16.msra.mxu0 %v1490
    %1633 = vmatprep.subr.bf16.mxu0 0
    %1634 = vmatpush1.bf16.msra.mxu0 %v1489
    %1635 = vmatprep.subr.bf16.mxu0 0
    %1636 = vmatpush1.bf16.msra.mxu0 %v1488
    %1637 = vmatprep.subr.bf16.mxu0 0
    %1638 = vmatpush1.bf16.msra.mxu0 %v1487
    %1639 = vmatprep.subr.bf16.mxu0 0
    %1640 = vmatpush2.bf16.msra.mxu0 %v1502
    %1641 = vmatprep.subr.bf16.mxu0 0
    %1642 = vmatpush2.bf16.msra.mxu0 %v1501
    %1643 = vmatprep.subr.bf16.mxu0 0
    %1644 = vmatpush2.bf16.msra.mxu0 %v1500
    %1645 = vmatprep.subr.bf16.mxu0 0
    %1646 = vmatpush2.bf16.msra.mxu0 %v1499
    %1647 = vmatprep.subr.bf16.mxu0 0
    %1648 = vmatpush2.bf16.msra.mxu0 %v1498
    %1649 = vmatprep.subr.bf16.mxu0 0
    %1650 = vmatpush2.bf16.msra.mxu0 %v1497
    %1651 = vmatprep.subr.bf16.mxu0 0
    %1652 = vmatpush2.bf16.msra.mxu0 %v1496
    %1653 = vmatprep.subr.bf16.mxu0 0
    %1654 = vmatpush2.bf16.msra.mxu0 %v1495
    %1655 = vmatprep.mubr.bf16.mxu0 %v1131
    %1656 = vmatmul.mubr.bf16.gmra.mxu0 %v1130
    %v1657 = vpop.f32.mrf.mxu0
    %v1658 = vadd.f32 %v1618, %v1657
    %v1659 = vpop.f32.mrf.mxu0
    %v1660 = vpop.f32.mrf.mxu0
    %v1661 = vpop.f32.mrf.mxu0
    %1662 = vdwg.mxu0
    %1663 = vmatprep.subr.bf16.mxu0 0
    %1664 = vmatpush1.bf16.msra.mxu0 %v1510
    %1665 = vmatprep.subr.bf16.mxu0 0
    %1666 = vmatpush1.bf16.msra.mxu0 %v1509
    %1667 = vmatprep.subr.bf16.mxu0 0
    %1668 = vmatpush1.bf16.msra.mxu0 %v1508
    %1669 = vmatprep.subr.bf16.mxu0 0
    %1670 = vmatpush1.bf16.msra.mxu0 %v1507
    %1671 = vmatprep.subr.bf16.mxu0 0
    %1672 = vmatpush1.bf16.msra.mxu0 %v1506
    %1673 = vmatprep.subr.bf16.mxu0 0
    %1674 = vmatpush1.bf16.msra.mxu0 %v1505
    %1675 = vmatprep.subr.bf16.mxu0 0
    %1676 = vmatpush1.bf16.msra.mxu0 %v1504
    %1677 = vmatprep.subr.bf16.mxu0 0
    %1678 = vmatpush1.bf16.msra.mxu0 %v1503
    %1679 = vmatprep.subr.bf16.mxu0 0
    %1680 = vmatpush2.bf16.msra.mxu0 %v1518
    %1681 = vmatprep.subr.bf16.mxu0 0
    %1682 = vmatpush2.bf16.msra.mxu0 %v1517
    %1683 = vmatprep.subr.bf16.mxu0 0
    %1684 = vmatpush2.bf16.msra.mxu0 %v1516
    %1685 = vmatprep.subr.bf16.mxu0 0
    %1686 = vmatpush2.bf16.msra.mxu0 %v1515
    %1687 = vmatprep.subr.bf16.mxu0 0
    %1688 = vmatpush2.bf16.msra.mxu0 %v1514
    %1689 = vmatprep.subr.bf16.mxu0 0
    %1690 = vmatpush2.bf16.msra.mxu0 %v1513
    %1691 = vmatprep.subr.bf16.mxu0 0
    %1692 = vmatpush2.bf16.msra.mxu0 %v1512
    %1693 = vmatprep.subr.bf16.mxu0 0
    %1694 = vmatpush2.bf16.msra.mxu0 %v1511
    %1695 = vmatprep.mubr.bf16.mxu0 %v1133
    %1696 = vmatmul.mubr.bf16.gmra.mxu0 %v1132
    %v1697 = vpop.f32.mrf.mxu0
    %v1698 = vadd.f32 %v1658, %v1697
    %v1699 = vpop.f32.mrf.mxu0
    %v1700 = vpop.f32.mrf.mxu0
    %v1701 = vpop.f32.mrf.mxu0
    %1702 = vdwg.mxu0
    %1703 = vmatprep.subr.bf16.mxu0 0
    %1704 = vmatpush1.bf16.msra.mxu0 %v1526
    %1705 = vmatprep.subr.bf16.mxu0 0
    %1706 = vmatpush1.bf16.msra.mxu0 %v1525
    %1707 = vmatprep.subr.bf16.mxu0 0
    %1708 = vmatpush1.bf16.msra.mxu0 %v1524
    %1709 = vmatprep.subr.bf16.mxu0 0
    %1710 = vmatpush1.bf16.msra.mxu0 %v1523
    %1711 = vmatprep.subr.bf16.mxu0 0
    %1712 = vmatpush1.bf16.msra.mxu0 %v1522
    %1713 = vmatprep.subr.bf16.mxu0 0
    %1714 = vmatpush1.bf16.msra.mxu0 %v1521
    %1715 = vmatprep.subr.bf16.mxu0 0
    %1716 = vmatpush1.bf16.msra.mxu0 %v1520
    %1717 = vmatprep.subr.bf16.mxu0 0
    %1718 = vmatpush1.bf16.msra.mxu0 %v1519
    %1719 = vmatprep.subr.bf16.mxu0 0
    %1720 = vmatpush2.bf16.msra.mxu0 0
    %1721 = vmatprep.subr.bf16.mxu0 0
    %1722 = vmatpush2.bf16.msra.mxu0 0
    %1723 = vmatprep.subr.bf16.mxu0 0
    %1724 = vmatpush2.bf16.msra.mxu0 0
    %1725 = vmatprep.subr.bf16.mxu0 0
    %1726 = vmatpush2.bf16.msra.mxu0 0
    %1727 = vmatprep.subr.bf16.mxu0 0
    %1728 = vmatpush2.bf16.msra.mxu0 0
    %1729 = vmatprep.subr.bf16.mxu0 0
    %1730 = vmatpush2.bf16.msra.mxu0 0
    %1731 = vmatprep.subr.bf16.mxu0 0
    %1732 = vmatpush2.bf16.msra.mxu0 0
    %1733 = vmatprep.subr.bf16.mxu0 0
    %1734 = vmatpush2.bf16.msra.mxu0 0
    %1735 = vmatprep.mubr.bf16.mxu0 0
    %1736 = vmatmul.mubr.bf16.gmra.mxu0 %v1134
    %v1737 = vpop.f32.mrf.mxu0
    %v1738 = vadd.f32 %v1698, %v1737
    %v1739 = vpop.f32.mrf.mxu0
    %v1740 = vpop.f32.mrf.mxu0
    %v1741 = vpop.f32.mrf.mxu0
    %1742 = vdwg.mxu0
    %v1743 = vpack.c.bf16 %v1738, %v1738
    %v1744 = vld [vmem:[#allocation10 + $0x7] sm:$0x1]
    %v1746 = vpack.i.b16 %v1744, %v1744
    %v1748 = vlaneseq
    %v1749 = vshrl.u32 %v1748, 7
    %v1750 = vsub.s32 0, %v1749
    %v1751 = vrot.slane %v1746, %v1750
    %v1752 = vadd.bf16 %v1743, %v1751
    %v1753 = vmax.bf16 %v1752, 0
    %v1754 = vld [vmem:[#allocation8 + $0x1c0] sm:$0xf]
    %v1755 = vld [vmem:[#allocation8 + $0x1c4] sm:$0xf]
    %v1756 = vld [vmem:[#allocation8 + $0x1c8] sm:$0xf]
    %v1757 = vld [vmem:[#allocation8 + $0x1cc] sm:$0xf]
    %v1758 = vld [vmem:[#allocation8 + $0x1d0] sm:$0xf]
    %v1759 = vld [vmem:[#allocation8 + $0x1d4] sm:$0xf]
    %v1760 = vld [vmem:[#allocation8 + $0x1d8] sm:$0xf]
    %v1761 = vld [vmem:[#allocation8 + $0x1dc] sm:$0xf]
    %v1762 = vld [vmem:[#allocation8 + $0x1e0] sm:$0xf]
    %v1763 = vld [vmem:[#allocation8 + $0x1e4] sm:$0xf]
    %v1764 = vld [vmem:[#allocation8 + $0x1e8] sm:$0xf]
    %v1765 = vld [vmem:[#allocation8 + $0x1ec] sm:$0xf]
    %v1766 = vld [vmem:[#allocation8 + $0x1f0] sm:$0xf]
    %v1767 = vld [vmem:[#allocation8 + $0x1f4] sm:$0xf]
    %v1768 = vld [vmem:[#allocation8 + $0x1f8] sm:$0xf]
    %v1769 = vld [vmem:[#allocation8 + $0x1fc] sm:$0xf]
    %v1786 = vunpack.c.l.b16 %v1754
    %v1787 = vunpack.c.l.b16 %v1755
    %v1788 = vunpack.c.l.b16 %v1756
    %v1789 = vunpack.c.l.b16 %v1757
    %v1790 = vunpack.c.l.b16 %v1758
    %v1791 = vunpack.c.l.b16 %v1759
    %v1792 = vunpack.c.l.b16 %v1760
    %v1793 = vunpack.c.l.b16 %v1761
    %v1794 = vunpack.c.l.b16 %v1762
    %v1795 = vunpack.c.l.b16 %v1763
    %v1796 = vunpack.c.l.b16 %v1764
    %v1797 = vunpack.c.l.b16 %v1765
    %v1798 = vunpack.c.l.b16 %v1766
    %v1799 = vunpack.c.l.b16 %v1767
    %v1800 = vunpack.c.l.b16 %v1768
    %v1801 = vunpack.c.l.b16 %v1769
    %v1802 = vpack.c.b16 %v1787, %v1786
    %v1803 = vpack.c.b16 %v1789, %v1788
    %v1804 = vpack.c.b16 %v1791, %v1790
    %v1805 = vpack.c.b16 %v1793, %v1792
    %v1806 = vpack.c.b16 %v1795, %v1794
    %v1807 = vpack.c.b16 %v1797, %v1796
    %v1808 = vpack.c.b16 %v1799, %v1798
    %v1809 = vpack.c.b16 %v1801, %v1800
    %1818 = vmatprep.subr.bf16.mxu0 0
    %1819 = vmatpush1.bf16.msra.mxu0 %v1809
    %1820 = vmatprep.subr.bf16.mxu0 0
    %1821 = vmatpush1.bf16.msra.mxu0 %v1808
    %1822 = vmatprep.subr.bf16.mxu0 0
    %1823 = vmatpush1.bf16.msra.mxu0 %v1807
    %1824 = vmatprep.subr.bf16.mxu0 0
    %1825 = vmatpush1.bf16.msra.mxu0 %v1806
    %1826 = vmatprep.subr.bf16.mxu0 0
    %1827 = vmatpush1.bf16.msra.mxu0 %v1805
    %1828 = vmatprep.subr.bf16.mxu0 0
    %1829 = vmatpush1.bf16.msra.mxu0 %v1804
    %1830 = vmatprep.subr.bf16.mxu0 0
    %1831 = vmatpush1.bf16.msra.mxu0 %v1803
    %1832 = vmatprep.subr.bf16.mxu0 0
    %1833 = vmatpush1.bf16.msra.mxu0 %v1802
    %1834 = vmatprep.subr.bf16.mxu0 0
    %1835 = vmatpush2.bf16.msra.mxu0 0
    %1836 = vmatprep.subr.bf16.mxu0 0
    %1837 = vmatpush2.bf16.msra.mxu0 0
    %1838 = vmatprep.subr.bf16.mxu0 0
    %1839 = vmatpush2.bf16.msra.mxu0 0
    %1840 = vmatprep.subr.bf16.mxu0 0
    %1841 = vmatpush2.bf16.msra.mxu0 0
    %1842 = vmatprep.subr.bf16.mxu0 0
    %1843 = vmatpush2.bf16.msra.mxu0 0
    %1844 = vmatprep.subr.bf16.mxu0 0
    %1845 = vmatpush2.bf16.msra.mxu0 0
    %1846 = vmatprep.subr.bf16.mxu0 0
    %1847 = vmatpush2.bf16.msra.mxu0 0
    %1848 = vmatprep.subr.bf16.mxu0 0
    %1849 = vmatpush2.bf16.msra.mxu0 0
    %1850 = vmatprep.mubr.bf16.mxu0 0
    %1851 = vmatmul.mubr.bf16.gmra.mxu0 %v1753
    %v1852 = vpop.f32.mrf.mxu0
    %v1853 = vadd.f32 0.0, %v1852
    %v1854 = vpop.f32.mrf.mxu0
    %v1855 = vpop.f32.mrf.mxu0
    %v1856 = vpop.f32.mrf.mxu0
    %1857 = vdwg.mxu0
    %v1858 = vpack.c.bf16 %v1853, %v1853
    %v1859 = vld [vmem:[#allocation10 + $0x8] sm:$0x1]
    %v1861 = vpack.i.b16 %v1859, %v1859
    %v1863 = vlaneseq
    %v1864 = vshrl.u32 %v1863, 7
    %v1865 = vsub.s32 0, %v1864
    %v1866 = vrot.slane %v1861, %v1865
    %v1867 = vadd.bf16 %v1858, %v1866
    %v1868 = vmax.bf16 %v1867, 0
    %v1869 = vld [vmem:[#allocation8 + $0x200] sm:$0xf]
    %v1870 = vld [vmem:[#allocation8 + $0x204] sm:$0xf]
    %v1871 = vld [vmem:[#allocation8 + $0x208] sm:$0xf]
    %v1872 = vld [vmem:[#allocation8 + $0x20c] sm:$0xf]
    %v1873 = vld [vmem:[#allocation8 + $0x210] sm:$0xf]
    %v1874 = vld [vmem:[#allocation8 + $0x214] sm:$0xf]
    %v1875 = vld [vmem:[#allocation8 + $0x218] sm:$0xf]
    %v1876 = vld [vmem:[#allocation8 + $0x21c] sm:$0xf]
    %v1877 = vld [vmem:[#allocation8 + $0x220] sm:$0xf]
    %v1878 = vld [vmem:[#allocation8 + $0x224] sm:$0xf]
    %v1879 = vld [vmem:[#allocation8 + $0x228] sm:$0xf]
    %v1880 = vld [vmem:[#allocation8 + $0x22c] sm:$0xf]
    %v1881 = vld [vmem:[#allocation8 + $0x230] sm:$0xf]
    %v1882 = vld [vmem:[#allocation8 + $0x234] sm:$0xf]
    %v1883 = vld [vmem:[#allocation8 + $0x238] sm:$0xf]
    %v1884 = vld [vmem:[#allocation8 + $0x23c] sm:$0xf]
    %v1901 = vunpack.c.l.b16 %v1869
    %v1902 = vunpack.c.l.b16 %v1870
    %v1903 = vunpack.c.l.b16 %v1871
    %v1904 = vunpack.c.l.b16 %v1872
    %v1905 = vunpack.c.l.b16 %v1873
    %v1906 = vunpack.c.l.b16 %v1874
    %v1907 = vunpack.c.l.b16 %v1875
    %v1908 = vunpack.c.l.b16 %v1876
    %v1909 = vunpack.c.l.b16 %v1877
    %v1910 = vunpack.c.l.b16 %v1878
    %v1911 = vunpack.c.l.b16 %v1879
    %v1912 = vunpack.c.l.b16 %v1880
    %v1913 = vunpack.c.l.b16 %v1881
    %v1914 = vunpack.c.l.b16 %v1882
    %v1915 = vunpack.c.l.b16 %v1883
    %v1916 = vunpack.c.l.b16 %v1884
    %v1917 = vpack.c.b16 %v1902, %v1901
    %v1918 = vpack.c.b16 %v1904, %v1903
    %v1919 = vpack.c.b16 %v1906, %v1905
    %v1920 = vpack.c.b16 %v1908, %v1907
    %v1921 = vpack.c.b16 %v1910, %v1909
    %v1922 = vpack.c.b16 %v1912, %v1911
    %v1923 = vpack.c.b16 %v1914, %v1913
    %v1924 = vpack.c.b16 %v1916, %v1915
    %1933 = vmatprep.subr.bf16.mxu0 0
    %1934 = vmatpush1.bf16.msra.mxu0 %v1924
    %1935 = vmatprep.subr.bf16.mxu0 0
    %1936 = vmatpush1.bf16.msra.mxu0 %v1923
    %1937 = vmatprep.subr.bf16.mxu0 0
    %1938 = vmatpush1.bf16.msra.mxu0 %v1922
    %1939 = vmatprep.subr.bf16.mxu0 0
    %1940 = vmatpush1.bf16.msra.mxu0 %v1921
    %1941 = vmatprep.subr.bf16.mxu0 0
    %1942 = vmatpush1.bf16.msra.mxu0 %v1920
    %1943 = vmatprep.subr.bf16.mxu0 0
    %1944 = vmatpush1.bf16.msra.mxu0 %v1919
    %1945 = vmatprep.subr.bf16.mxu0 0
    %1946 = vmatpush1.bf16.msra.mxu0 %v1918
    %1947 = vmatprep.subr.bf16.mxu0 0
    %1948 = vmatpush1.bf16.msra.mxu0 %v1917
    %1949 = vmatprep.subr.bf16.mxu0 0
    %1950 = vmatpush2.bf16.msra.mxu0 0
    %1951 = vmatprep.subr.bf16.mxu0 0
    %1952 = vmatpush2.bf16.msra.mxu0 0
    %1953 = vmatprep.subr.bf16.mxu0 0
    %1954 = vmatpush2.bf16.msra.mxu0 0
    %1955 = vmatprep.subr.bf16.mxu0 0
    %1956 = vmatpush2.bf16.msra.mxu0 0
    %1957 = vmatprep.subr.bf16.mxu0 0
    %1958 = vmatpush2.bf16.msra.mxu0 0
    %1959 = vmatprep.subr.bf16.mxu0 0
    %1960 = vmatpush2.bf16.msra.mxu0 0
    %1961 = vmatprep.subr.bf16.mxu0 0
    %1962 = vmatpush2.bf16.msra.mxu0 0
    %1963 = vmatprep.subr.bf16.mxu0 0
    %1964 = vmatpush2.bf16.msra.mxu0 0
    %1965 = vmatprep.mubr.bf16.mxu0 0
    %1966 = vmatmul.mubr.bf16.gmra.mxu0 %v1868
    %v1967 = vpop.f32.mrf.mxu0
    %v1968 = vadd.f32 0.0, %v1967
    %v1969 = vpop.f32.mrf.mxu0
    %v1970 = vpop.f32.mrf.mxu0
    %v1971 = vpop.f32.mrf.mxu0
    %1972 = vdwg.mxu0
    %v1973 = vpack.c.bf16 %v1968, %v1968
    %v1974 = vld [vmem:[#allocation10 + $0x9] sm:$0x1]
    %v1976 = vpack.i.b16 %v1974, %v1974
    %v1978 = vlaneseq
    %v1979 = vshrl.u32 %v1978, 7
    %v1980 = vsub.s32 0, %v1979
    %v1981 = vrot.slane %v1976, %v1980
    %v1982 = vadd.bf16 %v1973, %v1981
    %1983 = vst [vmem:[#allocation11] sm:$0xf] %v1982
    // Predicated region
    $region42: #{tpu_custom_call.1} parent=1 // pred_check
      _
    $region43: #{tpu_custom_call.1} parent=1 // pred_check_branch
      %1985 = sbr.rel (0) target = $region45
    $region44: #{tpu_custom_call.1} parent=1 // pred_region
      %s1987 = ssub.s32 64, 64
      %1988 = vsyncadd [#allocation4], %s1987
      %s1990 = sshll.u32 [#allocation11], 4
      %s1991 = int_to_ptr.vmem [resolvable:$true] %s1990
      %1993 = dma.vmem_to_hbm [thread:$0]  %s1991, 64, %s5, [#allocation4]
    $region45: #{tpu_custom_call.1} parent=1 // pred_fallthru
      _
    // Predicated region
    $region46: #{tpu_custom_call.1} parent=1 // pred_check
      _
    $region47: #{tpu_custom_call.1} parent=1 // pred_check_branch
      %1995 = sbr.rel (0) target = $region49
    $region48: #{tpu_custom_call.1} parent=1 // pred_region
      %1996 = dma.done [#allocation4], 64
    $region49: #{tpu_custom_call.1} parent=1 // pred_fallthru
      _
    %1997 = vsyncpa [#allocation3], 1
    %1998 = vsyncpa [#allocation6], 1
    %1999 = vsyncpa [#allocation9], 1
    %2000 = vsyncpa [#allocation4], 1

</llo_original>
